<compile_context>
chip_gen: v5e
topology: v5e:2x2
jax: 0.10.0
libtpu: 0.0.40
codegen_flags: <defaults>
</compile_context>

<pallas_src>
import jax
import jax.numpy as jnp
from jax import lax
from jax.experimental import pallas as pl
from jax.experimental.pallas import tpu as pltpu


def bilstm_dir_kernel(x_ref, wih_ref, whh_ref, b_ref, hid_ref, gates_ref):
    """One LSTM direction per grid step: d=0 forward, d=1 backward.

    x_ref:     (B*S, E)   bf16   encoder output, batch-first rows (row = b*S + t)
    wih_ref:   (1, E, 4H) bf16   input-hidden weights (this direction, pre-transposed)
    whh_ref:   (1, H, 4H) bf16   hidden-hidden weights (this direction, pre-transposed)
    b_ref:     (1, 1, 4H) f32    combined bias (b_ih + b_hh), PyTorch gate order [i,f,g,o]
    hid_ref:   (B, H)     f32    output block: final hidden state of this direction
    gates_ref: (B*S, 4H)  f32    VMEM scratch; row b*S + t = input-projected gates
    """
    d = pl.program_id(0)
    B, H = hid_ref.shape
    BS = x_ref.shape[0]
    S = BS // B

    wih = wih_ref[0]                    # (E, 4H) bf16
    whh = whh_ref[0]                    # (H, 4H) bf16
    bias = b_ref[0]                     # (1, 4H) f32

    # ---- Hoisted input projection: one fat MXU matmul, bias folded, outside
    # the serial loop.  (For production shapes tile this over B*S rows.) ----
    gates_ref[...] = (
        jnp.dot(x_ref[...], wih, preferred_element_type=jnp.float32) + bias)

    zeros = jnp.zeros((B, H), jnp.float32)

    # ---- Serial recurrence: only h @ Whh + elementwise per step. ----
    def step(t, carry):
        h, c = carry
        t_idx = d * (S - 1) + (1 - 2 * d) * t          # fwd: t,  bwd: S-1-t
        g_in = jnp.concatenate(
            [gates_ref[pl.ds(b * S + t_idx, 1), :] for b in range(B)], axis=0)  # (B, 4H)
        gates = g_in + jnp.dot(h.astype(jnp.bfloat16), whh,
                               preferred_element_type=jnp.float32)
        i_g = jax.nn.sigmoid(gates[:, 0 * H:1 * H])
        f_g = jax.nn.sigmoid(gates[:, 1 * H:2 * H])
        g_g = jnp.tanh(gates[:, 2 * H:3 * H])
        o_g = jax.nn.sigmoid(gates[:, 3 * H:4 * H])
        c_new = f_g * c + i_g * g_g
        h_new = o_g * jnp.tanh(c_new)
        return h_new, c_new

    h, _c = lax.fori_loop(0, S, step, (zeros, zeros), unroll=True)
    hid_ref[...] = h                                    # final h of this direction


def classifier_kernel(hid_ref, wlin_ref, blin_ref, out_ref):
    """logits = hidden @ Wlin^T + b;  hidden is already [h_fwd | h_bwd]."""
    out_ref[...] = (jnp.dot(hid_ref[...].astype(jnp.bfloat16), wlin_ref[...],
                            preferred_element_type=jnp.float32)
                    + blin_ref[...])


def custom_bert_head(sequence_output, params, num_labels):
    """sequence_output: (B, S, E) batch-first encoder output. Returns (B, num_labels)."""
    B, S, E = sequence_output.shape
    H = params["whh"].shape[1]
    Lpad = params["wlin_T"].shape[1]

    # bf16 operands for the MXU (f32 accumulation inside the kernels).
    # (B, S, E) -> (B*S, E) is a free contiguous view (no transpose).
    x2d = sequence_output.reshape(B * S, E).astype(jnp.bfloat16)
    wih = params["wih"].astype(jnp.bfloat16)       # (2, E, 4H)
    whh = params["whh"].astype(jnp.bfloat16)       # (2, H, 4H)
    b = params["b"].astype(jnp.float32)            # (2, 1, 4H)
    wlin = params["wlin_T"].astype(jnp.bfloat16)   # (2H, Lpad)
    blin = params["blin"].astype(jnp.float32)      # (1, Lpad)

    # Kernel 1: bi-LSTM; grid over direction, marked "parallel" so fwd/bwd land
    # on separate TensorCores on v7x (sequential but equivalent on v5e/v6e).
    hidden = pl.pallas_call(
        bilstm_dir_kernel,
        out_shape=jax.ShapeDtypeStruct((B, 2 * H), jnp.float32),
        grid=(2,),
        in_specs=[
            pl.BlockSpec((B * S, E), lambda d: (0, 0)),
            pl.BlockSpec((1, E, 4 * H), lambda d: (d, 0, 0)),
            pl.BlockSpec((1, H, 4 * H), lambda d: (d, 0, 0)),
            pl.BlockSpec((1, 1, 4 * H), lambda d: (d, 0, 0)),
        ],
        out_specs=pl.BlockSpec((B, H), lambda d: (0, d)),
        scratch_shapes=[pltpu.VMEM((B * S, 4 * H), jnp.float32)],
        compiler_params=pltpu.CompilerParams(
            dimension_semantics=("parallel",),
            vmem_limit_bytes=32 * 1024 * 1024),
    )(x2d, wih, whh, b)

    # Kernel 2: classifier epilogue (single MXU push, lane-padded output).
    logits = pl.pallas_call(
        classifier_kernel,
        out_shape=jax.ShapeDtypeStruct((B, Lpad), jnp.float32),
        grid=(1,),
        in_specs=[
            pl.BlockSpec((B, 2 * H), lambda i: (0, 0)),
            pl.BlockSpec((2 * H, Lpad), lambda i: (0, 0)),
            pl.BlockSpec((1, Lpad), lambda i: (0, 0)),
        ],
        out_specs=pl.BlockSpec((B, Lpad), lambda i: (0, 0)),
        compiler_params=pltpu.CompilerParams(
            dimension_semantics=("arbitrary",)),
    )(hidden, wlin, blin)

    return logits[:, :num_labels]


def init_params(key, embedding_size, hidden, num_labels, lane_pad=128):
    """Deterministic synthetic parameters (PyTorch-style uniform init).

    Weights are stored pre-transposed and direction-stacked:
      wih: (2, E, 4H), whh: (2, H, 4H), b: (2, 1, 4H) (b_ih+b_hh combined),
      wlin_T: (2H, Lpad) lane-padded, blin: (1, Lpad).
    """
    k = jax.random.split(key, 8)
    bound = float(hidden) ** -0.5

    def u(kk, shape):
        return jax.random.uniform(kk, shape, jnp.float32, -bound, bound)

    lpad = max(num_labels, lane_pad)
    wlin_T = jnp.zeros((2 * hidden, lpad), jnp.float32)
    wlin_T = wlin_T.at[:, :num_labels].set(u(k[6], (2 * hidden, num_labels)))
    blin = jnp.zeros((1, lpad), jnp.float32)
    blin = blin.at[:, :num_labels].set(u(k[7], (1, num_labels)))

    return dict(
        wih=jnp.stack([u(k[0], (embedding_size, 4 * hidden)),
                       u(k[3], (embedding_size, 4 * hidden))]),
        whh=jnp.stack([u(k[1], (hidden, 4 * hidden)),
                       u(k[4], (hidden, 4 * hidden))]),
        b=jnp.stack([u(k[2], (1, 4 * hidden)),
                     u(k[5], (1, 4 * hidden))]),
        wlin_T=wlin_T,
        blin=blin,
    )


def reference_head(sequence_output, params, num_labels):
    """Pure-JAX reference with the same precision policy (bf16 matmul operands,
    f32 accumulation / activations) for a tight correctness check."""
    B, S, E = sequence_output.shape
    H = params["whh"].shape[1]
    bf16 = jnp.bfloat16
    x = sequence_output.astype(bf16)

    def run_dir(d, reverse):
        wih = params["wih"][d].astype(bf16)
        whh = params["whh"][d].astype(bf16)
        bias = params["b"][d]
        h = c = jnp.zeros((B, H), jnp.float32)
        ts = range(S - 1, -1, -1) if reverse else range(S)
        for t in ts:
            gates = (jnp.dot(x[:, t, :], wih, preferred_element_type=jnp.float32)
                     + jnp.dot(h.astype(bf16), whh, preferred_element_type=jnp.float32)
                     + bias)
            i = jax.nn.sigmoid(gates[:, :H])
            f = jax.nn.sigmoid(gates[:, H:2 * H])
            g = jnp.tanh(gates[:, 2 * H:3 * H])
            o = jax.nn.sigmoid(gates[:, 3 * H:])
            c = f * c + i * g
            h = o * jnp.tanh(c)
        return h

    hf = run_dir(0, reverse=False)   # forward final h  == lstm_out[:, -1, :H]
    hb = run_dir(1, reverse=True)    # backward final h == lstm_out[:,  0, H:]
    hidden = jnp.concatenate([hf, hb], axis=-1)
    logits = (jnp.dot(hidden.astype(bf16), params["wlin_T"].astype(bf16),
                      preferred_element_type=jnp.float32) + params["blin"])
    return logits[:, :num_labels]


if __name__ == "__main__":
    # Small shapes consistent with the module's forward pass:
    #   encoder last_hidden_state (B, S, E); LSTM hidden = 256 as in the module.
    B, S, E, H, NUM_LABELS = 2, 8, 64, 256, 3

    key = jax.random.PRNGKey(0)
    k_x, k_p = jax.random.split(key)
    sequence_output = jax.random.normal(k_x, (B, S, E), jnp.float32)
    params = init_params(k_p, E, H, NUM_LABELS)

    logits = custom_bert_head(sequence_output, params, NUM_LABELS)
    logits = jax.block_until_ready(logits)

    ref = reference_head(sequence_output, params, NUM_LABELS)
    assert logits.shape == (B, NUM_LABELS)
    assert jnp.allclose(logits, ref, atol=2e-3, rtol=2e-3), (
        float(jnp.max(jnp.abs(logits - ref))))

    print("KERNEL_OK")
</pallas_src>

<mosaic_0001>
module attributes {stable_mosaic.version = 11 : i64} {
  func.func @bilstm_dir_kernel(%arg0: i32, %arg1: memref<16x64xbf16, #tpu.memory_space<vmem>>, %arg2: memref<1x64x1024xbf16, #tpu.memory_space<vmem>>, %arg3: memref<1x256x1024xbf16, #tpu.memory_space<vmem>>, %arg4: memref<1x1x1024xf32, #tpu.memory_space<vmem>>, %arg5: memref<2x256xf32, #tpu.memory_space<vmem>>, %arg6: memref<16x1024xf32, #tpu.memory_space<vmem>>) attributes {dimension_semantics = [#tpu.dimension_semantics<parallel>], iteration_bounds = array<i64: 2>, scalar_prefetch = 0 : i64, scratch_operands = 1 : i64, tpu.core_type = #tpu.core_type<tc>, window_params = [{pipeline_mode = #tpu.pipeline_mode<synchronous>, transform_indices = @transform_0, window_bounds = array<i64: 16, 64>}, {transform_indices = @transform_1, window_bounds = array<i64: 1, 64, 1024>}, {transform_indices = @transform_2, window_bounds = array<i64: 1, 256, 1024>}, {transform_indices = @transform_3, window_bounds = array<i64: 1, 1, 1024>}, {transform_indices = @transform_4, window_bounds = array<i64: 2, 256>}]} {
    %c0 = arith.constant 0 : index
    %c0_0 = arith.constant 0 : index
    %c0_1 = arith.constant 0 : index
    %0 = vector.load %arg2[%c0, %c0_0, %c0_1] : memref<1x64x1024xbf16, #tpu.memory_space<vmem>>, vector<1x64x1024xbf16>
    %1 = vector.shape_cast %0 : vector<1x64x1024xbf16> to vector<64x1024xbf16>
    %c0_2 = arith.constant 0 : index
    %c0_3 = arith.constant 0 : index
    %c0_4 = arith.constant 0 : index
    %2 = vector.load %arg3[%c0_2, %c0_3, %c0_4] : memref<1x256x1024xbf16, #tpu.memory_space<vmem>>, vector<1x256x1024xbf16>
    %3 = vector.shape_cast %2 : vector<1x256x1024xbf16> to vector<256x1024xbf16>
    %c0_5 = arith.constant 0 : index
    %c0_6 = arith.constant 0 : index
    %c0_7 = arith.constant 0 : index
    %4 = vector.load %arg4[%c0_5, %c0_6, %c0_7] : memref<1x1x1024xf32, #tpu.memory_space<vmem>>, vector<1x1x1024xf32>
    %5 = vector.shape_cast %4 : vector<1x1x1024xf32> to vector<1x1024xf32>
    %c0_8 = arith.constant 0 : index
    %c0_9 = arith.constant 0 : index
    %6 = vector.load %arg1[%c0_8, %c0_9] : memref<16x64xbf16, #tpu.memory_space<vmem>>, vector<16x64xbf16>
    %cst = arith.constant dense<0.000000e+00> : vector<16x1024xf32>
    %7 = tpu.matmul %6, %1, %cst {dimension_numbers = #tpu.dot_dimension_numbers<[1], [0], [0], [1], [0, 0, 1, 1], [], []>} : vector<16x64xbf16>, vector<64x1024xbf16>, vector<16x1024xf32> -> vector<16x1024xf32>
    %8 = vector.broadcast %5 : vector<1x1024xf32> to vector<16x1024xf32>
    %9 = arith.addf %7, %8 : vector<16x1024xf32>
    %c0_10 = arith.constant 0 : index
    %c0_11 = arith.constant 0 : index
    %10 = vector.load %arg6[%c0_10, %c0_11] : memref<16x1024xf32, #tpu.memory_space<vmem>>, vector<16x1024xf32>
    tpu.vector_store %arg6[%c0_10, %c0_11], %9 {strides = array<i32>} : memref<16x1024xf32, #tpu.memory_space<vmem>>, vector<16x1024xf32>,
    %cst_12 = arith.constant 0.000000e+00 : f32
    %11 = vector.broadcast %cst_12 : f32 to vector<2x256xf32>
    %c0_i32 = arith.constant 0 : i32
    %c7_i32 = arith.constant 7 : i32
    %12 = arith.muli %arg0, %c7_i32 : i32
    %c2_i32 = arith.constant 2 : i32
    %13 = arith.muli %c2_i32, %arg0 : i32
    %c1_i32 = arith.constant 1 : i32
    %14 = arith.subi %c1_i32, %13 : i32
    %15 = arith.muli %14, %c0_i32 : i32
    %16 = arith.addi %12, %15 : i32
    %c0_i32_13 = arith.constant 0 : i32
    %17 = arith.addi %c0_i32_13, %16 : i32
    %18 = arith.index_cast %17 : i32 to index
    %c0_14 = arith.constant 0 : index
    %19 = vector.load %arg6[%18, %c0_14] : memref<16x1024xf32, #tpu.memory_space<vmem>>, vector<1x1024xf32>
    %c8_i32 = arith.constant 8 : i32
    %20 = arith.addi %c8_i32, %16 : i32
    %21 = arith.index_cast %20 : i32 to index
    %c0_15 = arith.constant 0 : index
    %22 = vector.load %arg6[%21, %c0_15] : memref<16x1024xf32, #tpu.memory_space<vmem>>, vector<1x1024xf32>
    %23 = tpu.concatenate %19, %22 in 0 : vector<1x1024xf32>, vector<1x1024xf32> -> vector<2x1024xf32>
    %24 = arith.truncf %11 : vector<2x256xf32> to vector<2x256xbf16>
    %cst_16 = arith.constant dense<0.000000e+00> : vector<2x1024xf32>
    %25 = tpu.matmul %24, %3, %cst_16 {dimension_numbers = #tpu.dot_dimension_numbers<[1], [0], [0], [1], [0, 0, 1, 1], [], []>} : vector<2x256xbf16>, vector<256x1024xbf16>, vector<2x1024xf32> -> vector<2x1024xf32>
    %26 = arith.addf %23, %25 : vector<2x1024xf32>
    %27 = vector.extract_strided_slice %26 {offsets = [0, 0], sizes = [2, 256], strides = [1, 1]} : vector<2x1024xf32> to vector<2x256xf32>
    %28 = arith.negf %27 : vector<2x256xf32>
    %29 = math.exp %28 : vector<2x256xf32>
    %cst_17 = arith.constant 1.000000e+00 : f32
    %30 = vector.broadcast %cst_17 : f32 to vector<2x256xf32>
    %31 = arith.addf %30, %29 : vector<2x256xf32>
    %32 = arith.divf %30, %31 : vector<2x256xf32>
    %33 = vector.extract_strided_slice %26 {offsets = [0, 256], sizes = [2, 256], strides = [1, 1]} : vector<2x1024xf32> to vector<2x256xf32>
    %34 = arith.negf %33 : vector<2x256xf32>
    %35 = math.exp %34 : vector<2x256xf32>
    %cst_18 = arith.constant 1.000000e+00 : f32
    %36 = vector.broadcast %cst_18 : f32 to vector<2x256xf32>
    %37 = arith.addf %36, %35 : vector<2x256xf32>
    %38 = arith.divf %36, %37 : vector<2x256xf32>
    %39 = vector.extract_strided_slice %26 {offsets = [0, 512], sizes = [2, 256], strides = [1, 1]} : vector<2x1024xf32> to vector<2x256xf32>
    %40 = math.tanh %39 : vector<2x256xf32>
    %41 = vector.extract_strided_slice %26 {offsets = [0, 768], sizes = [2, 256], strides = [1, 1]} : vector<2x1024xf32> to vector<2x256xf32>
    %42 = arith.negf %41 : vector<2x256xf32>
    %43 = math.exp %42 : vector<2x256xf32>
    %cst_19 = arith.constant 1.000000e+00 : f32
    %44 = vector.broadcast %cst_19 : f32 to vector<2x256xf32>
    %45 = arith.addf %44, %43 : vector<2x256xf32>
    %46 = arith.divf %44, %45 : vector<2x256xf32>
    %47 = arith.mulf %38, %11 : vector<2x256xf32>
    %48 = arith.mulf %32, %40 : vector<2x256xf32>
    %49 = arith.addf %47, %48 : vector<2x256xf32>
    %50 = math.tanh %49 : vector<2x256xf32>
    %51 = arith.mulf %46, %50 : vector<2x256xf32>
    %c1_i32_20 = arith.constant 1 : i32
    %c7_i32_21 = arith.constant 7 : i32
    %52 = arith.muli %arg0, %c7_i32_21 : i32
    %c2_i32_22 = arith.constant 2 : i32
    %53 = arith.muli %c2_i32_22, %arg0 : i32
    %c1_i32_23 = arith.constant 1 : i32
    %54 = arith.subi %c1_i32_23, %53 : i32
    %55 = arith.muli %54, %c1_i32_20 : i32
    %56 = arith.addi %52, %55 : i32
    %c0_i32_24 = arith.constant 0 : i32
    %57 = arith.addi %c0_i32_24, %56 : i32
    %58 = arith.index_cast %57 : i32 to index
    %c0_25 = arith.constant 0 : index
    %59 = vector.load %arg6[%58, %c0_25] : memref<16x1024xf32, #tpu.memory_space<vmem>>, vector<1x1024xf32>
    %c8_i32_26 = arith.constant 8 : i32
    %60 = arith.addi %c8_i32_26, %56 : i32
    %61 = arith.index_cast %60 : i32 to index
    %c0_27 = arith.constant 0 : index
    %62 = vector.load %arg6[%61, %c0_27] : memref<16x1024xf32, #tpu.memory_space<vmem>>, vector<1x1024xf32>
    %63 = tpu.concatenate %59, %62 in 0 : vector<1x1024xf32>, vector<1x1024xf32> -> vector<2x1024xf32>
    %64 = arith.truncf %51 : vector<2x256xf32> to vector<2x256xbf16>
    %cst_28 = arith.constant dense<0.000000e+00> : vector<2x1024xf32>
    %65 = tpu.matmul %64, %3, %cst_28 {dimension_numbers = #tpu.dot_dimension_numbers<[1], [0], [0], [1], [0, 0, 1, 1], [], []>} : vector<2x256xbf16>, vector<256x1024xbf16>, vector<2x1024xf32> -> vector<2x1024xf32>
    %66 = arith.addf %63, %65 : vector<2x1024xf32>
    %67 = vector.extract_strided_slice %66 {offsets = [0, 0], sizes = [2, 256], strides = [1, 1]} : vector<2x1024xf32> to vector<2x256xf32>
    %68 = arith.negf %67 : vector<2x256xf32>
    %69 = math.exp %68 : vector<2x256xf32>
    %cst_29 = arith.constant 1.000000e+00 : f32
    %70 = vector.broadcast %cst_29 : f32 to vector<2x256xf32>
    %71 = arith.addf %70, %69 : vector<2x256xf32>
    %72 = arith.divf %70, %71 : vector<2x256xf32>
    %73 = vector.extract_strided_slice %66 {offsets = [0, 256], sizes = [2, 256], strides = [1, 1]} : vector<2x1024xf32> to vector<2x256xf32>
    %74 = arith.negf %73 : vector<2x256xf32>
    %75 = math.exp %74 : vector<2x256xf32>
    %cst_30 = arith.constant 1.000000e+00 : f32
    %76 = vector.broadcast %cst_30 : f32 to vector<2x256xf32>
    %77 = arith.addf %76, %75 : vector<2x256xf32>
    %78 = arith.divf %76, %77 : vector<2x256xf32>
    %79 = vector.extract_strided_slice %66 {offsets = [0, 512], sizes = [2, 256], strides = [1, 1]} : vector<2x1024xf32> to vector<2x256xf32>
    %80 = math.tanh %79 : vector<2x256xf32>
    %81 = vector.extract_strided_slice %66 {offsets = [0, 768], sizes = [2, 256], strides = [1, 1]} : vector<2x1024xf32> to vector<2x256xf32>
    %82 = arith.negf %81 : vector<2x256xf32>
    %83 = math.exp %82 : vector<2x256xf32>
    %cst_31 = arith.constant 1.000000e+00 : f32
    %84 = vector.broadcast %cst_31 : f32 to vector<2x256xf32>
    %85 = arith.addf %84, %83 : vector<2x256xf32>
    %86 = arith.divf %84, %85 : vector<2x256xf32>
    %87 = arith.mulf %78, %49 : vector<2x256xf32>
    %88 = arith.mulf %72, %80 : vector<2x256xf32>
    %89 = arith.addf %87, %88 : vector<2x256xf32>
    %90 = math.tanh %89 : vector<2x256xf32>
    %91 = arith.mulf %86, %90 : vector<2x256xf32>
    %c2_i32_32 = arith.constant 2 : i32
    %c7_i32_33 = arith.constant 7 : i32
    %92 = arith.muli %arg0, %c7_i32_33 : i32
    %c2_i32_34 = arith.constant 2 : i32
    %93 = arith.muli %c2_i32_34, %arg0 : i32
    %c1_i32_35 = arith.constant 1 : i32
    %94 = arith.subi %c1_i32_35, %93 : i32
    %95 = arith.muli %94, %c2_i32_32 : i32
    %96 = arith.addi %92, %95 : i32
    %c0_i32_36 = arith.constant 0 : i32
    %97 = arith.addi %c0_i32_36, %96 : i32
    %98 = arith.index_cast %97 : i32 to index
    %c0_37 = arith.constant 0 : index
    %99 = vector.load %arg6[%98, %c0_37] : memref<16x1024xf32, #tpu.memory_space<vmem>>, vector<1x1024xf32>
    %c8_i32_38 = arith.constant 8 : i32
    %100 = arith.addi %c8_i32_38, %96 : i32
    %101 = arith.index_cast %100 : i32 to index
    %c0_39 = arith.constant 0 : index
    %102 = vector.load %arg6[%101, %c0_39] : memref<16x1024xf32, #tpu.memory_space<vmem>>, vector<1x1024xf32>
    %103 = tpu.concatenate %99, %102 in 0 : vector<1x1024xf32>, vector<1x1024xf32> -> vector<2x1024xf32>
    %104 = arith.truncf %91 : vector<2x256xf32> to vector<2x256xbf16>
    %cst_40 = arith.constant dense<0.000000e+00> : vector<2x1024xf32>
    %105 = tpu.matmul %104, %3, %cst_40 {dimension_numbers = #tpu.dot_dimension_numbers<[1], [0], [0], [1], [0, 0, 1, 1], [], []>} : vector<2x256xbf16>, vector<256x1024xbf16>, vector<2x1024xf32> -> vector<2x1024xf32>
    %106 = arith.addf %103, %105 : vector<2x1024xf32>
    %107 = vector.extract_strided_slice %106 {offsets = [0, 0], sizes = [2, 256], strides = [1, 1]} : vector<2x1024xf32> to vector<2x256xf32>
    %108 = arith.negf %107 : vector<2x256xf32>
    %109 = math.exp %108 : vector<2x256xf32>
    %cst_41 = arith.constant 1.000000e+00 : f32
    %110 = vector.broadcast %cst_41 : f32 to vector<2x256xf32>
    %111 = arith.addf %110, %109 : vector<2x256xf32>
    %112 = arith.divf %110, %111 : vector<2x256xf32>
    %113 = vector.extract_strided_slice %106 {offsets = [0, 256], sizes = [2, 256], strides = [1, 1]} : vector<2x1024xf32> to vector<2x256xf32>
    %114 = arith.negf %113 : vector<2x256xf32>
    %115 = math.exp %114 : vector<2x256xf32>
    %cst_42 = arith.constant 1.000000e+00 : f32
    %116 = vector.broadcast %cst_42 : f32 to vector<2x256xf32>
    %117 = arith.addf %116, %115 : vector<2x256xf32>
    %118 = arith.divf %116, %117 : vector<2x256xf32>
    %119 = vector.extract_strided_slice %106 {offsets = [0, 512], sizes = [2, 256], strides = [1, 1]} : vector<2x1024xf32> to vector<2x256xf32>
    %120 = math.tanh %119 : vector<2x256xf32>
    %121 = vector.extract_strided_slice %106 {offsets = [0, 768], sizes = [2, 256], strides = [1, 1]} : vector<2x1024xf32> to vector<2x256xf32>
    %122 = arith.negf %121 : vector<2x256xf32>
    %123 = math.exp %122 : vector<2x256xf32>
    %cst_43 = arith.constant 1.000000e+00 : f32
    %124 = vector.broadcast %cst_43 : f32 to vector<2x256xf32>
    %125 = arith.addf %124, %123 : vector<2x256xf32>
    %126 = arith.divf %124, %125 : vector<2x256xf32>
    %127 = arith.mulf %118, %89 : vector<2x256xf32>
    %128 = arith.mulf %112, %120 : vector<2x256xf32>
    %129 = arith.addf %127, %128 : vector<2x256xf32>
    %130 = math.tanh %129 : vector<2x256xf32>
    %131 = arith.mulf %126, %130 : vector<2x256xf32>
    %c3_i32 = arith.constant 3 : i32
    %c7_i32_44 = arith.constant 7 : i32
    %132 = arith.muli %arg0, %c7_i32_44 : i32
    %c2_i32_45 = arith.constant 2 : i32
    %133 = arith.muli %c2_i32_45, %arg0 : i32
    %c1_i32_46 = arith.constant 1 : i32
    %134 = arith.subi %c1_i32_46, %133 : i32
    %135 = arith.muli %134, %c3_i32 : i32
    %136 = arith.addi %132, %135 : i32
    %c0_i32_47 = arith.constant 0 : i32
    %137 = arith.addi %c0_i32_47, %136 : i32
    %138 = arith.index_cast %137 : i32 to index
    %c0_48 = arith.constant 0 : index
    %139 = vector.load %arg6[%138, %c0_48] : memref<16x1024xf32, #tpu.memory_space<vmem>>, vector<1x1024xf32>
    %c8_i32_49 = arith.constant 8 : i32
    %140 = arith.addi %c8_i32_49, %136 : i32
    %141 = arith.index_cast %140 : i32 to index
    %c0_50 = arith.constant 0 : index
    %142 = vector.load %arg6[%141, %c0_50] : memref<16x1024xf32, #tpu.memory_space<vmem>>, vector<1x1024xf32>
    %143 = tpu.concatenate %139, %142 in 0 : vector<1x1024xf32>, vector<1x1024xf32> -> vector<2x1024xf32>
    %144 = arith.truncf %131 : vector<2x256xf32> to vector<2x256xbf16>
    %cst_51 = arith.constant dense<0.000000e+00> : vector<2x1024xf32>
    %145 = tpu.matmul %144, %3, %cst_51 {dimension_numbers = #tpu.dot_dimension_numbers<[1], [0], [0], [1], [0, 0, 1, 1], [], []>} : vector<2x256xbf16>, vector<256x1024xbf16>, vector<2x1024xf32> -> vector<2x1024xf32>
    %146 = arith.addf %143, %145 : vector<2x1024xf32>
    %147 = vector.extract_strided_slice %146 {offsets = [0, 0], sizes = [2, 256], strides = [1, 1]} : vector<2x1024xf32> to vector<2x256xf32>
    %148 = arith.negf %147 : vector<2x256xf32>
    %149 = math.exp %148 : vector<2x256xf32>
    %cst_52 = arith.constant 1.000000e+00 : f32
    %150 = vector.broadcast %cst_52 : f32 to vector<2x256xf32>
    %151 = arith.addf %150, %149 : vector<2x256xf32>
    %152 = arith.divf %150, %151 : vector<2x256xf32>
    %153 = vector.extract_strided_slice %146 {offsets = [0, 256], sizes = [2, 256], strides = [1, 1]} : vector<2x1024xf32> to vector<2x256xf32>
    %154 = arith.negf %153 : vector<2x256xf32>
    %155 = math.exp %154 : vector<2x256xf32>
    %cst_53 = arith.constant 1.000000e+00 : f32
    %156 = vector.broadcast %cst_53 : f32 to vector<2x256xf32>
    %157 = arith.addf %156, %155 : vector<2x256xf32>
    %158 = arith.divf %156, %157 : vector<2x256xf32>
    %159 = vector.extract_strided_slice %146 {offsets = [0, 512], sizes = [2, 256], strides = [1, 1]} : vector<2x1024xf32> to vector<2x256xf32>
    %160 = math.tanh %159 : vector<2x256xf32>
    %161 = vector.extract_strided_slice %146 {offsets = [0, 768], sizes = [2, 256], strides = [1, 1]} : vector<2x1024xf32> to vector<2x256xf32>
    %162 = arith.negf %161 : vector<2x256xf32>
    %163 = math.exp %162 : vector<2x256xf32>
    %cst_54 = arith.constant 1.000000e+00 : f32
    %164 = vector.broadcast %cst_54 : f32 to vector<2x256xf32>
    %165 = arith.addf %164, %163 : vector<2x256xf32>
    %166 = arith.divf %164, %165 : vector<2x256xf32>
    %167 = arith.mulf %158, %129 : vector<2x256xf32>
    %168 = arith.mulf %152, %160 : vector<2x256xf32>
    %169 = arith.addf %167, %168 : vector<2x256xf32>
    %170 = math.tanh %169 : vector<2x256xf32>
    %171 = arith.mulf %166, %170 : vector<2x256xf32>
    %c4_i32 = arith.constant 4 : i32
    %c7_i32_55 = arith.constant 7 : i32
    %172 = arith.muli %arg0, %c7_i32_55 : i32
    %c2_i32_56 = arith.constant 2 : i32
    %173 = arith.muli %c2_i32_56, %arg0 : i32
    %c1_i32_57 = arith.constant 1 : i32
    %174 = arith.subi %c1_i32_57, %173 : i32
    %175 = arith.muli %174, %c4_i32 : i32
    %176 = arith.addi %172, %175 : i32
    %c0_i32_58 = arith.constant 0 : i32
    %177 = arith.addi %c0_i32_58, %176 : i32
    %178 = arith.index_cast %177 : i32 to index
    %c0_59 = arith.constant 0 : index
    %179 = vector.load %arg6[%178, %c0_59] : memref<16x1024xf32, #tpu.memory_space<vmem>>, vector<1x1024xf32>
    %c8_i32_60 = arith.constant 8 : i32
    %180 = arith.addi %c8_i32_60, %176 : i32
    %181 = arith.index_cast %180 : i32 to index
    %c0_61 = arith.constant 0 : index
    %182 = vector.load %arg6[%181, %c0_61] : memref<16x1024xf32, #tpu.memory_space<vmem>>, vector<1x1024xf32>
    %183 = tpu.concatenate %179, %182 in 0 : vector<1x1024xf32>, vector<1x1024xf32> -> vector<2x1024xf32>
    %184 = arith.truncf %171 : vector<2x256xf32> to vector<2x256xbf16>
    %cst_62 = arith.constant dense<0.000000e+00> : vector<2x1024xf32>
    %185 = tpu.matmul %184, %3, %cst_62 {dimension_numbers = #tpu.dot_dimension_numbers<[1], [0], [0], [1], [0, 0, 1, 1], [], []>} : vector<2x256xbf16>, vector<256x1024xbf16>, vector<2x1024xf32> -> vector<2x1024xf32>
    %186 = arith.addf %183, %185 : vector<2x1024xf32>
    %187 = vector.extract_strided_slice %186 {offsets = [0, 0], sizes = [2, 256], strides = [1, 1]} : vector<2x1024xf32> to vector<2x256xf32>
    %188 = arith.negf %187 : vector<2x256xf32>
    %189 = math.exp %188 : vector<2x256xf32>
    %cst_63 = arith.constant 1.000000e+00 : f32
    %190 = vector.broadcast %cst_63 : f32 to vector<2x256xf32>
    %191 = arith.addf %190, %189 : vector<2x256xf32>
    %192 = arith.divf %190, %191 : vector<2x256xf32>
    %193 = vector.extract_strided_slice %186 {offsets = [0, 256], sizes = [2, 256], strides = [1, 1]} : vector<2x1024xf32> to vector<2x256xf32>
    %194 = arith.negf %193 : vector<2x256xf32>
    %195 = math.exp %194 : vector<2x256xf32>
    %cst_64 = arith.constant 1.000000e+00 : f32
    %196 = vector.broadcast %cst_64 : f32 to vector<2x256xf32>
    %197 = arith.addf %196, %195 : vector<2x256xf32>
    %198 = arith.divf %196, %197 : vector<2x256xf32>
    %199 = vector.extract_strided_slice %186 {offsets = [0, 512], sizes = [2, 256], strides = [1, 1]} : vector<2x1024xf32> to vector<2x256xf32>
    %200 = math.tanh %199 : vector<2x256xf32>
    %201 = vector.extract_strided_slice %186 {offsets = [0, 768], sizes = [2, 256], strides = [1, 1]} : vector<2x1024xf32> to vector<2x256xf32>
    %202 = arith.negf %201 : vector<2x256xf32>
    %203 = math.exp %202 : vector<2x256xf32>
    %cst_65 = arith.constant 1.000000e+00 : f32
    %204 = vector.broadcast %cst_65 : f32 to vector<2x256xf32>
    %205 = arith.addf %204, %203 : vector<2x256xf32>
    %206 = arith.divf %204, %205 : vector<2x256xf32>
    %207 = arith.mulf %198, %169 : vector<2x256xf32>
    %208 = arith.mulf %192, %200 : vector<2x256xf32>
    %209 = arith.addf %207, %208 : vector<2x256xf32>
    %210 = math.tanh %209 : vector<2x256xf32>
    %211 = arith.mulf %206, %210 : vector<2x256xf32>
    %c5_i32 = arith.constant 5 : i32
    %c7_i32_66 = arith.constant 7 : i32
    %212 = arith.muli %arg0, %c7_i32_66 : i32
    %c2_i32_67 = arith.constant 2 : i32
    %213 = arith.muli %c2_i32_67, %arg0 : i32
    %c1_i32_68 = arith.constant 1 : i32
    %214 = arith.subi %c1_i32_68, %213 : i32
    %215 = arith.muli %214, %c5_i32 : i32
    %216 = arith.addi %212, %215 : i32
    %c0_i32_69 = arith.constant 0 : i32
    %217 = arith.addi %c0_i32_69, %216 : i32
    %218 = arith.index_cast %217 : i32 to index
    %c0_70 = arith.constant 0 : index
    %219 = vector.load %arg6[%218, %c0_70] : memref<16x1024xf32, #tpu.memory_space<vmem>>, vector<1x1024xf32>
    %c8_i32_71 = arith.constant 8 : i32
    %220 = arith.addi %c8_i32_71, %216 : i32
    %221 = arith.index_cast %220 : i32 to index
    %c0_72 = arith.constant 0 : index
    %222 = vector.load %arg6[%221, %c0_72] : memref<16x1024xf32, #tpu.memory_space<vmem>>, vector<1x1024xf32>
    %223 = tpu.concatenate %219, %222 in 0 : vector<1x1024xf32>, vector<1x1024xf32> -> vector<2x1024xf32>
    %224 = arith.truncf %211 : vector<2x256xf32> to vector<2x256xbf16>
    %cst_73 = arith.constant dense<0.000000e+00> : vector<2x1024xf32>
    %225 = tpu.matmul %224, %3, %cst_73 {dimension_numbers = #tpu.dot_dimension_numbers<[1], [0], [0], [1], [0, 0, 1, 1], [], []>} : vector<2x256xbf16>, vector<256x1024xbf16>, vector<2x1024xf32> -> vector<2x1024xf32>
    %226 = arith.addf %223, %225 : vector<2x1024xf32>
    %227 = vector.extract_strided_slice %226 {offsets = [0, 0], sizes = [2, 256], strides = [1, 1]} : vector<2x1024xf32> to vector<2x256xf32>
    %228 = arith.negf %227 : vector<2x256xf32>
    %229 = math.exp %228 : vector<2x256xf32>
    %cst_74 = arith.constant 1.000000e+00 : f32
    %230 = vector.broadcast %cst_74 : f32 to vector<2x256xf32>
    %231 = arith.addf %230, %229 : vector<2x256xf32>
    %232 = arith.divf %230, %231 : vector<2x256xf32>
    %233 = vector.extract_strided_slice %226 {offsets = [0, 256], sizes = [2, 256], strides = [1, 1]} : vector<2x1024xf32> to vector<2x256xf32>
    %234 = arith.negf %233 : vector<2x256xf32>
    %235 = math.exp %234 : vector<2x256xf32>
    %cst_75 = arith.constant 1.000000e+00 : f32
    %236 = vector.broadcast %cst_75 : f32 to vector<2x256xf32>
    %237 = arith.addf %236, %235 : vector<2x256xf32>
    %238 = arith.divf %236, %237 : vector<2x256xf32>
    %239 = vector.extract_strided_slice %226 {offsets = [0, 512], sizes = [2, 256], strides = [1, 1]} : vector<2x1024xf32> to vector<2x256xf32>
    %240 = math.tanh %239 : vector<2x256xf32>
    %241 = vector.extract_strided_slice %226 {offsets = [0, 768], sizes = [2, 256], strides = [1, 1]} : vector<2x1024xf32> to vector<2x256xf32>
    %242 = arith.negf %241 : vector<2x256xf32>
    %243 = math.exp %242 : vector<2x256xf32>
    %cst_76 = arith.constant 1.000000e+00 : f32
    %244 = vector.broadcast %cst_76 : f32 to vector<2x256xf32>
    %245 = arith.addf %244, %243 : vector<2x256xf32>
    %246 = arith.divf %244, %245 : vector<2x256xf32>
    %247 = arith.mulf %238, %209 : vector<2x256xf32>
    %248 = arith.mulf %232, %240 : vector<2x256xf32>
    %249 = arith.addf %247, %248 : vector<2x256xf32>
    %250 = math.tanh %249 : vector<2x256xf32>
    %251 = arith.mulf %246, %250 : vector<2x256xf32>
    %c6_i32 = arith.constant 6 : i32
    %c7_i32_77 = arith.constant 7 : i32
    %252 = arith.muli %arg0, %c7_i32_77 : i32
    %c2_i32_78 = arith.constant 2 : i32
    %253 = arith.muli %c2_i32_78, %arg0 : i32
    %c1_i32_79 = arith.constant 1 : i32
    %254 = arith.subi %c1_i32_79, %253 : i32
    %255 = arith.muli %254, %c6_i32 : i32
    %256 = arith.addi %252, %255 : i32
    %c0_i32_80 = arith.constant 0 : i32
    %257 = arith.addi %c0_i32_80, %256 : i32
    %258 = arith.index_cast %257 : i32 to index
    %c0_81 = arith.constant 0 : index
    %259 = vector.load %arg6[%258, %c0_81] : memref<16x1024xf32, #tpu.memory_space<vmem>>, vector<1x1024xf32>
    %c8_i32_82 = arith.constant 8 : i32
    %260 = arith.addi %c8_i32_82, %256 : i32
    %261 = arith.index_cast %260 : i32 to index
    %c0_83 = arith.constant 0 : index
    %262 = vector.load %arg6[%261, %c0_83] : memref<16x1024xf32, #tpu.memory_space<vmem>>, vector<1x1024xf32>
    %263 = tpu.concatenate %259, %262 in 0 : vector<1x1024xf32>, vector<1x1024xf32> -> vector<2x1024xf32>
    %264 = arith.truncf %251 : vector<2x256xf32> to vector<2x256xbf16>
    %cst_84 = arith.constant dense<0.000000e+00> : vector<2x1024xf32>
    %265 = tpu.matmul %264, %3, %cst_84 {dimension_numbers = #tpu.dot_dimension_numbers<[1], [0], [0], [1], [0, 0, 1, 1], [], []>} : vector<2x256xbf16>, vector<256x1024xbf16>, vector<2x1024xf32> -> vector<2x1024xf32>
    %266 = arith.addf %263, %265 : vector<2x1024xf32>
    %267 = vector.extract_strided_slice %266 {offsets = [0, 0], sizes = [2, 256], strides = [1, 1]} : vector<2x1024xf32> to vector<2x256xf32>
    %268 = arith.negf %267 : vector<2x256xf32>
    %269 = math.exp %268 : vector<2x256xf32>
    %cst_85 = arith.constant 1.000000e+00 : f32
    %270 = vector.broadcast %cst_85 : f32 to vector<2x256xf32>
    %271 = arith.addf %270, %269 : vector<2x256xf32>
    %272 = arith.divf %270, %271 : vector<2x256xf32>
    %273 = vector.extract_strided_slice %266 {offsets = [0, 256], sizes = [2, 256], strides = [1, 1]} : vector<2x1024xf32> to vector<2x256xf32>
    %274 = arith.negf %273 : vector<2x256xf32>
    %275 = math.exp %274 : vector<2x256xf32>
    %cst_86 = arith.constant 1.000000e+00 : f32
    %276 = vector.broadcast %cst_86 : f32 to vector<2x256xf32>
    %277 = arith.addf %276, %275 : vector<2x256xf32>
    %278 = arith.divf %276, %277 : vector<2x256xf32>
    %279 = vector.extract_strided_slice %266 {offsets = [0, 512], sizes = [2, 256], strides = [1, 1]} : vector<2x1024xf32> to vector<2x256xf32>
    %280 = math.tanh %279 : vector<2x256xf32>
    %281 = vector.extract_strided_slice %266 {offsets = [0, 768], sizes = [2, 256], strides = [1, 1]} : vector<2x1024xf32> to vector<2x256xf32>
    %282 = arith.negf %281 : vector<2x256xf32>
    %283 = math.exp %282 : vector<2x256xf32>
    %cst_87 = arith.constant 1.000000e+00 : f32
    %284 = vector.broadcast %cst_87 : f32 to vector<2x256xf32>
    %285 = arith.addf %284, %283 : vector<2x256xf32>
    %286 = arith.divf %284, %285 : vector<2x256xf32>
    %287 = arith.mulf %278, %249 : vector<2x256xf32>
    %288 = arith.mulf %272, %280 : vector<2x256xf32>
    %289 = arith.addf %287, %288 : vector<2x256xf32>
    %290 = math.tanh %289 : vector<2x256xf32>
    %291 = arith.mulf %286, %290 : vector<2x256xf32>
    %c7_i32_88 = arith.constant 7 : i32
    %c7_i32_89 = arith.constant 7 : i32
    %292 = arith.muli %arg0, %c7_i32_89 : i32
    %c2_i32_90 = arith.constant 2 : i32
    %293 = arith.muli %c2_i32_90, %arg0 : i32
    %c1_i32_91 = arith.constant 1 : i32
    %294 = arith.subi %c1_i32_91, %293 : i32
    %295 = arith.muli %294, %c7_i32_88 : i32
    %296 = arith.addi %292, %295 : i32
    %c0_i32_92 = arith.constant 0 : i32
    %297 = arith.addi %c0_i32_92, %296 : i32
    %298 = arith.index_cast %297 : i32 to index
    %c0_93 = arith.constant 0 : index
    %299 = vector.load %arg6[%298, %c0_93] : memref<16x1024xf32, #tpu.memory_space<vmem>>, vector<1x1024xf32>
    %c8_i32_94 = arith.constant 8 : i32
    %300 = arith.addi %c8_i32_94, %296 : i32
    %301 = arith.index_cast %300 : i32 to index
    %c0_95 = arith.constant 0 : index
    %302 = vector.load %arg6[%301, %c0_95] : memref<16x1024xf32, #tpu.memory_space<vmem>>, vector<1x1024xf32>
    %303 = tpu.concatenate %299, %302 in 0 : vector<1x1024xf32>, vector<1x1024xf32> -> vector<2x1024xf32>
    %304 = arith.truncf %291 : vector<2x256xf32> to vector<2x256xbf16>
    %cst_96 = arith.constant dense<0.000000e+00> : vector<2x1024xf32>
    %305 = tpu.matmul %304, %3, %cst_96 {dimension_numbers = #tpu.dot_dimension_numbers<[1], [0], [0], [1], [0, 0, 1, 1], [], []>} : vector<2x256xbf16>, vector<256x1024xbf16>, vector<2x1024xf32> -> vector<2x1024xf32>
    %306 = arith.addf %303, %305 : vector<2x1024xf32>
    %307 = vector.extract_strided_slice %306 {offsets = [0, 0], sizes = [2, 256], strides = [1, 1]} : vector<2x1024xf32> to vector<2x256xf32>
    %308 = arith.negf %307 : vector<2x256xf32>
    %309 = math.exp %308 : vector<2x256xf32>
    %cst_97 = arith.constant 1.000000e+00 : f32
    %310 = vector.broadcast %cst_97 : f32 to vector<2x256xf32>
    %311 = arith.addf %310, %309 : vector<2x256xf32>
    %312 = arith.divf %310, %311 : vector<2x256xf32>
    %313 = vector.extract_strided_slice %306 {offsets = [0, 256], sizes = [2, 256], strides = [1, 1]} : vector<2x1024xf32> to vector<2x256xf32>
    %314 = arith.negf %313 : vector<2x256xf32>
    %315 = math.exp %314 : vector<2x256xf32>
    %cst_98 = arith.constant 1.000000e+00 : f32
    %316 = vector.broadcast %cst_98 : f32 to vector<2x256xf32>
    %317 = arith.addf %316, %315 : vector<2x256xf32>
    %318 = arith.divf %316, %317 : vector<2x256xf32>
    %319 = vector.extract_strided_slice %306 {offsets = [0, 512], sizes = [2, 256], strides = [1, 1]} : vector<2x1024xf32> to vector<2x256xf32>
    %320 = math.tanh %319 : vector<2x256xf32>
    %321 = vector.extract_strided_slice %306 {offsets = [0, 768], sizes = [2, 256], strides = [1, 1]} : vector<2x1024xf32> to vector<2x256xf32>
    %322 = arith.negf %321 : vector<2x256xf32>
    %323 = math.exp %322 : vector<2x256xf32>
    %cst_99 = arith.constant 1.000000e+00 : f32
    %324 = vector.broadcast %cst_99 : f32 to vector<2x256xf32>
    %325 = arith.addf %324, %323 : vector<2x256xf32>
    %326 = arith.divf %324, %325 : vector<2x256xf32>
    %327 = arith.mulf %318, %289 : vector<2x256xf32>
    %328 = arith.mulf %312, %320 : vector<2x256xf32>
    %329 = arith.addf %327, %328 : vector<2x256xf32>
    %330 = math.tanh %329 : vector<2x256xf32>
    %331 = arith.mulf %326, %330 : vector<2x256xf32>
    %c8_i32_100 = arith.constant 8 : i32
    %c0_101 = arith.constant 0 : index
    %c0_102 = arith.constant 0 : index
    %332 = vector.load %arg5[%c0_101, %c0_102] : memref<2x256xf32, #tpu.memory_space<vmem>>, vector<2x256xf32>
    tpu.vector_store %arg5[%c0_101, %c0_102], %331 {strides = array<i32>} : memref<2x256xf32, #tpu.memory_space<vmem>>, vector<2x256xf32>,
    return
  }
  func.func @transform_0(%arg0: i32) -> (i32, i32) {
    %c0_i32 = arith.constant 0 : i32
    %c0_i32_0 = arith.constant 0 : i32
    %c0_i32_1 = arith.constant 0 : i32
    return %c0_i32, %c0_i32_0 : i32, i32
  }
  func.func @transform_1(%arg0: i32) -> (i32, i32, i32) {
    %c0_i32 = arith.constant 0 : i32
    %c0_i32_0 = arith.constant 0 : i32
    %c0_i32_1 = arith.constant 0 : i32
    return %arg0, %c0_i32, %c0_i32_0 : i32, i32, i32
  }
  func.func @transform_2(%arg0: i32) -> (i32, i32, i32) {
    %c0_i32 = arith.constant 0 : i32
    %c0_i32_0 = arith.constant 0 : i32
    %c0_i32_1 = arith.constant 0 : i32
    return %arg0, %c0_i32, %c0_i32_0 : i32, i32, i32
  }
  func.func @transform_3(%arg0: i32) -> (i32, i32, i32) {
    %c0_i32 = arith.constant 0 : i32
    %c0_i32_0 = arith.constant 0 : i32
    %c0_i32_1 = arith.constant 0 : i32
    return %arg0, %c0_i32, %c0_i32_0 : i32, i32, i32
  }
  func.func @transform_4(%arg0: i32) -> (i32, i32) {
    %c0_i32 = arith.constant 0 : i32
    %c0_i32_0 = arith.constant 0 : i32
    return %c0_i32, %arg0 : i32, i32
  }
}

</mosaic_0001>

<llo_original>
// kernel: tpu_custom_call.1
$region0: #{tpu_custom_call.1}
  #allocation0 [shape = 'u32[]', space=smem, size = 0x4, offset = 0x4, fixed_abs, tag = 'smem constant byte address 0x4 - core index']
  #allocation1 [shape = 'u32[72,128]{1,0:T(1,128)}', space=vmem, size = 0x9000, scoped, tag = 'internal scratch']
  #allocation2 [shape = 'f32[16,1024]{1,0:T(8,128)}', space=vmem, size = 0x10000, scoped, tag = 'scratch operand']
  %s0 = inlined_call_operand.hbm [shape: bf16[16,64], index: 0, kind: input, shape index: {}]
  %s1 = inlined_call_operand.hbm [shape: bf16[2,64,1024], index: 1, kind: input, shape index: {}]
  %s2 = inlined_call_operand.hbm [shape: bf16[2,256,1024], index: 2, kind: input, shape index: {}]
  %s3 = inlined_call_operand.hbm [shape: f32[2,1,1024], index: 3, kind: input, shape index: {}]
  %s4 = inlined_call_operand.hbm [shape: f32[2,512], index: 4, kind: output, shape index: {}]
  %s5 = sld [smem:[#allocation0]]
  $region65: #{tpu_custom_call.1} parent=0
    _
  %s7 = ssub.s32 1, %s5
  %s8 = scalar_select 0, %s7, %s5
  $region1: #{tpu_custom_call.1} parent=0
    #allocation3 [shape = 'u8[4096]{0}', space=vmem, size = 0x1000, scoped, tag = 'input window, operand 0, single buffered']
    #allocation4 [shape = 's32[2]{0}', space=sflag, size = 0x8, scoped, tag = 'scoped memory for tpu_custom_call.1']
    #allocation5 [shape = 's32[2]{0}', space=sflag, size = 0x8, scoped, tag = 'scoped memory for tpu_custom_call.1']
    #allocation6 [shape = 'u8[262144]{0}', space=vmem, size = 0x40000, scoped, tag = 'input window, operand 1']
    #allocation7 [shape = 's32[2]{0}', space=sflag, size = 0x8, scoped, tag = 'scoped memory for tpu_custom_call.1']
    #allocation8 [shape = 'u8[1048576]{0}', space=vmem, size = 0x100000, scoped, tag = 'input window, operand 2']
    #allocation9 [shape = 'u8[8192]{0}', space=vmem, size = 0x2000, scoped, tag = 'input window, operand 3']
    #allocation10 [shape = 's32[2]{0}', space=sflag, size = 0x8, scoped, tag = 'scoped memory for tpu_custom_call.1']
    #allocation11 [shape = 'u8[4096]{0}', space=vmem, size = 0x1000, scoped, tag = 'output window, operand 0']
    %9 = vsyncpa [#allocation4], 0
    %10 = vsyncpa [#allocation7], 0
    %s11 = scalar_lea.sflag [#allocation7], 1
    %12 = vsyncpa %s11, 0
    %13 = vsyncpa [#allocation10], 0
    %s14 = scalar_lea.sflag [#allocation10], 1
    %15 = vsyncpa %s14, 0
    %16 = vsyncpa [#allocation5], 0
    %s17 = scalar_lea.sflag [#allocation5], 1
    %18 = vsyncpa %s17, 0
    loop: start=0, step=1, limit=4
    $region2: #{tpu_custom_call.1} parent=1 // loop_pre_header
      _
    $region3: #{tpu_custom_call.1} parent=1 // loop_header
      %s20 = sphi 0, %s24
      %p21 = scmp.ge.s32.totalorder %s20, 4
      %s28 = sphi 0, %s28
      %s30 = sphi 0, %s28
      %s31 = sphi 0, %s30
      %s45 = sphi 0, %s31
      %s51 = sphi 0, %s53
      %s54 = sphi 0, %s51
      %s55 = sphi 0, %s54
      %s71 = sphi 0, %s55
      %s77 = sphi 0, %s79
      %s80 = sphi 0, %s77
      %s81 = sphi 0, %s80
      %s97 = sphi 0, %s81
      %s103 = sphi 0, %s105
      %s106 = sphi 0, %s103
      %s107 = sphi 0, %s106
      %s123 = sphi 0, %s107
      %s129 = sphi 0, %s131
      %s132 = sphi 0, %s129
      %s133 = sphi 0, %s132
      %s149 = sphi 0, %s133
    $region4: #{tpu_custom_call.1} parent=1 // loop_header_branch
      %23 = sbr.rel (%p21) target = $region8
    $region5: #{tpu_custom_call.1} parent=1 // loop_body
      %s25 = ssub.s32 %s20, 1
      %s26 = ssub.s32 %s20, 2
      %s27 = sadd.s32 %s20, 1
      %s29 = sadd.s32 %s28, 1
      %p32 = scmp.eq.s32.totalorder %s20, 1
      %p33 = scmp.ne.s32.totalorder %s28, %s30
      %p34 = scmp.eq.s32.totalorder %s20, 0
      %p35 = por %p33, %p34
      %p36 = scmp.ne.s32.totalorder %s28, %s30
      %p37 = scmp.eq.s32.totalorder %s25, 1
      %p38 = por %p36, %p37
      %p39 = scmp.ne.s32.totalorder %s30, %s31
      %p40 = scmp.eq.s32.totalorder %s25, 0
      %p41 = por %p39, %p40
      %p42 = scmp.ne.s32.totalorder %s30, %s31
      %p43 = scmp.eq.s32.totalorder %s26, 1
      %p44 = por %p42, %p43
      %p46 = scmp.ne.s32.totalorder %s31, %s45
      %p47 = scmp.eq.s32.totalorder %s26, 0
      %p48 = por %p46, %p47
      %s49 = ssub.s32 %s20, %s27
      %p50 = scmp.eq.s32.totalorder %s49, 0
      %s52 = sadd.s32 %s51, 1
      %s53 = scalar_select %p50, %s51, %s52
      %p56 = pneg %p50
      %p57 = scmp.eq.s32.totalorder %s20, 1
      %p58 = por %p56, %p57
      %p59 = scmp.ne.s32.totalorder %s51, %s54
      %p60 = scmp.eq.s32.totalorder %s20, 0
      %p61 = por %p59, %p60
      %p62 = scmp.ne.s32.totalorder %s51, %s54
      %p63 = scmp.eq.s32.totalorder %s25, 1
      %p64 = por %p62, %p63
      %p65 = scmp.ne.s32.totalorder %s54, %s55
      %p66 = scmp.eq.s32.totalorder %s25, 0
      %p67 = por %p65, %p66
      %p68 = scmp.ne.s32.totalorder %s54, %s55
      %p69 = scmp.eq.s32.totalorder %s26, 1
      %p70 = por %p68, %p69
      %p72 = scmp.ne.s32.totalorder %s55, %s71
      %p73 = scmp.eq.s32.totalorder %s26, 0
      %p74 = por %p72, %p73
      %s75 = ssub.s32 %s20, %s27
      %p76 = scmp.eq.s32.totalorder %s75, 0
      %s78 = sadd.s32 %s77, 1
      %s79 = scalar_select %p76, %s77, %s78
      %p82 = pneg %p76
      %p83 = scmp.eq.s32.totalorder %s20, 1
      %p84 = por %p82, %p83
      %p85 = scmp.ne.s32.totalorder %s77, %s80
      %p86 = scmp.eq.s32.totalorder %s20, 0
      %p87 = por %p85, %p86
      %p88 = scmp.ne.s32.totalorder %s77, %s80
      %p89 = scmp.eq.s32.totalorder %s25, 1
      %p90 = por %p88, %p89
      %p91 = scmp.ne.s32.totalorder %s80, %s81
      %p92 = scmp.eq.s32.totalorder %s25, 0
      %p93 = por %p91, %p92
      %p94 = scmp.ne.s32.totalorder %s80, %s81
      %p95 = scmp.eq.s32.totalorder %s26, 1
      %p96 = por %p94, %p95
      %p98 = scmp.ne.s32.totalorder %s81, %s97
      %p99 = scmp.eq.s32.totalorder %s26, 0
      %p100 = por %p98, %p99
      %s101 = ssub.s32 %s20, %s27
      %p102 = scmp.eq.s32.totalorder %s101, 0
      %s104 = sadd.s32 %s103, 1
      %s105 = scalar_select %p102, %s103, %s104
      %p108 = pneg %p102
      %p109 = scmp.eq.s32.totalorder %s20, 1
      %p110 = por %p108, %p109
      %p111 = scmp.ne.s32.totalorder %s103, %s106
      %p112 = scmp.eq.s32.totalorder %s20, 0
      %p113 = por %p111, %p112
      %p114 = scmp.ne.s32.totalorder %s103, %s106
      %p115 = scmp.eq.s32.totalorder %s25, 1
      %p116 = por %p114, %p115
      %p117 = scmp.ne.s32.totalorder %s106, %s107
      %p118 = scmp.eq.s32.totalorder %s25, 0
      %p119 = por %p117, %p118
      %p120 = scmp.ne.s32.totalorder %s106, %s107
      %p121 = scmp.eq.s32.totalorder %s26, 1
      %p122 = por %p120, %p121
      %p124 = scmp.ne.s32.totalorder %s107, %s123
      %p125 = scmp.eq.s32.totalorder %s26, 0
      %p126 = por %p124, %p125
      %s127 = ssub.s32 %s20, %s27
      %p128 = scmp.eq.s32.totalorder %s127, 0
      %s130 = sadd.s32 %s129, 1
      %s131 = scalar_select %p128, %s129, %s130
      %p134 = pneg %p128
      %p135 = scmp.eq.s32.totalorder %s20, 1
      %p136 = por %p134, %p135
      %p137 = scmp.ne.s32.totalorder %s129, %s132
      %p138 = scmp.eq.s32.totalorder %s20, 0
      %p139 = por %p137, %p138
      %p140 = scmp.ne.s32.totalorder %s129, %s132
      %p141 = scmp.eq.s32.totalorder %s25, 1
      %p142 = por %p140, %p141
      %p143 = scmp.ne.s32.totalorder %s132, %s133
      %p144 = scmp.eq.s32.totalorder %s25, 0
      %p145 = por %p143, %p144
      %p146 = scmp.ne.s32.totalorder %s132, %s133
      %p147 = scmp.eq.s32.totalorder %s26, 1
      %p148 = por %p146, %p147
      %p150 = scmp.ne.s32.totalorder %s133, %s149
      %p151 = scmp.eq.s32.totalorder %s26, 0
      %p152 = por %p150, %p151
      %p153 = scmp.le.s32.totalorder 1, %s20
      %p154 = scmp.lt.s32.totalorder %s20, 3
      %p155 = pnand %p153, %p154
      %p156 = pneg %p155
      // Predicated region
      $region9: #{tpu_custom_call.1} parent=5 // pred_check
        _
      $region10: #{tpu_custom_call.1} parent=5 // pred_check_branch
        %158 = sbr.rel (%p155) target = $region12
      $region11: #{tpu_custom_call.1} parent=5 // pred_region
        %s159 = ssub.s32 %s20, 1
        // Predicated region
        $region13: #{tpu_custom_call.1} parent=11 // pred_check
          %p160 = pneg %p41
        $region14: #{tpu_custom_call.1} parent=11 // pred_check_branch
          %162 = sbr.rel (%p160) target = $region16
        $region15: #{tpu_custom_call.1} parent=11 // pred_region
          %164 = vsyncadd [#allocation4], 0
          %s165 = sshll.u32 %s0, 4
          %s166 = int_to_ptr.hbm [resolvable:$true] %s165
          %s167 = sshll.u32 [#allocation3], 4
          %s168 = int_to_ptr.vmem [resolvable:$true] %s167
          %173 = dma.hbm_to_vmem [thread:$0]  %s166, 128, %s168, [#allocation4], 64, 64, 4
        $region16: #{tpu_custom_call.1} parent=11 // pred_fallthru
          _
      $region12: #{tpu_custom_call.1} parent=5 // pred_fallthru
        _
      %p174 = scmp.lt.s32.totalorder %s20, 2
      // Predicated region
      $region17: #{tpu_custom_call.1} parent=5 // pred_check
        %p175 = pneg %p174
      $region18: #{tpu_custom_call.1} parent=5 // pred_check_branch
        %177 = sbr.rel (%p175) target = $region20
      $region19: #{tpu_custom_call.1} parent=5 // pred_region
        // Predicated region
        $region21: #{tpu_custom_call.1} parent=19 // pred_check
          %p178 = pneg %p61
        $region22: #{tpu_custom_call.1} parent=19 // pred_check_branch
          %180 = sbr.rel (%p178) target = $region24
        $region23: #{tpu_custom_call.1} parent=19 // pred_region
          %s181 = sand.u32 %s20, 1
          %s182 = scalar_lea.sflag [#allocation7], %s181
          %s183 = sand.u32 %s51, 1
          %s184 = smul.addr %s183, 256
          %s185 = scalar_lea.vmem [#allocation6], %s184
          %187 = vsyncadd %s182, 0
          %s188 = smul.addr %s20, 64
          %s189 = smul.addr %s188, 4
          %s190 = scalar_lea.hbm %s1, %s189
          %s191 = sshll.u32 %s190, 4
          %s192 = int_to_ptr.hbm [resolvable:$true] %s191
          %s193 = sshll.u32 %s185, 4
          %s194 = int_to_ptr.vmem [resolvable:$true] %s193
          %199 = dma.hbm_to_vmem [thread:$0]  %s192, 4096, %s194, %s182, 512, 512, 32
        $region24: #{tpu_custom_call.1} parent=19 // pred_fallthru
          _
        // Predicated region
        $region25: #{tpu_custom_call.1} parent=19 // pred_check
          %p200 = pneg %p87
        $region26: #{tpu_custom_call.1} parent=19 // pred_check_branch
          %202 = sbr.rel (%p200) target = $region28
        $region27: #{tpu_custom_call.1} parent=19 // pred_region
          %s203 = sand.u32 %s20, 1
          %s204 = scalar_lea.sflag [#allocation7], %s203
          %s205 = sand.u32 %s77, 1
          %s206 = smul.addr %s205, 1024
          %s207 = scalar_lea.vmem [#allocation8], %s206
          %209 = vsyncadd %s204, 0
          %s210 = smul.addr %s20, 256
          %s211 = smul.addr %s210, 4
          %s212 = scalar_lea.hbm %s2, %s211
          %s213 = sshll.u32 %s212, 4
          %s214 = int_to_ptr.hbm [resolvable:$true] %s213
          %s215 = sshll.u32 %s207, 4
          %s216 = int_to_ptr.vmem [resolvable:$true] %s215
          %221 = dma.hbm_to_vmem [thread:$0]  %s214, 16384, %s216, %s204, 512, 512, 32
        $region28: #{tpu_custom_call.1} parent=19 // pred_fallthru
          _
        // Predicated region
        $region29: #{tpu_custom_call.1} parent=19 // pred_check
          %p222 = pneg %p113
        $region30: #{tpu_custom_call.1} parent=19 // pred_check_branch
          %224 = sbr.rel (%p222) target = $region32
        $region31: #{tpu_custom_call.1} parent=19 // pred_region
          %s225 = sand.u32 %s103, 1
          %s226 = scalar_lea.sflag [#allocation10], %s225
          %s227 = sand.u32 %s103, 1
          %s228 = smul.addr %s227, 8
          %s229 = scalar_lea.vmem [#allocation9], %s228
          %231 = vsyncadd %s226, 0
          %s232 = smul.addr %s20, 8
          %s233 = scalar_lea.hbm %s3, %s232
          %s235 = sshll.u32 %s233, 4
          %s236 = int_to_ptr.hbm [resolvable:$true] %s235
          %s237 = sshll.u32 %s229, 4
          %s238 = int_to_ptr.vmem [resolvable:$true] %s237
          %240 = dma.hbm_to_vmem [thread:$0]  %s236, 128, %s238, %s226
        $region32: #{tpu_custom_call.1} parent=19 // pred_fallthru
          _
      $region20: #{tpu_custom_call.1} parent=5 // pred_fallthru
        _
      %p241 = scmp.le.s32.totalorder 1, %s20
      %p242 = scmp.lt.s32.totalorder %s20, 3
      %p243 = pnand %p241, %p242
      %p244 = pneg %p243
      // Predicated region
      $region33: #{tpu_custom_call.1} parent=5 // pred_check
        _
      $region34: #{tpu_custom_call.1} parent=5 // pred_check_branch
        %246 = sbr.rel (%p243) target = $region36
      $region35: #{tpu_custom_call.1} parent=5 // pred_region
        %s247 = ssub.s32 %s20, 1
        // Predicated region
        $region37: #{tpu_custom_call.1} parent=35 // pred_check
          %p248 = pneg %p41
        $region38: #{tpu_custom_call.1} parent=35 // pred_check_branch
          %250 = sbr.rel (%p248) target = $region40
        $region39: #{tpu_custom_call.1} parent=35 // pred_region
          %252 = dma.done [#allocation4], 128
        $region40: #{tpu_custom_call.1} parent=35 // pred_fallthru
          _
        %s253 = sand.u32 %s25, 1
        %s254 = scalar_lea.sflag [#allocation7], %s253
        %s255 = sand.u32 %s54, 1
        %s256 = smul.addr %s255, 256
        %s257 = scalar_lea.vmem [#allocation6], %s256
        // Predicated region
        $region41: #{tpu_custom_call.1} parent=35 // pred_check
          %p258 = pneg %p67
        $region42: #{tpu_custom_call.1} parent=35 // pred_check_branch
          %260 = sbr.rel (%p258) target = $region44
        $region43: #{tpu_custom_call.1} parent=35 // pred_region
          %262 = dma.done %s254, 4096
        $region44: #{tpu_custom_call.1} parent=35 // pred_fallthru
          _
        %s263 = sand.u32 %s25, 1
        %s264 = scalar_lea.sflag [#allocation7], %s263
        %s265 = sand.u32 %s80, 1
        %s266 = smul.addr %s265, 1024
        %s267 = scalar_lea.vmem [#allocation8], %s266
        // Predicated region
        $region45: #{tpu_custom_call.1} parent=35 // pred_check
          %p268 = pneg %p93
        $region46: #{tpu_custom_call.1} parent=35 // pred_check_branch
          %270 = sbr.rel (%p268) target = $region48
        $region47: #{tpu_custom_call.1} parent=35 // pred_region
          %272 = dma.done %s264, 16384
        $region48: #{tpu_custom_call.1} parent=35 // pred_fallthru
          _
        %s273 = sand.u32 %s106, 1
        %s274 = scalar_lea.sflag [#allocation10], %s273
        %s275 = sand.u32 %s106, 1
        %s276 = smul.addr %s275, 8
        %s277 = scalar_lea.vmem [#allocation9], %s276
        // Predicated region
        $region49: #{tpu_custom_call.1} parent=35 // pred_check
          %p278 = pneg %p119
        $region50: #{tpu_custom_call.1} parent=35 // pred_check_branch
          %280 = sbr.rel (%p278) target = $region52
        $region51: #{tpu_custom_call.1} parent=35 // pred_region
          %282 = dma.done %s274, 128
        $region52: #{tpu_custom_call.1} parent=35 // pred_fallthru
          _
        %p283 = pneg %p41
        %p284 = pneg %p38
        %s285 = sand.u32 %s25, 1
        %s286 = scalar_lea.sflag [#allocation7], %s285
        %s287 = sand.u32 %s54, 1
        %s288 = smul.addr %s287, 256
        %s289 = scalar_lea.vmem [#allocation6], %s288
        %p290 = pneg %p67
        %p291 = pneg %p64
        %s292 = sand.u32 %s25, 1
        %s293 = scalar_lea.sflag [#allocation7], %s292
        %s294 = sand.u32 %s80, 1
        %s295 = smul.addr %s294, 1024
        %s296 = scalar_lea.vmem [#allocation8], %s295
        %p297 = pneg %p93
        %p298 = pneg %p90
        %s299 = sand.u32 %s106, 1
        %s300 = scalar_lea.sflag [#allocation10], %s299
        %s301 = sand.u32 %s106, 1
        %s302 = smul.addr %s301, 8
        %s303 = scalar_lea.vmem [#allocation9], %s302
        %p304 = pneg %p119
        %p305 = pneg %p116
        %p306 = pneg %p145
        %p307 = pneg %p142
        %s308 = sand.u32 %s132, 1
        %s309 = scalar_lea.sflag [#allocation5], %s308
        %s310 = sand.u32 %s132, 1
        %s311 = smul.addr %s310, 4
        %s312 = scalar_lea.vmem [#allocation11], %s311
        %s313 = smul.u32 2, %s25
        %v315 = vld [vmem:[%s257] sm:$0xff]
        %v316 = vld [vmem:[%s257 + $0x8] sm:$0xff]
        %v317 = vld [vmem:[%s257 + $0x10] sm:$0xff]
        %v318 = vld [vmem:[%s257 + $0x18] sm:$0xff]
        %v319 = vld [vmem:[%s257 + $0x20] sm:$0xff]
        %v320 = vld [vmem:[%s257 + $0x28] sm:$0xff]
        %v321 = vld [vmem:[%s257 + $0x30] sm:$0xff]
        %v322 = vld [vmem:[%s257 + $0x38] sm:$0xff]
        %v323 = vld [vmem:[%s257 + $0x40] sm:$0xff]
        %v324 = vld [vmem:[%s257 + $0x48] sm:$0xff]
        %v325 = vld [vmem:[%s257 + $0x50] sm:$0xff]
        %v326 = vld [vmem:[%s257 + $0x58] sm:$0xff]
        %v327 = vld [vmem:[%s257 + $0x60] sm:$0xff]
        %v328 = vld [vmem:[%s257 + $0x68] sm:$0xff]
        %v329 = vld [vmem:[%s257 + $0x70] sm:$0xff]
        %v330 = vld [vmem:[%s257 + $0x78] sm:$0xff]
        %v331 = vld [vmem:[%s257 + $0x80] sm:$0xff]
        %v332 = vld [vmem:[%s257 + $0x88] sm:$0xff]
        %v333 = vld [vmem:[%s257 + $0x90] sm:$0xff]
        %v334 = vld [vmem:[%s257 + $0x98] sm:$0xff]
        %v335 = vld [vmem:[%s257 + $0xa0] sm:$0xff]
        %v336 = vld [vmem:[%s257 + $0xa8] sm:$0xff]
        %v337 = vld [vmem:[%s257 + $0xb0] sm:$0xff]
        %v338 = vld [vmem:[%s257 + $0xb8] sm:$0xff]
        %v339 = vld [vmem:[%s257 + $0xc0] sm:$0xff]
        %v340 = vld [vmem:[%s257 + $0xc8] sm:$0xff]
        %v341 = vld [vmem:[%s257 + $0xd0] sm:$0xff]
        %v342 = vld [vmem:[%s257 + $0xd8] sm:$0xff]
        %v343 = vld [vmem:[%s257 + $0xe0] sm:$0xff]
        %v344 = vld [vmem:[%s257 + $0xe8] sm:$0xff]
        %v345 = vld [vmem:[%s257 + $0xf0] sm:$0xff]
        %v346 = vld [vmem:[%s257 + $0xf8] sm:$0xff]
        %v347 = vld [vmem:[%s267] sm:$0xff]
        %v348 = vld [vmem:[%s267 + $0x8] sm:$0xff]
        %v349 = vld [vmem:[%s267 + $0x10] sm:$0xff]
        %v350 = vld [vmem:[%s267 + $0x18] sm:$0xff]
        %v351 = vld [vmem:[%s267 + $0x20] sm:$0xff]
        %v352 = vld [vmem:[%s267 + $0x28] sm:$0xff]
        %v353 = vld [vmem:[%s267 + $0x30] sm:$0xff]
        %v354 = vld [vmem:[%s267 + $0x38] sm:$0xff]
        %v355 = vld [vmem:[%s267 + $0x40] sm:$0xff]
        %v356 = vld [vmem:[%s267 + $0x48] sm:$0xff]
        %v357 = vld [vmem:[%s267 + $0x50] sm:$0xff]
        %v358 = vld [vmem:[%s267 + $0x58] sm:$0xff]
        %v359 = vld [vmem:[%s267 + $0x60] sm:$0xff]
        %v360 = vld [vmem:[%s267 + $0x68] sm:$0xff]
        %v361 = vld [vmem:[%s267 + $0x70] sm:$0xff]
        %v362 = vld [vmem:[%s267 + $0x78] sm:$0xff]
        %v363 = vld [vmem:[%s267 + $0x80] sm:$0xff]
        %v364 = vld [vmem:[%s267 + $0x88] sm:$0xff]
        %v365 = vld [vmem:[%s267 + $0x90] sm:$0xff]
        %v366 = vld [vmem:[%s267 + $0x98] sm:$0xff]
        %v367 = vld [vmem:[%s267 + $0xa0] sm:$0xff]
        %v368 = vld [vmem:[%s267 + $0xa8] sm:$0xff]
        %v369 = vld [vmem:[%s267 + $0xb0] sm:$0xff]
        %v370 = vld [vmem:[%s267 + $0xb8] sm:$0xff]
        %v371 = vld [vmem:[%s267 + $0xc0] sm:$0xff]
        %v372 = vld [vmem:[%s267 + $0xc8] sm:$0xff]
        %v373 = vld [vmem:[%s267 + $0xd0] sm:$0xff]
        %v374 = vld [vmem:[%s267 + $0xd8] sm:$0xff]
        %v375 = vld [vmem:[%s267 + $0xe0] sm:$0xff]
        %v376 = vld [vmem:[%s267 + $0xe8] sm:$0xff]
        %v377 = vld [vmem:[%s267 + $0xf0] sm:$0xff]
        %v378 = vld [vmem:[%s267 + $0xf8] sm:$0xff]
        %v379 = vld [vmem:[%s267 + $0x100] sm:$0xff]
        %v380 = vld [vmem:[%s267 + $0x108] sm:$0xff]
        %v381 = vld [vmem:[%s267 + $0x110] sm:$0xff]
        %v382 = vld [vmem:[%s267 + $0x118] sm:$0xff]
        %v383 = vld [vmem:[%s267 + $0x120] sm:$0xff]
        %v384 = vld [vmem:[%s267 + $0x128] sm:$0xff]
        %v385 = vld [vmem:[%s267 + $0x130] sm:$0xff]
        %v386 = vld [vmem:[%s267 + $0x138] sm:$0xff]
        %v387 = vld [vmem:[%s267 + $0x140] sm:$0xff]
        %v388 = vld [vmem:[%s267 + $0x148] sm:$0xff]
        %v389 = vld [vmem:[%s267 + $0x150] sm:$0xff]
        %v390 = vld [vmem:[%s267 + $0x158] sm:$0xff]
        %v391 = vld [vmem:[%s267 + $0x160] sm:$0xff]
        %v392 = vld [vmem:[%s267 + $0x168] sm:$0xff]
        %v393 = vld [vmem:[%s267 + $0x170] sm:$0xff]
        %v394 = vld [vmem:[%s267 + $0x178] sm:$0xff]
        %v395 = vld [vmem:[%s267 + $0x180] sm:$0xff]
        %v396 = vld [vmem:[%s267 + $0x188] sm:$0xff]
        %v397 = vld [vmem:[%s267 + $0x190] sm:$0xff]
        %v398 = vld [vmem:[%s267 + $0x198] sm:$0xff]
        %v399 = vld [vmem:[%s267 + $0x1a0] sm:$0xff]
        %v400 = vld [vmem:[%s267 + $0x1a8] sm:$0xff]
        %v401 = vld [vmem:[%s267 + $0x1b0] sm:$0xff]
        %v402 = vld [vmem:[%s267 + $0x1b8] sm:$0xff]
        %v403 = vld [vmem:[%s267 + $0x1c0] sm:$0xff]
        %v404 = vld [vmem:[%s267 + $0x1c8] sm:$0xff]
        %v405 = vld [vmem:[%s267 + $0x1d0] sm:$0xff]
        %v406 = vld [vmem:[%s267 + $0x1d8] sm:$0xff]
        %v407 = vld [vmem:[%s267 + $0x1e0] sm:$0xff]
        %v408 = vld [vmem:[%s267 + $0x1e8] sm:$0xff]
        %v409 = vld [vmem:[%s267 + $0x1f0] sm:$0xff]
        %v410 = vld [vmem:[%s267 + $0x1f8] sm:$0xff]
        %v411 = vld [vmem:[%s267 + $0x200] sm:$0xff]
        %v412 = vld [vmem:[%s267 + $0x208] sm:$0xff]
        %v413 = vld [vmem:[%s267 + $0x210] sm:$0xff]
        %v414 = vld [vmem:[%s267 + $0x218] sm:$0xff]
        %v415 = vld [vmem:[%s267 + $0x220] sm:$0xff]
        %v416 = vld [vmem:[%s267 + $0x228] sm:$0xff]
        %v417 = vld [vmem:[%s267 + $0x230] sm:$0xff]
        %v418 = vld [vmem:[%s267 + $0x238] sm:$0xff]
        %v419 = vld [vmem:[%s267 + $0x240] sm:$0xff]
        %v420 = vld [vmem:[%s267 + $0x248] sm:$0xff]
        %v421 = vld [vmem:[%s267 + $0x250] sm:$0xff]
        %v422 = vld [vmem:[%s267 + $0x258] sm:$0xff]
        %v423 = vld [vmem:[%s267 + $0x260] sm:$0xff]
        %v424 = vld [vmem:[%s267 + $0x268] sm:$0xff]
        %v425 = vld [vmem:[%s267 + $0x270] sm:$0xff]
        %v426 = vld [vmem:[%s267 + $0x278] sm:$0xff]
        %v427 = vld [vmem:[%s267 + $0x280] sm:$0xff]
        %v428 = vld [vmem:[%s267 + $0x288] sm:$0xff]
        %v429 = vld [vmem:[%s267 + $0x290] sm:$0xff]
        %v430 = vld [vmem:[%s267 + $0x298] sm:$0xff]
        %v431 = vld [vmem:[%s267 + $0x2a0] sm:$0xff]
        %v432 = vld [vmem:[%s267 + $0x2a8] sm:$0xff]
        %v433 = vld [vmem:[%s267 + $0x2b0] sm:$0xff]
        %v434 = vld [vmem:[%s267 + $0x2b8] sm:$0xff]
        %v435 = vld [vmem:[%s267 + $0x2c0] sm:$0xff]
        %v436 = vld [vmem:[%s267 + $0x2c8] sm:$0xff]
        %v437 = vld [vmem:[%s267 + $0x2d0] sm:$0xff]
        %v438 = vld [vmem:[%s267 + $0x2d8] sm:$0xff]
        %v439 = vld [vmem:[%s267 + $0x2e0] sm:$0xff]
        %v440 = vld [vmem:[%s267 + $0x2e8] sm:$0xff]
        %v441 = vld [vmem:[%s267 + $0x2f0] sm:$0xff]
        %v442 = vld [vmem:[%s267 + $0x2f8] sm:$0xff]
        %v443 = vld [vmem:[%s267 + $0x300] sm:$0xff]
        %v444 = vld [vmem:[%s267 + $0x308] sm:$0xff]
        %v445 = vld [vmem:[%s267 + $0x310] sm:$0xff]
        %v446 = vld [vmem:[%s267 + $0x318] sm:$0xff]
        %v447 = vld [vmem:[%s267 + $0x320] sm:$0xff]
        %v448 = vld [vmem:[%s267 + $0x328] sm:$0xff]
        %v449 = vld [vmem:[%s267 + $0x330] sm:$0xff]
        %v450 = vld [vmem:[%s267 + $0x338] sm:$0xff]
        %v451 = vld [vmem:[%s267 + $0x340] sm:$0xff]
        %v452 = vld [vmem:[%s267 + $0x348] sm:$0xff]
        %v453 = vld [vmem:[%s267 + $0x350] sm:$0xff]
        %v454 = vld [vmem:[%s267 + $0x358] sm:$0xff]
        %v455 = vld [vmem:[%s267 + $0x360] sm:$0xff]
        %v456 = vld [vmem:[%s267 + $0x368] sm:$0xff]
        %v457 = vld [vmem:[%s267 + $0x370] sm:$0xff]
        %v458 = vld [vmem:[%s267 + $0x378] sm:$0xff]
        %v459 = vld [vmem:[%s267 + $0x380] sm:$0xff]
        %v460 = vld [vmem:[%s267 + $0x388] sm:$0xff]
        %v461 = vld [vmem:[%s267 + $0x390] sm:$0xff]
        %v462 = vld [vmem:[%s267 + $0x398] sm:$0xff]
        %v463 = vld [vmem:[%s267 + $0x3a0] sm:$0xff]
        %v464 = vld [vmem:[%s267 + $0x3a8] sm:$0xff]
        %v465 = vld [vmem:[%s267 + $0x3b0] sm:$0xff]
        %v466 = vld [vmem:[%s267 + $0x3b8] sm:$0xff]
        %v467 = vld [vmem:[%s267 + $0x3c0] sm:$0xff]
        %v468 = vld [vmem:[%s267 + $0x3c8] sm:$0xff]
        %v469 = vld [vmem:[%s267 + $0x3d0] sm:$0xff]
        %v470 = vld [vmem:[%s267 + $0x3d8] sm:$0xff]
        %v471 = vld [vmem:[%s267 + $0x3e0] sm:$0xff]
        %v472 = vld [vmem:[%s267 + $0x3e8] sm:$0xff]
        %v473 = vld [vmem:[%s267 + $0x3f0] sm:$0xff]
        %v474 = vld [vmem:[%s267 + $0x3f8] sm:$0xff]
        %v475 = vld [vmem:[%s277] sm:$0xff]
        %v476 = vld [vmem:[#allocation3] sm:$0xf]
        %v477 = vld [vmem:[#allocation3 + $0x4] sm:$0xf]
        %v479 = vperm.slane %v475, 0
        %v480 = vperm.slane %v475, 1
        %v481 = vperm.slane %v475, 2
        %v482 = vperm.slane %v475, 3
        %v483 = vperm.slane %v475, 4
        %v484 = vperm.slane %v475, 5
        %v485 = vperm.slane %v475, 6
        %v486 = vperm.slane %v475, 7
        %v497 = vunpack.c.l.b16 %v476
        %v498 = vunpack.c.l.b16 %v477
        %v499 = vpack.c.b16 %v498, %v497
        %v532 = vunpack.c.l.b16 %v315
        %v533 = vunpack.c.h.b16 %v315
        %v534 = vunpack.c.l.b16 %v316
        %v535 = vunpack.c.h.b16 %v316
        %v536 = vunpack.c.l.b16 %v317
        %v537 = vunpack.c.h.b16 %v317
        %v538 = vunpack.c.l.b16 %v318
        %v539 = vunpack.c.h.b16 %v318
        %v540 = vunpack.c.l.b16 %v319
        %v541 = vunpack.c.h.b16 %v319
        %v542 = vunpack.c.l.b16 %v320
        %v543 = vunpack.c.h.b16 %v320
        %v544 = vunpack.c.l.b16 %v321
        %v545 = vunpack.c.h.b16 %v321
        %v546 = vunpack.c.l.b16 %v322
        %v547 = vunpack.c.h.b16 %v322
        %v548 = vunpack.c.l.b16 %v323
        %v549 = vunpack.c.h.b16 %v323
        %v550 = vunpack.c.l.b16 %v324
        %v551 = vunpack.c.h.b16 %v324
        %v552 = vunpack.c.l.b16 %v325
        %v553 = vunpack.c.h.b16 %v325
        %v554 = vunpack.c.l.b16 %v326
        %v555 = vunpack.c.h.b16 %v326
        %v556 = vunpack.c.l.b16 %v327
        %v557 = vunpack.c.h.b16 %v327
        %v558 = vunpack.c.l.b16 %v328
        %v559 = vunpack.c.h.b16 %v328
        %v560 = vunpack.c.l.b16 %v329
        %v561 = vunpack.c.h.b16 %v329
        %v562 = vunpack.c.l.b16 %v330
        %v563 = vunpack.c.h.b16 %v330
        %v564 = vunpack.c.l.b16 %v331
        %v565 = vunpack.c.h.b16 %v331
        %v566 = vunpack.c.l.b16 %v332
        %v567 = vunpack.c.h.b16 %v332
        %v568 = vunpack.c.l.b16 %v333
        %v569 = vunpack.c.h.b16 %v333
        %v570 = vunpack.c.l.b16 %v334
        %v571 = vunpack.c.h.b16 %v334
        %v572 = vunpack.c.l.b16 %v335
        %v573 = vunpack.c.h.b16 %v335
        %v574 = vunpack.c.l.b16 %v336
        %v575 = vunpack.c.h.b16 %v336
        %v576 = vunpack.c.l.b16 %v337
        %v577 = vunpack.c.h.b16 %v337
        %v578 = vunpack.c.l.b16 %v338
        %v579 = vunpack.c.h.b16 %v338
        %v580 = vunpack.c.l.b16 %v339
        %v581 = vunpack.c.h.b16 %v339
        %v582 = vunpack.c.l.b16 %v340
        %v583 = vunpack.c.h.b16 %v340
        %v584 = vunpack.c.l.b16 %v341
        %v585 = vunpack.c.h.b16 %v341
        %v586 = vunpack.c.l.b16 %v342
        %v587 = vunpack.c.h.b16 %v342
        %v588 = vunpack.c.l.b16 %v343
        %v589 = vunpack.c.h.b16 %v343
        %v590 = vunpack.c.l.b16 %v344
        %v591 = vunpack.c.h.b16 %v344
        %v592 = vunpack.c.l.b16 %v345
        %v593 = vunpack.c.h.b16 %v345
        %v594 = vunpack.c.l.b16 %v346
        %v595 = vunpack.c.h.b16 %v346
        %v596 = vpack.c.b16 %v540, %v532
        %v597 = vpack.c.b16 %v541, %v533
        %v598 = vpack.c.b16 %v542, %v534
        %v599 = vpack.c.b16 %v543, %v535
        %v600 = vpack.c.b16 %v544, %v536
        %v601 = vpack.c.b16 %v545, %v537
        %v602 = vpack.c.b16 %v546, %v538
        %v603 = vpack.c.b16 %v547, %v539
        %v604 = vpack.c.b16 %v556, %v548
        %v605 = vpack.c.b16 %v557, %v549
        %v606 = vpack.c.b16 %v558, %v550
        %v607 = vpack.c.b16 %v559, %v551
        %v608 = vpack.c.b16 %v560, %v552
        %v609 = vpack.c.b16 %v561, %v553
        %v610 = vpack.c.b16 %v562, %v554
        %v611 = vpack.c.b16 %v563, %v555
        %v612 = vpack.c.b16 %v572, %v564
        %v613 = vpack.c.b16 %v573, %v565
        %v614 = vpack.c.b16 %v574, %v566
        %v615 = vpack.c.b16 %v575, %v567
        %v616 = vpack.c.b16 %v576, %v568
        %v617 = vpack.c.b16 %v577, %v569
        %v618 = vpack.c.b16 %v578, %v570
        %v619 = vpack.c.b16 %v579, %v571
        %v620 = vpack.c.b16 %v588, %v580
        %v621 = vpack.c.b16 %v589, %v581
        %v622 = vpack.c.b16 %v590, %v582
        %v623 = vpack.c.b16 %v591, %v583
        %v624 = vpack.c.b16 %v592, %v584
        %v625 = vpack.c.b16 %v593, %v585
        %v626 = vpack.c.b16 %v594, %v586
        %v627 = vpack.c.b16 %v595, %v587
        %vm660 = vcmask 523264
        %v662 = vsel %vm660, %v499, 0
        %664 = vmatpush.bf16.msra.mxu0 0
        %665 = vmatpush.bf16.msra.mxu0 0
        %666 = vmatpush.bf16.msra.mxu0 0
        %667 = vmatpush.bf16.msra.mxu0 0
        %668 = vmatpush.bf16.msra.mxu0 %v620
        %669 = vmatpush.bf16.msra.mxu0 %v612
        %670 = vmatpush.bf16.msra.mxu0 %v604
        %671 = vmatpush.bf16.msra.mxu0 %v596
        %672 = vmatmul.bf16.gmra.mxu0 %v662
        %v673 = vpop.f32.mrf.mxu0
        %v674 = vadd.f32 %v479, %v673
        %v675 = vpop.f32.mrf.mxu0
        %v676 = vadd.f32 %v479, %v675
        %677 = vdwg.mxu0
        %678 = vmatpush.bf16.msra.mxu0 0
        %679 = vmatpush.bf16.msra.mxu0 0
        %680 = vmatpush.bf16.msra.mxu0 0
        %681 = vmatpush.bf16.msra.mxu0 0
        %682 = vmatpush.bf16.msra.mxu0 %v621
        %683 = vmatpush.bf16.msra.mxu0 %v613
        %684 = vmatpush.bf16.msra.mxu0 %v605
        %685 = vmatpush.bf16.msra.mxu0 %v597
        %686 = vmatmul.bf16.gmra.mxu0 %v662
        %v687 = vpop.f32.mrf.mxu0
        %v688 = vadd.f32 %v480, %v687
        %v689 = vpop.f32.mrf.mxu0
        %v690 = vadd.f32 %v480, %v689
        %691 = vdwg.mxu0
        %692 = vmatpush.bf16.msra.mxu0 0
        %693 = vmatpush.bf16.msra.mxu0 0
        %694 = vmatpush.bf16.msra.mxu0 0
        %695 = vmatpush.bf16.msra.mxu0 0
        %696 = vmatpush.bf16.msra.mxu0 %v622
        %697 = vmatpush.bf16.msra.mxu0 %v614
        %698 = vmatpush.bf16.msra.mxu0 %v606
        %699 = vmatpush.bf16.msra.mxu0 %v598
        %700 = vmatmul.bf16.gmra.mxu0 %v662
        %v701 = vpop.f32.mrf.mxu0
        %v702 = vadd.f32 %v481, %v701
        %v703 = vpop.f32.mrf.mxu0
        %v704 = vadd.f32 %v481, %v703
        %705 = vdwg.mxu0
        %706 = vmatpush.bf16.msra.mxu0 0
        %707 = vmatpush.bf16.msra.mxu0 0
        %708 = vmatpush.bf16.msra.mxu0 0
        %709 = vmatpush.bf16.msra.mxu0 0
        %710 = vmatpush.bf16.msra.mxu0 %v623
        %711 = vmatpush.bf16.msra.mxu0 %v615
        %712 = vmatpush.bf16.msra.mxu0 %v607
        %713 = vmatpush.bf16.msra.mxu0 %v599
        %714 = vmatmul.bf16.gmra.mxu0 %v662
        %v715 = vpop.f32.mrf.mxu0
        %v716 = vadd.f32 %v482, %v715
        %v717 = vpop.f32.mrf.mxu0
        %v718 = vadd.f32 %v482, %v717
        %719 = vdwg.mxu0
        %720 = vmatpush.bf16.msra.mxu0 0
        %721 = vmatpush.bf16.msra.mxu0 0
        %722 = vmatpush.bf16.msra.mxu0 0
        %723 = vmatpush.bf16.msra.mxu0 0
        %724 = vmatpush.bf16.msra.mxu0 %v624
        %725 = vmatpush.bf16.msra.mxu0 %v616
        %726 = vmatpush.bf16.msra.mxu0 %v608
        %727 = vmatpush.bf16.msra.mxu0 %v600
        %728 = vmatmul.bf16.gmra.mxu0 %v662
        %v729 = vpop.f32.mrf.mxu0
        %v730 = vadd.f32 %v483, %v729
        %v731 = vpop.f32.mrf.mxu0
        %v732 = vadd.f32 %v483, %v731
        %733 = vdwg.mxu0
        %734 = vmatpush.bf16.msra.mxu0 0
        %735 = vmatpush.bf16.msra.mxu0 0
        %736 = vmatpush.bf16.msra.mxu0 0
        %737 = vmatpush.bf16.msra.mxu0 0
        %738 = vmatpush.bf16.msra.mxu0 %v625
        %739 = vmatpush.bf16.msra.mxu0 %v617
        %740 = vmatpush.bf16.msra.mxu0 %v609
        %741 = vmatpush.bf16.msra.mxu0 %v601
        %742 = vmatmul.bf16.gmra.mxu0 %v662
        %v743 = vpop.f32.mrf.mxu0
        %v744 = vadd.f32 %v484, %v743
        %v745 = vpop.f32.mrf.mxu0
        %v746 = vadd.f32 %v484, %v745
        %747 = vdwg.mxu0
        %748 = vmatpush.bf16.msra.mxu0 0
        %749 = vmatpush.bf16.msra.mxu0 0
        %750 = vmatpush.bf16.msra.mxu0 0
        %751 = vmatpush.bf16.msra.mxu0 0
        %752 = vmatpush.bf16.msra.mxu0 %v626
        %753 = vmatpush.bf16.msra.mxu0 %v618
        %754 = vmatpush.bf16.msra.mxu0 %v610
        %755 = vmatpush.bf16.msra.mxu0 %v602
        %756 = vmatmul.bf16.gmra.mxu0 %v662
        %v757 = vpop.f32.mrf.mxu0
        %v758 = vadd.f32 %v485, %v757
        %v759 = vpop.f32.mrf.mxu0
        %v760 = vadd.f32 %v485, %v759
        %761 = vdwg.mxu0
        %762 = vmatpush.bf16.msra.mxu0 0
        %763 = vmatpush.bf16.msra.mxu0 0
        %764 = vmatpush.bf16.msra.mxu0 0
        %765 = vmatpush.bf16.msra.mxu0 0
        %766 = vmatpush.bf16.msra.mxu0 %v627
        %767 = vmatpush.bf16.msra.mxu0 %v619
        %768 = vmatpush.bf16.msra.mxu0 %v611
        %769 = vmatpush.bf16.msra.mxu0 %v603
        %770 = vmatmul.bf16.gmra.mxu0 %v662
        %v771 = vpop.f32.mrf.mxu0
        %v772 = vadd.f32 %v486, %v771
        %v773 = vpop.f32.mrf.mxu0
        %v774 = vadd.f32 %v486, %v773
        %775 = vdwg.mxu0
        %776 = vst [vmem:[#allocation2] sm:$0xff] %v674
        %777 = vst [vmem:[#allocation2 + $0x8] sm:$0xff] %v688
        %778 = vst [vmem:[#allocation2 + $0x10] sm:$0xff] %v702
        %779 = vst [vmem:[#allocation2 + $0x18] sm:$0xff] %v716
        %780 = vst [vmem:[#allocation2 + $0x20] sm:$0xff] %v730
        %781 = vst [vmem:[#allocation2 + $0x28] sm:$0xff] %v744
        %782 = vst [vmem:[#allocation2 + $0x30] sm:$0xff] %v758
        %783 = vst [vmem:[#allocation2 + $0x38] sm:$0xff] %v772
        %784 = vst [vmem:[#allocation2 + $0x40] sm:$0xff] %v676
        %785 = vst [vmem:[#allocation2 + $0x48] sm:$0xff] %v690
        %786 = vst [vmem:[#allocation2 + $0x50] sm:$0xff] %v704
        %787 = vst [vmem:[#allocation2 + $0x58] sm:$0xff] %v718
        %788 = vst [vmem:[#allocation2 + $0x60] sm:$0xff] %v732
        %789 = vst [vmem:[#allocation2 + $0x68] sm:$0xff] %v746
        %790 = vst [vmem:[#allocation2 + $0x70] sm:$0xff] %v760
        %791 = vst [vmem:[#allocation2 + $0x78] sm:$0xff] %v774
        %s792 = smul.u32 %s25, 7
        %s793 = sshra.s32 %s792, 3
        %s794 = sand.u32 %s792, 7
        %s795 = sshra.s32 %s792, 3
        %s796 = sand.u32 %s792, 7
        %s797 = smul.u32 %s793, 8
        %s798 = smul.u32 %s797, 8
        %s799 = sadd.s32 %s798, %s796
        %s800 = scalar_lea.vmem [#allocation2], %s799
        %v801 = vld [vmem:[%s800] ss:$8 sm:$0xf]
        %v802 = vld [vmem:[%s800] ss:$8 sm:$0xf0]
        %v803 = vor.u32 %v801, %v802
        %s804 = sadd.s32 %s792, 8
        %s805 = sshra.s32 %s804, 3
        %s806 = sand.u32 %s804, 7
        %s807 = sshra.s32 %s804, 3
        %s808 = sand.u32 %s804, 7
        %s809 = smul.u32 %s805, 8
        %s810 = smul.u32 %s809, 8
        %s811 = sadd.s32 %s810, %s808
        %s812 = scalar_lea.vmem [#allocation2], %s811
        %v813 = vld [vmem:[%s812] ss:$8 sm:$0xf]
        %v814 = vld [vmem:[%s812] ss:$8 sm:$0xf0]
        %v815 = vor.u32 %v813, %v814
        %v817 = vperm.slane %v803, 0
        %v818 = vperm.slane %v803, 1
        %v819 = vperm.slane %v803, 2
        %v820 = vperm.slane %v803, 3
        %v821 = vperm.slane %v803, 4
        %v822 = vperm.slane %v803, 5
        %v823 = vperm.slane %v803, 6
        %v824 = vperm.slane %v803, 7
        %v834 = vperm.slane %v815, 0
        %v835 = vperm.slane %v815, 1
        %v836 = vperm.slane %v815, 2
        %v837 = vperm.slane %v815, 3
        %v838 = vperm.slane %v815, 4
        %v839 = vperm.slane %v815, 5
        %v840 = vperm.slane %v815, 6
        %v841 = vperm.slane %v815, 7
        %vm850 = vcmask 1040384
        %v851 = vsel %vm850, %v817, %v834
        %v852 = vsel %vm850, %v818, %v835
        %v853 = vsel %vm850, %v819, %v836
        %v854 = vsel %vm850, %v820, %v837
        %v855 = vsel %vm850, %v821, %v838
        %v856 = vsel %vm850, %v822, %v839
        %v857 = vsel %vm850, %v823, %v840
        %v858 = vsel %vm850, %v824, %v841
        %v987 = vunpack.c.l.b16 %v347
        %v988 = vunpack.c.h.b16 %v347
        %v989 = vunpack.c.l.b16 %v348
        %v990 = vunpack.c.h.b16 %v348
        %v991 = vunpack.c.l.b16 %v349
        %v992 = vunpack.c.h.b16 %v349
        %v993 = vunpack.c.l.b16 %v350
        %v994 = vunpack.c.h.b16 %v350
        %v995 = vunpack.c.l.b16 %v351
        %v996 = vunpack.c.h.b16 %v351
        %v997 = vunpack.c.l.b16 %v352
        %v998 = vunpack.c.h.b16 %v352
        %v999 = vunpack.c.l.b16 %v353
        %v1000 = vunpack.c.h.b16 %v353
        %v1001 = vunpack.c.l.b16 %v354
        %v1002 = vunpack.c.h.b16 %v354
        %v1003 = vunpack.c.l.b16 %v355
        %v1004 = vunpack.c.h.b16 %v355
        %v1005 = vunpack.c.l.b16 %v356
        %v1006 = vunpack.c.h.b16 %v356
        %v1007 = vunpack.c.l.b16 %v357
        %v1008 = vunpack.c.h.b16 %v357
        %v1009 = vunpack.c.l.b16 %v358
        %v1010 = vunpack.c.h.b16 %v358
        %v1011 = vunpack.c.l.b16 %v359
        %v1012 = vunpack.c.h.b16 %v359
        %v1013 = vunpack.c.l.b16 %v360
        %v1014 = vunpack.c.h.b16 %v360
        %v1015 = vunpack.c.l.b16 %v361
        %v1016 = vunpack.c.h.b16 %v361
        %v1017 = vunpack.c.l.b16 %v362
        %v1018 = vunpack.c.h.b16 %v362
        %v1019 = vunpack.c.l.b16 %v363
        %v1020 = vunpack.c.h.b16 %v363
        %v1021 = vunpack.c.l.b16 %v364
        %v1022 = vunpack.c.h.b16 %v364
        %v1023 = vunpack.c.l.b16 %v365
        %v1024 = vunpack.c.h.b16 %v365
        %v1025 = vunpack.c.l.b16 %v366
        %v1026 = vunpack.c.h.b16 %v366
        %v1027 = vunpack.c.l.b16 %v367
        %v1028 = vunpack.c.h.b16 %v367
        %v1029 = vunpack.c.l.b16 %v368
        %v1030 = vunpack.c.h.b16 %v368
        %v1031 = vunpack.c.l.b16 %v369
        %v1032 = vunpack.c.h.b16 %v369
        %v1033 = vunpack.c.l.b16 %v370
        %v1034 = vunpack.c.h.b16 %v370
        %v1035 = vunpack.c.l.b16 %v371
        %v1036 = vunpack.c.h.b16 %v371
        %v1037 = vunpack.c.l.b16 %v372
        %v1038 = vunpack.c.h.b16 %v372
        %v1039 = vunpack.c.l.b16 %v373
        %v1040 = vunpack.c.h.b16 %v373
        %v1041 = vunpack.c.l.b16 %v374
        %v1042 = vunpack.c.h.b16 %v374
        %v1043 = vunpack.c.l.b16 %v375
        %v1044 = vunpack.c.h.b16 %v375
        %v1045 = vunpack.c.l.b16 %v376
        %v1046 = vunpack.c.h.b16 %v376
        %v1047 = vunpack.c.l.b16 %v377
        %v1048 = vunpack.c.h.b16 %v377
        %v1049 = vunpack.c.l.b16 %v378
        %v1050 = vunpack.c.h.b16 %v378
        %v1051 = vunpack.c.l.b16 %v379
        %v1052 = vunpack.c.h.b16 %v379
        %v1053 = vunpack.c.l.b16 %v380
        %v1054 = vunpack.c.h.b16 %v380
        %v1055 = vunpack.c.l.b16 %v381
        %v1056 = vunpack.c.h.b16 %v381
        %v1057 = vunpack.c.l.b16 %v382
        %v1058 = vunpack.c.h.b16 %v382
        %v1059 = vunpack.c.l.b16 %v383
        %v1060 = vunpack.c.h.b16 %v383
        %v1061 = vunpack.c.l.b16 %v384
        %v1062 = vunpack.c.h.b16 %v384
        %v1063 = vunpack.c.l.b16 %v385
        %v1064 = vunpack.c.h.b16 %v385
        %v1065 = vunpack.c.l.b16 %v386
        %v1066 = vunpack.c.h.b16 %v386
        %v1067 = vunpack.c.l.b16 %v387
        %v1068 = vunpack.c.h.b16 %v387
        %v1069 = vunpack.c.l.b16 %v388
        %v1070 = vunpack.c.h.b16 %v388
        %v1071 = vunpack.c.l.b16 %v389
        %v1072 = vunpack.c.h.b16 %v389
        %v1073 = vunpack.c.l.b16 %v390
        %v1074 = vunpack.c.h.b16 %v390
        %v1075 = vunpack.c.l.b16 %v391
        %v1076 = vunpack.c.h.b16 %v391
        %v1077 = vunpack.c.l.b16 %v392
        %v1078 = vunpack.c.h.b16 %v392
        %v1079 = vunpack.c.l.b16 %v393
        %v1080 = vunpack.c.h.b16 %v393
        %v1081 = vunpack.c.l.b16 %v394
        %v1082 = vunpack.c.h.b16 %v394
        %v1083 = vunpack.c.l.b16 %v395
        %v1084 = vunpack.c.h.b16 %v395
        %v1085 = vunpack.c.l.b16 %v396
        %v1086 = vunpack.c.h.b16 %v396
        %v1087 = vunpack.c.l.b16 %v397
        %v1088 = vunpack.c.h.b16 %v397
        %v1089 = vunpack.c.l.b16 %v398
        %v1090 = vunpack.c.h.b16 %v398
        %v1091 = vunpack.c.l.b16 %v399
        %v1092 = vunpack.c.h.b16 %v399
        %v1093 = vunpack.c.l.b16 %v400
        %v1094 = vunpack.c.h.b16 %v400
        %v1095 = vunpack.c.l.b16 %v401
        %v1096 = vunpack.c.h.b16 %v401
        %v1097 = vunpack.c.l.b16 %v402
        %v1098 = vunpack.c.h.b16 %v402
        %v1099 = vunpack.c.l.b16 %v403
        %v1100 = vunpack.c.h.b16 %v403
        %v1101 = vunpack.c.l.b16 %v404
        %v1102 = vunpack.c.h.b16 %v404
        %v1103 = vunpack.c.l.b16 %v405
        %v1104 = vunpack.c.h.b16 %v405
        %v1105 = vunpack.c.l.b16 %v406
        %v1106 = vunpack.c.h.b16 %v406
        %v1107 = vunpack.c.l.b16 %v407
        %v1108 = vunpack.c.h.b16 %v407
        %v1109 = vunpack.c.l.b16 %v408
        %v1110 = vunpack.c.h.b16 %v408
        %v1111 = vunpack.c.l.b16 %v409
        %v1112 = vunpack.c.h.b16 %v409
        %v1113 = vunpack.c.l.b16 %v410
        %v1114 = vunpack.c.h.b16 %v410
        %v1115 = vunpack.c.l.b16 %v411
        %v1116 = vunpack.c.h.b16 %v411
        %v1117 = vunpack.c.l.b16 %v412
        %v1118 = vunpack.c.h.b16 %v412
        %v1119 = vunpack.c.l.b16 %v413
        %v1120 = vunpack.c.h.b16 %v413
        %v1121 = vunpack.c.l.b16 %v414
        %v1122 = vunpack.c.h.b16 %v414
        %v1123 = vunpack.c.l.b16 %v415
        %v1124 = vunpack.c.h.b16 %v415
        %v1125 = vunpack.c.l.b16 %v416
        %v1126 = vunpack.c.h.b16 %v416
        %v1127 = vunpack.c.l.b16 %v417
        %v1128 = vunpack.c.h.b16 %v417
        %v1129 = vunpack.c.l.b16 %v418
        %v1130 = vunpack.c.h.b16 %v418
        %v1131 = vunpack.c.l.b16 %v419
        %v1132 = vunpack.c.h.b16 %v419
        %v1133 = vunpack.c.l.b16 %v420
        %v1134 = vunpack.c.h.b16 %v420
        %v1135 = vunpack.c.l.b16 %v421
        %v1136 = vunpack.c.h.b16 %v421
        %v1137 = vunpack.c.l.b16 %v422
        %v1138 = vunpack.c.h.b16 %v422
        %v1139 = vunpack.c.l.b16 %v423
        %v1140 = vunpack.c.h.b16 %v423
        %v1141 = vunpack.c.l.b16 %v424
        %v1142 = vunpack.c.h.b16 %v424
        %v1143 = vunpack.c.l.b16 %v425
        %v1144 = vunpack.c.h.b16 %v425
        %v1145 = vunpack.c.l.b16 %v426
        %v1146 = vunpack.c.h.b16 %v426
        %v1147 = vunpack.c.l.b16 %v427
        %v1148 = vunpack.c.h.b16 %v427
        %v1149 = vunpack.c.l.b16 %v428
        %v1150 = vunpack.c.h.b16 %v428
        %v1151 = vunpack.c.l.b16 %v429
        %v1152 = vunpack.c.h.b16 %v429
        %v1153 = vunpack.c.l.b16 %v430
        %v1154 = vunpack.c.h.b16 %v430
        %v1155 = vunpack.c.l.b16 %v431
        %v1156 = vunpack.c.h.b16 %v431
        %v1157 = vunpack.c.l.b16 %v432
        %v1158 = vunpack.c.h.b16 %v432
        %v1159 = vunpack.c.l.b16 %v433
        %v1160 = vunpack.c.h.b16 %v433
        %v1161 = vunpack.c.l.b16 %v434
        %v1162 = vunpack.c.h.b16 %v434
        %v1163 = vunpack.c.l.b16 %v435
        %v1164 = vunpack.c.h.b16 %v435
        %v1165 = vunpack.c.l.b16 %v436
        %v1166 = vunpack.c.h.b16 %v436
        %v1167 = vunpack.c.l.b16 %v437
        %v1168 = vunpack.c.h.b16 %v437
        %v1169 = vunpack.c.l.b16 %v438
        %v1170 = vunpack.c.h.b16 %v438
        %v1171 = vunpack.c.l.b16 %v439
        %v1172 = vunpack.c.h.b16 %v439
        %v1173 = vunpack.c.l.b16 %v440
        %v1174 = vunpack.c.h.b16 %v440
        %v1175 = vunpack.c.l.b16 %v441
        %v1176 = vunpack.c.h.b16 %v441
        %v1177 = vunpack.c.l.b16 %v442
        %v1178 = vunpack.c.h.b16 %v442
        %v1179 = vunpack.c.l.b16 %v443
        %v1180 = vunpack.c.h.b16 %v443
        %v1181 = vunpack.c.l.b16 %v444
        %v1182 = vunpack.c.h.b16 %v444
        %v1183 = vunpack.c.l.b16 %v445
        %v1184 = vunpack.c.h.b16 %v445
        %v1185 = vunpack.c.l.b16 %v446
        %v1186 = vunpack.c.h.b16 %v446
        %v1187 = vunpack.c.l.b16 %v447
        %v1188 = vunpack.c.h.b16 %v447
        %v1189 = vunpack.c.l.b16 %v448
        %v1190 = vunpack.c.h.b16 %v448
        %v1191 = vunpack.c.l.b16 %v449
        %v1192 = vunpack.c.h.b16 %v449
        %v1193 = vunpack.c.l.b16 %v450
        %v1194 = vunpack.c.h.b16 %v450
        %v1195 = vunpack.c.l.b16 %v451
        %v1196 = vunpack.c.h.b16 %v451
        %v1197 = vunpack.c.l.b16 %v452
        %v1198 = vunpack.c.h.b16 %v452
        %v1199 = vunpack.c.l.b16 %v453
        %v1200 = vunpack.c.h.b16 %v453
        %v1201 = vunpack.c.l.b16 %v454
        %v1202 = vunpack.c.h.b16 %v454
        %v1203 = vunpack.c.l.b16 %v455
        %v1204 = vunpack.c.h.b16 %v455
        %v1205 = vunpack.c.l.b16 %v456
        %v1206 = vunpack.c.h.b16 %v456
        %v1207 = vunpack.c.l.b16 %v457
        %v1208 = vunpack.c.h.b16 %v457
        %v1209 = vunpack.c.l.b16 %v458
        %v1210 = vunpack.c.h.b16 %v458
        %v1211 = vunpack.c.l.b16 %v459
        %v1212 = vunpack.c.h.b16 %v459
        %v1213 = vunpack.c.l.b16 %v460
        %v1214 = vunpack.c.h.b16 %v460
        %v1215 = vunpack.c.l.b16 %v461
        %v1216 = vunpack.c.h.b16 %v461
        %v1217 = vunpack.c.l.b16 %v462
        %v1218 = vunpack.c.h.b16 %v462
        %v1219 = vunpack.c.l.b16 %v463
        %v1220 = vunpack.c.h.b16 %v463
        %v1221 = vunpack.c.l.b16 %v464
        %v1222 = vunpack.c.h.b16 %v464
        %v1223 = vunpack.c.l.b16 %v465
        %v1224 = vunpack.c.h.b16 %v465
        %v1225 = vunpack.c.l.b16 %v466
        %v1226 = vunpack.c.h.b16 %v466
        %v1227 = vunpack.c.l.b16 %v467
        %v1228 = vunpack.c.h.b16 %v467
        %v1229 = vunpack.c.l.b16 %v468
        %v1230 = vunpack.c.h.b16 %v468
        %v1231 = vunpack.c.l.b16 %v469
        %v1232 = vunpack.c.h.b16 %v469
        %v1233 = vunpack.c.l.b16 %v470
        %v1234 = vunpack.c.h.b16 %v470
        %v1235 = vunpack.c.l.b16 %v471
        %v1236 = vunpack.c.h.b16 %v471
        %v1237 = vunpack.c.l.b16 %v472
        %v1238 = vunpack.c.h.b16 %v472
        %v1239 = vunpack.c.l.b16 %v473
        %v1240 = vunpack.c.h.b16 %v473
        %v1241 = vunpack.c.l.b16 %v474
        %v1242 = vunpack.c.h.b16 %v474
        %v1243 = vpack.c.b16 %v995, %v987
        %v1244 = vpack.c.b16 %v996, %v988
        %v1245 = vpack.c.b16 %v997, %v989
        %v1246 = vpack.c.b16 %v998, %v990
        %v1247 = vpack.c.b16 %v999, %v991
        %v1248 = vpack.c.b16 %v1000, %v992
        %v1249 = vpack.c.b16 %v1001, %v993
        %v1250 = vpack.c.b16 %v1002, %v994
        %v1251 = vpack.c.b16 %v1011, %v1003
        %v1252 = vpack.c.b16 %v1012, %v1004
        %v1253 = vpack.c.b16 %v1013, %v1005
        %v1254 = vpack.c.b16 %v1014, %v1006
        %v1255 = vpack.c.b16 %v1015, %v1007
        %v1256 = vpack.c.b16 %v1016, %v1008
        %v1257 = vpack.c.b16 %v1017, %v1009
        %v1258 = vpack.c.b16 %v1018, %v1010
        %v1259 = vpack.c.b16 %v1027, %v1019
        %v1260 = vpack.c.b16 %v1028, %v1020
        %v1261 = vpack.c.b16 %v1029, %v1021
        %v1262 = vpack.c.b16 %v1030, %v1022
        %v1263 = vpack.c.b16 %v1031, %v1023
        %v1264 = vpack.c.b16 %v1032, %v1024
        %v1265 = vpack.c.b16 %v1033, %v1025
        %v1266 = vpack.c.b16 %v1034, %v1026
        %v1267 = vpack.c.b16 %v1043, %v1035
        %v1268 = vpack.c.b16 %v1044, %v1036
        %v1269 = vpack.c.b16 %v1045, %v1037
        %v1270 = vpack.c.b16 %v1046, %v1038
        %v1271 = vpack.c.b16 %v1047, %v1039
        %v1272 = vpack.c.b16 %v1048, %v1040
        %v1273 = vpack.c.b16 %v1049, %v1041
        %v1274 = vpack.c.b16 %v1050, %v1042
        %v1275 = vpack.c.b16 %v1059, %v1051
        %v1276 = vpack.c.b16 %v1060, %v1052
        %v1277 = vpack.c.b16 %v1061, %v1053
        %v1278 = vpack.c.b16 %v1062, %v1054
        %v1279 = vpack.c.b16 %v1063, %v1055
        %v1280 = vpack.c.b16 %v1064, %v1056
        %v1281 = vpack.c.b16 %v1065, %v1057
        %v1282 = vpack.c.b16 %v1066, %v1058
        %v1283 = vpack.c.b16 %v1075, %v1067
        %v1284 = vpack.c.b16 %v1076, %v1068
        %v1285 = vpack.c.b16 %v1077, %v1069
        %v1286 = vpack.c.b16 %v1078, %v1070
        %v1287 = vpack.c.b16 %v1079, %v1071
        %v1288 = vpack.c.b16 %v1080, %v1072
        %v1289 = vpack.c.b16 %v1081, %v1073
        %v1290 = vpack.c.b16 %v1082, %v1074
        %v1291 = vpack.c.b16 %v1091, %v1083
        %v1292 = vpack.c.b16 %v1092, %v1084
        %v1293 = vpack.c.b16 %v1093, %v1085
        %v1294 = vpack.c.b16 %v1094, %v1086
        %v1295 = vpack.c.b16 %v1095, %v1087
        %v1296 = vpack.c.b16 %v1096, %v1088
        %v1297 = vpack.c.b16 %v1097, %v1089
        %v1298 = vpack.c.b16 %v1098, %v1090
        %v1299 = vpack.c.b16 %v1107, %v1099
        %v1300 = vpack.c.b16 %v1108, %v1100
        %v1301 = vpack.c.b16 %v1109, %v1101
        %v1302 = vpack.c.b16 %v1110, %v1102
        %v1303 = vpack.c.b16 %v1111, %v1103
        %v1304 = vpack.c.b16 %v1112, %v1104
        %v1305 = vpack.c.b16 %v1113, %v1105
        %v1306 = vpack.c.b16 %v1114, %v1106
        %v1307 = vpack.c.b16 %v1123, %v1115
        %v1308 = vpack.c.b16 %v1124, %v1116
        %v1309 = vpack.c.b16 %v1125, %v1117
        %v1310 = vpack.c.b16 %v1126, %v1118
        %v1311 = vpack.c.b16 %v1127, %v1119
        %v1312 = vpack.c.b16 %v1128, %v1120
        %v1313 = vpack.c.b16 %v1129, %v1121
        %v1314 = vpack.c.b16 %v1130, %v1122
        %v1315 = vpack.c.b16 %v1139, %v1131
        %v1316 = vpack.c.b16 %v1140, %v1132
        %v1317 = vpack.c.b16 %v1141, %v1133
        %v1318 = vpack.c.b16 %v1142, %v1134
        %v1319 = vpack.c.b16 %v1143, %v1135
        %v1320 = vpack.c.b16 %v1144, %v1136
        %v1321 = vpack.c.b16 %v1145, %v1137
        %v1322 = vpack.c.b16 %v1146, %v1138
        %v1323 = vpack.c.b16 %v1155, %v1147
        %v1324 = vpack.c.b16 %v1156, %v1148
        %v1325 = vpack.c.b16 %v1157, %v1149
        %v1326 = vpack.c.b16 %v1158, %v1150
        %v1327 = vpack.c.b16 %v1159, %v1151
        %v1328 = vpack.c.b16 %v1160, %v1152
        %v1329 = vpack.c.b16 %v1161, %v1153
        %v1330 = vpack.c.b16 %v1162, %v1154
        %v1331 = vpack.c.b16 %v1171, %v1163
        %v1332 = vpack.c.b16 %v1172, %v1164
        %v1333 = vpack.c.b16 %v1173, %v1165
        %v1334 = vpack.c.b16 %v1174, %v1166
        %v1335 = vpack.c.b16 %v1175, %v1167
        %v1336 = vpack.c.b16 %v1176, %v1168
        %v1337 = vpack.c.b16 %v1177, %v1169
        %v1338 = vpack.c.b16 %v1178, %v1170
        %v1339 = vpack.c.b16 %v1187, %v1179
        %v1340 = vpack.c.b16 %v1188, %v1180
        %v1341 = vpack.c.b16 %v1189, %v1181
        %v1342 = vpack.c.b16 %v1190, %v1182
        %v1343 = vpack.c.b16 %v1191, %v1183
        %v1344 = vpack.c.b16 %v1192, %v1184
        %v1345 = vpack.c.b16 %v1193, %v1185
        %v1346 = vpack.c.b16 %v1194, %v1186
        %v1347 = vpack.c.b16 %v1203, %v1195
        %v1348 = vpack.c.b16 %v1204, %v1196
        %v1349 = vpack.c.b16 %v1205, %v1197
        %v1350 = vpack.c.b16 %v1206, %v1198
        %v1351 = vpack.c.b16 %v1207, %v1199
        %v1352 = vpack.c.b16 %v1208, %v1200
        %v1353 = vpack.c.b16 %v1209, %v1201
        %v1354 = vpack.c.b16 %v1210, %v1202
        %v1355 = vpack.c.b16 %v1219, %v1211
        %v1356 = vpack.c.b16 %v1220, %v1212
        %v1357 = vpack.c.b16 %v1221, %v1213
        %v1358 = vpack.c.b16 %v1222, %v1214
        %v1359 = vpack.c.b16 %v1223, %v1215
        %v1360 = vpack.c.b16 %v1224, %v1216
        %v1361 = vpack.c.b16 %v1225, %v1217
        %v1362 = vpack.c.b16 %v1226, %v1218
        %v1363 = vpack.c.b16 %v1235, %v1227
        %v1364 = vpack.c.b16 %v1236, %v1228
        %v1365 = vpack.c.b16 %v1237, %v1229
        %v1366 = vpack.c.b16 %v1238, %v1230
        %v1367 = vpack.c.b16 %v1239, %v1231
        %v1368 = vpack.c.b16 %v1240, %v1232
        %v1369 = vpack.c.b16 %v1241, %v1233
        %v1370 = vpack.c.b16 %v1242, %v1234
        %1499 = vmatpush.bf16.msra.mxu0 %v1299
        %1500 = vmatpush.bf16.msra.mxu0 %v1291
        %1501 = vmatpush.bf16.msra.mxu0 %v1283
        %1502 = vmatpush.bf16.msra.mxu0 %v1275
        %1503 = vmatpush.bf16.msra.mxu0 %v1267
        %1504 = vmatpush.bf16.msra.mxu0 %v1259
        %1505 = vmatpush.bf16.msra.mxu0 %v1251
        %1506 = vmatpush.bf16.msra.mxu0 %v1243
        %1507 = vmatmul.bf16.gmra.mxu0 0
        %v1508 = vpop.f32.mrf.mxu0
        %v1509 = vadd.f32 0.0, %v1508
        %v1510 = vpop.f32.mrf.mxu0
        %1511 = vdwg.mxu0
        %1512 = vmatpush.bf16.msra.mxu0 %v1363
        %1513 = vmatpush.bf16.msra.mxu0 %v1355
        %1514 = vmatpush.bf16.msra.mxu0 %v1347
        %1515 = vmatpush.bf16.msra.mxu0 %v1339
        %1516 = vmatpush.bf16.msra.mxu0 %v1331
        %1517 = vmatpush.bf16.msra.mxu0 %v1323
        %1518 = vmatpush.bf16.msra.mxu0 %v1315
        %1519 = vmatpush.bf16.msra.mxu0 %v1307
        %1520 = vmatmul.bf16.gmra.mxu0 0
        %v1521 = vpop.f32.mrf.mxu0
        %v1522 = vadd.f32 %v1509, %v1521
        %v1523 = vpop.f32.mrf.mxu0
        %1524 = vdwg.mxu0
        %1525 = vmatpush.bf16.msra.mxu0 %v1300
        %1526 = vmatpush.bf16.msra.mxu0 %v1292
        %1527 = vmatpush.bf16.msra.mxu0 %v1284
        %1528 = vmatpush.bf16.msra.mxu0 %v1276
        %1529 = vmatpush.bf16.msra.mxu0 %v1268
        %1530 = vmatpush.bf16.msra.mxu0 %v1260
        %1531 = vmatpush.bf16.msra.mxu0 %v1252
        %1532 = vmatpush.bf16.msra.mxu0 %v1244
        %1533 = vmatmul.bf16.gmra.mxu0 0
        %v1534 = vpop.f32.mrf.mxu0
        %v1535 = vadd.f32 0.0, %v1534
        %v1536 = vpop.f32.mrf.mxu0
        %1537 = vdwg.mxu0
        %1538 = vmatpush.bf16.msra.mxu0 %v1364
        %1539 = vmatpush.bf16.msra.mxu0 %v1356
        %1540 = vmatpush.bf16.msra.mxu0 %v1348
        %1541 = vmatpush.bf16.msra.mxu0 %v1340
        %1542 = vmatpush.bf16.msra.mxu0 %v1332
        %1543 = vmatpush.bf16.msra.mxu0 %v1324
        %1544 = vmatpush.bf16.msra.mxu0 %v1316
        %1545 = vmatpush.bf16.msra.mxu0 %v1308
        %1546 = vmatmul.bf16.gmra.mxu0 0
        %v1547 = vpop.f32.mrf.mxu0
        %v1548 = vadd.f32 %v1535, %v1547
        %v1549 = vpop.f32.mrf.mxu0
        %1550 = vdwg.mxu0
        %1551 = vmatpush.bf16.msra.mxu0 %v1301
        %1552 = vmatpush.bf16.msra.mxu0 %v1293
        %1553 = vmatpush.bf16.msra.mxu0 %v1285
        %1554 = vmatpush.bf16.msra.mxu0 %v1277
        %1555 = vmatpush.bf16.msra.mxu0 %v1269
        %1556 = vmatpush.bf16.msra.mxu0 %v1261
        %1557 = vmatpush.bf16.msra.mxu0 %v1253
        %1558 = vmatpush.bf16.msra.mxu0 %v1245
        %1559 = vmatmul.bf16.gmra.mxu0 0
        %v1560 = vpop.f32.mrf.mxu0
        %v1561 = vadd.f32 0.0, %v1560
        %v1562 = vpop.f32.mrf.mxu0
        %1563 = vdwg.mxu0
        %1564 = vmatpush.bf16.msra.mxu0 %v1365
        %1565 = vmatpush.bf16.msra.mxu0 %v1357
        %1566 = vmatpush.bf16.msra.mxu0 %v1349
        %1567 = vmatpush.bf16.msra.mxu0 %v1341
        %1568 = vmatpush.bf16.msra.mxu0 %v1333
        %1569 = vmatpush.bf16.msra.mxu0 %v1325
        %1570 = vmatpush.bf16.msra.mxu0 %v1317
        %1571 = vmatpush.bf16.msra.mxu0 %v1309
        %1572 = vmatmul.bf16.gmra.mxu0 0
        %v1573 = vpop.f32.mrf.mxu0
        %v1574 = vadd.f32 %v1561, %v1573
        %v1575 = vpop.f32.mrf.mxu0
        %1576 = vdwg.mxu0
        %1577 = vmatpush.bf16.msra.mxu0 %v1302
        %1578 = vmatpush.bf16.msra.mxu0 %v1294
        %1579 = vmatpush.bf16.msra.mxu0 %v1286
        %1580 = vmatpush.bf16.msra.mxu0 %v1278
        %1581 = vmatpush.bf16.msra.mxu0 %v1270
        %1582 = vmatpush.bf16.msra.mxu0 %v1262
        %1583 = vmatpush.bf16.msra.mxu0 %v1254
        %1584 = vmatpush.bf16.msra.mxu0 %v1246
        %1585 = vmatmul.bf16.gmra.mxu0 0
        %v1586 = vpop.f32.mrf.mxu0
        %v1587 = vadd.f32 0.0, %v1586
        %v1588 = vpop.f32.mrf.mxu0
        %1589 = vdwg.mxu0
        %1590 = vmatpush.bf16.msra.mxu0 %v1366
        %1591 = vmatpush.bf16.msra.mxu0 %v1358
        %1592 = vmatpush.bf16.msra.mxu0 %v1350
        %1593 = vmatpush.bf16.msra.mxu0 %v1342
        %1594 = vmatpush.bf16.msra.mxu0 %v1334
        %1595 = vmatpush.bf16.msra.mxu0 %v1326
        %1596 = vmatpush.bf16.msra.mxu0 %v1318
        %1597 = vmatpush.bf16.msra.mxu0 %v1310
        %1598 = vmatmul.bf16.gmra.mxu0 0
        %v1599 = vpop.f32.mrf.mxu0
        %v1600 = vadd.f32 %v1587, %v1599
        %v1601 = vpop.f32.mrf.mxu0
        %1602 = vdwg.mxu0
        %1603 = vmatpush.bf16.msra.mxu0 %v1303
        %1604 = vmatpush.bf16.msra.mxu0 %v1295
        %1605 = vmatpush.bf16.msra.mxu0 %v1287
        %1606 = vmatpush.bf16.msra.mxu0 %v1279
        %1607 = vmatpush.bf16.msra.mxu0 %v1271
        %1608 = vmatpush.bf16.msra.mxu0 %v1263
        %1609 = vmatpush.bf16.msra.mxu0 %v1255
        %1610 = vmatpush.bf16.msra.mxu0 %v1247
        %1611 = vmatmul.bf16.gmra.mxu0 0
        %v1612 = vpop.f32.mrf.mxu0
        %v1613 = vadd.f32 0.0, %v1612
        %v1614 = vpop.f32.mrf.mxu0
        %1615 = vdwg.mxu0
        %1616 = vmatpush.bf16.msra.mxu0 %v1367
        %1617 = vmatpush.bf16.msra.mxu0 %v1359
        %1618 = vmatpush.bf16.msra.mxu0 %v1351
        %1619 = vmatpush.bf16.msra.mxu0 %v1343
        %1620 = vmatpush.bf16.msra.mxu0 %v1335
        %1621 = vmatpush.bf16.msra.mxu0 %v1327
        %1622 = vmatpush.bf16.msra.mxu0 %v1319
        %1623 = vmatpush.bf16.msra.mxu0 %v1311
        %1624 = vmatmul.bf16.gmra.mxu0 0
        %v1625 = vpop.f32.mrf.mxu0
        %v1626 = vadd.f32 %v1613, %v1625
        %v1627 = vpop.f32.mrf.mxu0
        %1628 = vdwg.mxu0
        %1629 = vmatpush.bf16.msra.mxu0 %v1304
        %1630 = vmatpush.bf16.msra.mxu0 %v1296
        %1631 = vmatpush.bf16.msra.mxu0 %v1288
        %1632 = vmatpush.bf16.msra.mxu0 %v1280
        %1633 = vmatpush.bf16.msra.mxu0 %v1272
        %1634 = vmatpush.bf16.msra.mxu0 %v1264
        %1635 = vmatpush.bf16.msra.mxu0 %v1256
        %1636 = vmatpush.bf16.msra.mxu0 %v1248
        %1637 = vmatmul.bf16.gmra.mxu0 0
        %v1638 = vpop.f32.mrf.mxu0
        %v1639 = vadd.f32 0.0, %v1638
        %v1640 = vpop.f32.mrf.mxu0
        %1641 = vdwg.mxu0
        %1642 = vmatpush.bf16.msra.mxu0 %v1368
        %1643 = vmatpush.bf16.msra.mxu0 %v1360
        %1644 = vmatpush.bf16.msra.mxu0 %v1352
        %1645 = vmatpush.bf16.msra.mxu0 %v1344
        %1646 = vmatpush.bf16.msra.mxu0 %v1336
        %1647 = vmatpush.bf16.msra.mxu0 %v1328
        %1648 = vmatpush.bf16.msra.mxu0 %v1320
        %1649 = vmatpush.bf16.msra.mxu0 %v1312
        %1650 = vmatmul.bf16.gmra.mxu0 0
        %v1651 = vpop.f32.mrf.mxu0
        %v1652 = vadd.f32 %v1639, %v1651
        %v1653 = vpop.f32.mrf.mxu0
        %1654 = vdwg.mxu0
        %1655 = vmatpush.bf16.msra.mxu0 %v1305
        %1656 = vmatpush.bf16.msra.mxu0 %v1297
        %1657 = vmatpush.bf16.msra.mxu0 %v1289
        %1658 = vmatpush.bf16.msra.mxu0 %v1281
        %1659 = vmatpush.bf16.msra.mxu0 %v1273
        %1660 = vmatpush.bf16.msra.mxu0 %v1265
        %1661 = vmatpush.bf16.msra.mxu0 %v1257
        %1662 = vmatpush.bf16.msra.mxu0 %v1249
        %1663 = vmatmul.bf16.gmra.mxu0 0
        %v1664 = vpop.f32.mrf.mxu0
        %v1665 = vadd.f32 0.0, %v1664
        %v1666 = vpop.f32.mrf.mxu0
        %1667 = vdwg.mxu0
        %1668 = vmatpush.bf16.msra.mxu0 %v1369
        %1669 = vmatpush.bf16.msra.mxu0 %v1361
        %1670 = vmatpush.bf16.msra.mxu0 %v1353
        %1671 = vmatpush.bf16.msra.mxu0 %v1345
        %1672 = vmatpush.bf16.msra.mxu0 %v1337
        %1673 = vmatpush.bf16.msra.mxu0 %v1329
        %1674 = vmatpush.bf16.msra.mxu0 %v1321
        %1675 = vmatpush.bf16.msra.mxu0 %v1313
        %1676 = vmatmul.bf16.gmra.mxu0 0
        %v1677 = vpop.f32.mrf.mxu0
        %v1678 = vadd.f32 %v1665, %v1677
        %v1679 = vpop.f32.mrf.mxu0
        %1680 = vdwg.mxu0
        %1681 = vmatpush.bf16.msra.mxu0 %v1306
        %1682 = vmatpush.bf16.msra.mxu0 %v1298
        %1683 = vmatpush.bf16.msra.mxu0 %v1290
        %1684 = vmatpush.bf16.msra.mxu0 %v1282
        %1685 = vmatpush.bf16.msra.mxu0 %v1274
        %1686 = vmatpush.bf16.msra.mxu0 %v1266
        %1687 = vmatpush.bf16.msra.mxu0 %v1258
        %1688 = vmatpush.bf16.msra.mxu0 %v1250
        %1689 = vmatmul.bf16.gmra.mxu0 0
        %v1690 = vpop.f32.mrf.mxu0
        %v1691 = vadd.f32 0.0, %v1690
        %v1692 = vpop.f32.mrf.mxu0
        %1693 = vdwg.mxu0
        %1694 = vmatpush.bf16.msra.mxu0 %v1370
        %1695 = vmatpush.bf16.msra.mxu0 %v1362
        %1696 = vmatpush.bf16.msra.mxu0 %v1354
        %1697 = vmatpush.bf16.msra.mxu0 %v1346
        %1698 = vmatpush.bf16.msra.mxu0 %v1338
        %1699 = vmatpush.bf16.msra.mxu0 %v1330
        %1700 = vmatpush.bf16.msra.mxu0 %v1322
        %1701 = vmatpush.bf16.msra.mxu0 %v1314
        %1702 = vmatmul.bf16.gmra.mxu0 0
        %v1703 = vpop.f32.mrf.mxu0
        %v1704 = vadd.f32 %v1691, %v1703
        %v1705 = vpop.f32.mrf.mxu0
        %1706 = vdwg.mxu0
        %v1707 = vadd.f32 %v851, %v1522
        %v1708 = vadd.f32 %v852, %v1548
        %v1709 = vadd.f32 %v853, %v1574
        %v1710 = vadd.f32 %v854, %v1600
        %v1711 = vadd.f32 %v855, %v1626
        %v1712 = vadd.f32 %v856, %v1652
        %v1713 = vadd.f32 %v857, %v1678
        %v1714 = vadd.f32 %v858, %v1704
        %v1715 = vxor.u32 %v1707, 2147483648
        %v1716 = vxor.u32 %v1708, 2147483648
        %v1717 = vmul.f32 %v1715, 1.442695
        %v1718 = vpow.pop %v1717
        %v1719 = vmul.f32 %v1716, 1.442695
        %v1720 = vpow.pop %v1719
        %v1721 = vadd.f32 %v1718, 1.0
        %v1722 = vadd.f32 %v1720, 1.0
        %v1723 = vrcp.pop %v1721
        %v1724 = vmul.f32 %v1721, %v1723
        %v1725 = vsub.f32 1.0, %v1724
        %v1726 = vmul.f32 %v1723, %v1725
        %v1727 = vadd.f32 %v1723, %v1726
        %vm1728 = vweird.f32 %v1721
        %vm1729 = vweird.f32 %v1723
        %vm1730 = vmor %vm1728, %vm1729
        %v1731 = vsel %vm1730, %v1723, %v1727
        %v1732 = vand.u32 2147483647, %v1721
        %vm1733 = vcmp.eq.f32.partialorder %v1732, 8.507059e+37
        %v1734 = vand.u32 %v1721, 2147483648
        %v1735 = vor.u32 1.1754944e-38, %v1734
        %v1736 = vsel %vm1733, %v1735, %v1731
        %v1737 = vmul.f32 1.0, %v1736
        %v1738 = vrcp.pop %v1722
        %v1739 = vmul.f32 %v1722, %v1738
        %v1740 = vsub.f32 1.0, %v1739
        %v1741 = vmul.f32 %v1738, %v1740
        %v1742 = vadd.f32 %v1738, %v1741
        %vm1743 = vweird.f32 %v1722
        %vm1744 = vweird.f32 %v1738
        %vm1745 = vmor %vm1743, %vm1744
        %v1746 = vsel %vm1745, %v1738, %v1742
        %v1747 = vand.u32 2147483647, %v1722
        %vm1748 = vcmp.eq.f32.partialorder %v1747, 8.507059e+37
        %v1749 = vand.u32 %v1722, 2147483648
        %v1750 = vor.u32 1.1754944e-38, %v1749
        %v1751 = vsel %vm1748, %v1750, %v1746
        %v1752 = vmul.f32 1.0, %v1751
        %v1753 = vxor.u32 %v1709, 2147483648
        %v1754 = vxor.u32 %v1710, 2147483648
        %v1755 = vmul.f32 %v1753, 1.442695
        %v1756 = vpow.pop %v1755
        %v1757 = vmul.f32 %v1754, 1.442695
        %v1758 = vpow.pop %v1757
        %v1759 = vadd.f32 %v1756, 1.0
        %v1760 = vadd.f32 %v1758, 1.0
        %v1761 = vrcp.pop %v1759
        %v1762 = vmul.f32 %v1759, %v1761
        %v1763 = vsub.f32 1.0, %v1762
        %v1764 = vmul.f32 %v1761, %v1763
        %v1765 = vadd.f32 %v1761, %v1764
        %vm1766 = vweird.f32 %v1759
        %vm1767 = vweird.f32 %v1761
        %vm1768 = vmor %vm1766, %vm1767
        %v1769 = vsel %vm1768, %v1761, %v1765
        %v1770 = vand.u32 2147483647, %v1759
        %vm1771 = vcmp.eq.f32.partialorder %v1770, 8.507059e+37
        %v1772 = vand.u32 %v1759, 2147483648
        %v1773 = vor.u32 1.1754944e-38, %v1772
        %v1774 = vsel %vm1771, %v1773, %v1769
        %v1775 = vmul.f32 1.0, %v1774
        %v1776 = vrcp.pop %v1760
        %v1777 = vmul.f32 %v1760, %v1776
        %v1778 = vsub.f32 1.0, %v1777
        %v1779 = vmul.f32 %v1776, %v1778
        %v1780 = vadd.f32 %v1776, %v1779
        %vm1781 = vweird.f32 %v1760
        %vm1782 = vweird.f32 %v1776
        %vm1783 = vmor %vm1781, %vm1782
        %v1784 = vsel %vm1783, %v1776, %v1780
        %v1785 = vand.u32 2147483647, %v1760
        %vm1786 = vcmp.eq.f32.partialorder %v1785, 8.507059e+37
        %v1787 = vand.u32 %v1760, 2147483648
        %v1788 = vor.u32 1.1754944e-38, %v1787
        %v1789 = vsel %vm1786, %v1788, %v1784
        %v1790 = vmul.f32 1.0, %v1789
        %v1791 = vtanh.pop %v1711
        %v1792 = vtanh.pop %v1712
        %v1793 = vxor.u32 %v1713, 2147483648
        %v1794 = vxor.u32 %v1714, 2147483648
        %v1795 = vmul.f32 %v1793, 1.442695
        %v1796 = vpow.pop %v1795
        %v1797 = vmul.f32 %v1794, 1.442695
        %v1798 = vpow.pop %v1797
        %v1799 = vadd.f32 %v1796, 1.0
        %v1800 = vadd.f32 %v1798, 1.0
        %v1801 = vrcp.pop %v1799
        %v1802 = vmul.f32 %v1799, %v1801
        %v1803 = vsub.f32 1.0, %v1802
        %v1804 = vmul.f32 %v1801, %v1803
        %v1805 = vadd.f32 %v1801, %v1804
        %vm1806 = vweird.f32 %v1799
        %vm1807 = vweird.f32 %v1801
        %vm1808 = vmor %vm1806, %vm1807
        %v1809 = vsel %vm1808, %v1801, %v1805
        %v1810 = vand.u32 2147483647, %v1799
        %vm1811 = vcmp.eq.f32.partialorder %v1810, 8.507059e+37
        %v1812 = vand.u32 %v1799, 2147483648
        %v1813 = vor.u32 1.1754944e-38, %v1812
        %v1814 = vsel %vm1811, %v1813, %v1809
        %v1815 = vmul.f32 1.0, %v1814
        %v1816 = vrcp.pop %v1800
        %v1817 = vmul.f32 %v1800, %v1816
        %v1818 = vsub.f32 1.0, %v1817
        %v1819 = vmul.f32 %v1816, %v1818
        %v1820 = vadd.f32 %v1816, %v1819
        %vm1821 = vweird.f32 %v1800
        %vm1822 = vweird.f32 %v1816
        %vm1823 = vmor %vm1821, %vm1822
        %v1824 = vsel %vm1823, %v1816, %v1820
        %v1825 = vand.u32 2147483647, %v1800
        %vm1826 = vcmp.eq.f32.partialorder %v1825, 8.507059e+37
        %v1827 = vand.u32 %v1800, 2147483648
        %v1828 = vor.u32 1.1754944e-38, %v1827
        %v1829 = vsel %vm1826, %v1828, %v1824
        %v1830 = vmul.f32 1.0, %v1829
        %v1831 = vmul.f32 %v1775, 0.0
        %v1832 = vmul.f32 %v1790, 0.0
        %v1833 = vmul.f32 %v1737, %v1791
        %v1834 = vmul.f32 %v1752, %v1792
        %v1835 = vadd.f32 %v1831, %v1833
        %v1836 = vadd.f32 %v1832, %v1834
        %v1837 = vtanh.pop %v1835
        %v1838 = vtanh.pop %v1836
        %v1839 = vmul.f32 %v1815, %v1837
        %v1840 = vmul.f32 %v1830, %v1838
        %s1841 = smul.u32 %s25, 2
        %s1842 = ssub.s32 1, %s1841
        %s1843 = sadd.s32 %s792, %s1842
        %s1844 = sshra.s32 %s1843, 3
        %s1845 = sand.u32 %s1843, 7
        %s1846 = sshra.s32 %s1843, 3
        %s1847 = sand.u32 %s1843, 7
        %s1848 = smul.u32 %s1844, 8
        %s1849 = smul.u32 %s1848, 8
        %s1850 = sadd.s32 %s1849, %s1847
        %s1851 = scalar_lea.vmem [#allocation2], %s1850
        %v1852 = vld [vmem:[%s1851] ss:$8 sm:$0xf]
        %v1853 = vld [vmem:[%s1851] ss:$8 sm:$0xf0]
        %v1854 = vor.u32 %v1852, %v1853
        %s1855 = sadd.s32 %s1843, 8
        %s1856 = sshra.s32 %s1855, 3
        %s1857 = sand.u32 %s1855, 7
        %s1858 = sshra.s32 %s1855, 3
        %s1859 = sand.u32 %s1855, 7
        %s1860 = smul.u32 %s1856, 8
        %s1861 = smul.u32 %s1860, 8
        %s1862 = sadd.s32 %s1861, %s1859
        %s1863 = scalar_lea.vmem [#allocation2], %s1862
        %v1864 = vld [vmem:[%s1863] ss:$8 sm:$0xf]
        %v1865 = vld [vmem:[%s1863] ss:$8 sm:$0xf0]
        %v1866 = vor.u32 %v1864, %v1865
        %v1868 = vperm.slane %v1854, 0
        %v1869 = vperm.slane %v1854, 1
        %v1870 = vperm.slane %v1854, 2
        %v1871 = vperm.slane %v1854, 3
        %v1872 = vperm.slane %v1854, 4
        %v1873 = vperm.slane %v1854, 5
        %v1874 = vperm.slane %v1854, 6
        %v1875 = vperm.slane %v1854, 7
        %v1885 = vperm.slane %v1866, 0
        %v1886 = vperm.slane %v1866, 1
        %v1887 = vperm.slane %v1866, 2
        %v1888 = vperm.slane %v1866, 3
        %v1889 = vperm.slane %v1866, 4
        %v1890 = vperm.slane %v1866, 5
        %v1891 = vperm.slane %v1866, 6
        %v1892 = vperm.slane %v1866, 7
        %v1901 = vsel %vm850, %v1868, %v1885
        %v1902 = vsel %vm850, %v1869, %v1886
        %v1903 = vsel %vm850, %v1870, %v1887
        %v1904 = vsel %vm850, %v1871, %v1888
        %v1905 = vsel %vm850, %v1872, %v1889
        %v1906 = vsel %vm850, %v1873, %v1890
        %v1907 = vsel %vm850, %v1874, %v1891
        %v1908 = vsel %vm850, %v1875, %v1892
        %v1909 = vpack.c.bf16 %v1839, %v1839
        %v1910 = vpack.c.bf16 %v1840, %v1840
        %1911 = vmatpush.bf16.msra.mxu0 %v1299
        %1912 = vmatpush.bf16.msra.mxu0 %v1291
        %1913 = vmatpush.bf16.msra.mxu0 %v1283
        %1914 = vmatpush.bf16.msra.mxu0 %v1275
        %1915 = vmatpush.bf16.msra.mxu0 %v1267
        %1916 = vmatpush.bf16.msra.mxu0 %v1259
        %1917 = vmatpush.bf16.msra.mxu0 %v1251
        %1918 = vmatpush.bf16.msra.mxu0 %v1243
        %1919 = vmatmul.bf16.gmra.mxu0 %v1909
        %v1920 = vpop.f32.mrf.mxu0
        %v1921 = vadd.f32 0.0, %v1920
        %v1922 = vpop.f32.mrf.mxu0
        %1923 = vdwg.mxu0
        %1924 = vmatpush.bf16.msra.mxu0 %v1363
        %1925 = vmatpush.bf16.msra.mxu0 %v1355
        %1926 = vmatpush.bf16.msra.mxu0 %v1347
        %1927 = vmatpush.bf16.msra.mxu0 %v1339
        %1928 = vmatpush.bf16.msra.mxu0 %v1331
        %1929 = vmatpush.bf16.msra.mxu0 %v1323
        %1930 = vmatpush.bf16.msra.mxu0 %v1315
        %1931 = vmatpush.bf16.msra.mxu0 %v1307
        %1932 = vmatmul.bf16.gmra.mxu0 %v1910
        %v1933 = vpop.f32.mrf.mxu0
        %v1934 = vadd.f32 %v1921, %v1933
        %v1935 = vpop.f32.mrf.mxu0
        %1936 = vdwg.mxu0
        %1937 = vmatpush.bf16.msra.mxu0 %v1300
        %1938 = vmatpush.bf16.msra.mxu0 %v1292
        %1939 = vmatpush.bf16.msra.mxu0 %v1284
        %1940 = vmatpush.bf16.msra.mxu0 %v1276
        %1941 = vmatpush.bf16.msra.mxu0 %v1268
        %1942 = vmatpush.bf16.msra.mxu0 %v1260
        %1943 = vmatpush.bf16.msra.mxu0 %v1252
        %1944 = vmatpush.bf16.msra.mxu0 %v1244
        %1945 = vmatmul.bf16.gmra.mxu0 %v1909
        %v1946 = vpop.f32.mrf.mxu0
        %v1947 = vadd.f32 0.0, %v1946
        %v1948 = vpop.f32.mrf.mxu0
        %1949 = vdwg.mxu0
        %1950 = vmatpush.bf16.msra.mxu0 %v1364
        %1951 = vmatpush.bf16.msra.mxu0 %v1356
        %1952 = vmatpush.bf16.msra.mxu0 %v1348
        %1953 = vmatpush.bf16.msra.mxu0 %v1340
        %1954 = vmatpush.bf16.msra.mxu0 %v1332
        %1955 = vmatpush.bf16.msra.mxu0 %v1324
        %1956 = vmatpush.bf16.msra.mxu0 %v1316
        %1957 = vmatpush.bf16.msra.mxu0 %v1308
        %1958 = vmatmul.bf16.gmra.mxu0 %v1910
        %v1959 = vpop.f32.mrf.mxu0
        %v1960 = vadd.f32 %v1947, %v1959
        %v1961 = vpop.f32.mrf.mxu0
        %1962 = vdwg.mxu0
        %1963 = vmatpush.bf16.msra.mxu0 %v1301
        %1964 = vmatpush.bf16.msra.mxu0 %v1293
        %1965 = vmatpush.bf16.msra.mxu0 %v1285
        %1966 = vmatpush.bf16.msra.mxu0 %v1277
        %1967 = vmatpush.bf16.msra.mxu0 %v1269
        %1968 = vmatpush.bf16.msra.mxu0 %v1261
        %1969 = vmatpush.bf16.msra.mxu0 %v1253
        %1970 = vmatpush.bf16.msra.mxu0 %v1245
        %1971 = vmatmul.bf16.gmra.mxu0 %v1909
        %v1972 = vpop.f32.mrf.mxu0
        %v1973 = vadd.f32 0.0, %v1972
        %v1974 = vpop.f32.mrf.mxu0
        %1975 = vdwg.mxu0
        %1976 = vmatpush.bf16.msra.mxu0 %v1365
        %1977 = vmatpush.bf16.msra.mxu0 %v1357
        %1978 = vmatpush.bf16.msra.mxu0 %v1349
        %1979 = vmatpush.bf16.msra.mxu0 %v1341
        %1980 = vmatpush.bf16.msra.mxu0 %v1333
        %1981 = vmatpush.bf16.msra.mxu0 %v1325
        %1982 = vmatpush.bf16.msra.mxu0 %v1317
        %1983 = vmatpush.bf16.msra.mxu0 %v1309
        %1984 = vmatmul.bf16.gmra.mxu0 %v1910
        %v1985 = vpop.f32.mrf.mxu0
        %v1986 = vadd.f32 %v1973, %v1985
        %v1987 = vpop.f32.mrf.mxu0
        %1988 = vdwg.mxu0
        %1989 = vmatpush.bf16.msra.mxu0 %v1302
        %1990 = vmatpush.bf16.msra.mxu0 %v1294
        %1991 = vmatpush.bf16.msra.mxu0 %v1286
        %1992 = vmatpush.bf16.msra.mxu0 %v1278
        %1993 = vmatpush.bf16.msra.mxu0 %v1270
        %1994 = vmatpush.bf16.msra.mxu0 %v1262
        %1995 = vmatpush.bf16.msra.mxu0 %v1254
        %1996 = vmatpush.bf16.msra.mxu0 %v1246
        %1997 = vmatmul.bf16.gmra.mxu0 %v1909
        %v1998 = vpop.f32.mrf.mxu0
        %v1999 = vadd.f32 0.0, %v1998
        %v2000 = vpop.f32.mrf.mxu0
        %2001 = vdwg.mxu0
        %2002 = vmatpush.bf16.msra.mxu0 %v1366
        %2003 = vmatpush.bf16.msra.mxu0 %v1358
        %2004 = vmatpush.bf16.msra.mxu0 %v1350
        %2005 = vmatpush.bf16.msra.mxu0 %v1342
        %2006 = vmatpush.bf16.msra.mxu0 %v1334
        %2007 = vmatpush.bf16.msra.mxu0 %v1326
        %2008 = vmatpush.bf16.msra.mxu0 %v1318
        %2009 = vmatpush.bf16.msra.mxu0 %v1310
        %2010 = vmatmul.bf16.gmra.mxu0 %v1910
        %v2011 = vpop.f32.mrf.mxu0
        %v2012 = vadd.f32 %v1999, %v2011
        %v2013 = vpop.f32.mrf.mxu0
        %2014 = vdwg.mxu0
        %2015 = vmatpush.bf16.msra.mxu0 %v1303
        %2016 = vmatpush.bf16.msra.mxu0 %v1295
        %2017 = vmatpush.bf16.msra.mxu0 %v1287
        %2018 = vmatpush.bf16.msra.mxu0 %v1279
        %2019 = vmatpush.bf16.msra.mxu0 %v1271
        %2020 = vmatpush.bf16.msra.mxu0 %v1263
        %2021 = vmatpush.bf16.msra.mxu0 %v1255
        %2022 = vmatpush.bf16.msra.mxu0 %v1247
        %2023 = vmatmul.bf16.gmra.mxu0 %v1909
        %v2024 = vpop.f32.mrf.mxu0
        %v2025 = vadd.f32 0.0, %v2024
        %v2026 = vpop.f32.mrf.mxu0
        %2027 = vdwg.mxu0
        %2028 = vmatpush.bf16.msra.mxu0 %v1367
        %2029 = vmatpush.bf16.msra.mxu0 %v1359
        %2030 = vmatpush.bf16.msra.mxu0 %v1351
        %2031 = vmatpush.bf16.msra.mxu0 %v1343
        %2032 = vmatpush.bf16.msra.mxu0 %v1335
        %2033 = vmatpush.bf16.msra.mxu0 %v1327
        %2034 = vmatpush.bf16.msra.mxu0 %v1319
        %2035 = vmatpush.bf16.msra.mxu0 %v1311
        %2036 = vmatmul.bf16.gmra.mxu0 %v1910
        %v2037 = vpop.f32.mrf.mxu0
        %v2038 = vadd.f32 %v2025, %v2037
        %v2039 = vpop.f32.mrf.mxu0
        %2040 = vdwg.mxu0
        %2041 = vmatpush.bf16.msra.mxu0 %v1304
        %2042 = vmatpush.bf16.msra.mxu0 %v1296
        %2043 = vmatpush.bf16.msra.mxu0 %v1288
        %2044 = vmatpush.bf16.msra.mxu0 %v1280
        %2045 = vmatpush.bf16.msra.mxu0 %v1272
        %2046 = vmatpush.bf16.msra.mxu0 %v1264
        %2047 = vmatpush.bf16.msra.mxu0 %v1256
        %2048 = vmatpush.bf16.msra.mxu0 %v1248
        %2049 = vmatmul.bf16.gmra.mxu0 %v1909
        %v2050 = vpop.f32.mrf.mxu0
        %v2051 = vadd.f32 0.0, %v2050
        %v2052 = vpop.f32.mrf.mxu0
        %2053 = vdwg.mxu0
        %2054 = vmatpush.bf16.msra.mxu0 %v1368
        %2055 = vmatpush.bf16.msra.mxu0 %v1360
        %2056 = vmatpush.bf16.msra.mxu0 %v1352
        %2057 = vmatpush.bf16.msra.mxu0 %v1344
        %2058 = vmatpush.bf16.msra.mxu0 %v1336
        %2059 = vmatpush.bf16.msra.mxu0 %v1328
        %2060 = vmatpush.bf16.msra.mxu0 %v1320
        %2061 = vmatpush.bf16.msra.mxu0 %v1312
        %2062 = vmatmul.bf16.gmra.mxu0 %v1910
        %v2063 = vpop.f32.mrf.mxu0
        %v2064 = vadd.f32 %v2051, %v2063
        %v2065 = vpop.f32.mrf.mxu0
        %2066 = vdwg.mxu0
        %2067 = vmatpush.bf16.msra.mxu0 %v1305
        %2068 = vmatpush.bf16.msra.mxu0 %v1297
        %2069 = vmatpush.bf16.msra.mxu0 %v1289
        %2070 = vmatpush.bf16.msra.mxu0 %v1281
        %2071 = vmatpush.bf16.msra.mxu0 %v1273
        %2072 = vmatpush.bf16.msra.mxu0 %v1265
        %2073 = vmatpush.bf16.msra.mxu0 %v1257
        %2074 = vmatpush.bf16.msra.mxu0 %v1249
        %2075 = vmatmul.bf16.gmra.mxu0 %v1909
        %v2076 = vpop.f32.mrf.mxu0
        %v2077 = vadd.f32 0.0, %v2076
        %v2078 = vpop.f32.mrf.mxu0
        %2079 = vdwg.mxu0
        %2080 = vmatpush.bf16.msra.mxu0 %v1369
        %2081 = vmatpush.bf16.msra.mxu0 %v1361
        %2082 = vmatpush.bf16.msra.mxu0 %v1353
        %2083 = vmatpush.bf16.msra.mxu0 %v1345
        %2084 = vmatpush.bf16.msra.mxu0 %v1337
        %2085 = vmatpush.bf16.msra.mxu0 %v1329
        %2086 = vmatpush.bf16.msra.mxu0 %v1321
        %2087 = vmatpush.bf16.msra.mxu0 %v1313
        %2088 = vmatmul.bf16.gmra.mxu0 %v1910
        %v2089 = vpop.f32.mrf.mxu0
        %v2090 = vadd.f32 %v2077, %v2089
        %v2091 = vpop.f32.mrf.mxu0
        %2092 = vdwg.mxu0
        %2093 = vmatpush.bf16.msra.mxu0 %v1306
        %2094 = vmatpush.bf16.msra.mxu0 %v1298
        %2095 = vmatpush.bf16.msra.mxu0 %v1290
        %2096 = vmatpush.bf16.msra.mxu0 %v1282
        %2097 = vmatpush.bf16.msra.mxu0 %v1274
        %2098 = vmatpush.bf16.msra.mxu0 %v1266
        %2099 = vmatpush.bf16.msra.mxu0 %v1258
        %2100 = vmatpush.bf16.msra.mxu0 %v1250
        %2101 = vmatmul.bf16.gmra.mxu0 %v1909
        %v2102 = vpop.f32.mrf.mxu0
        %v2103 = vadd.f32 0.0, %v2102
        %v2104 = vpop.f32.mrf.mxu0
        %2105 = vdwg.mxu0
        %2106 = vmatpush.bf16.msra.mxu0 %v1370
        %2107 = vmatpush.bf16.msra.mxu0 %v1362
        %2108 = vmatpush.bf16.msra.mxu0 %v1354
        %2109 = vmatpush.bf16.msra.mxu0 %v1346
        %2110 = vmatpush.bf16.msra.mxu0 %v1338
        %2111 = vmatpush.bf16.msra.mxu0 %v1330
        %2112 = vmatpush.bf16.msra.mxu0 %v1322
        %2113 = vmatpush.bf16.msra.mxu0 %v1314
        %2114 = vmatmul.bf16.gmra.mxu0 %v1910
        %v2115 = vpop.f32.mrf.mxu0
        %v2116 = vadd.f32 %v2103, %v2115
        %v2117 = vpop.f32.mrf.mxu0
        %2118 = vdwg.mxu0
        %v2119 = vadd.f32 %v1901, %v1934
        %v2120 = vadd.f32 %v1902, %v1960
        %v2121 = vadd.f32 %v1903, %v1986
        %v2122 = vadd.f32 %v1904, %v2012
        %v2123 = vadd.f32 %v1905, %v2038
        %v2124 = vadd.f32 %v1906, %v2064
        %v2125 = vadd.f32 %v1907, %v2090
        %v2126 = vadd.f32 %v1908, %v2116
        %v2127 = vxor.u32 %v2119, 2147483648
        %v2128 = vxor.u32 %v2120, 2147483648
        %v2129 = vmul.f32 %v2127, 1.442695
        %v2130 = vpow.pop %v2129
        %v2131 = vmul.f32 %v2128, 1.442695
        %v2132 = vpow.pop %v2131
        %v2133 = vadd.f32 %v2130, 1.0
        %v2134 = vadd.f32 %v2132, 1.0
        %v2135 = vrcp.pop %v2133
        %v2136 = vmul.f32 %v2133, %v2135
        %v2137 = vsub.f32 1.0, %v2136
        %v2138 = vmul.f32 %v2135, %v2137
        %v2139 = vadd.f32 %v2135, %v2138
        %vm2140 = vweird.f32 %v2133
        %vm2141 = vweird.f32 %v2135
        %vm2142 = vmor %vm2140, %vm2141
        %v2143 = vsel %vm2142, %v2135, %v2139
        %v2144 = vand.u32 2147483647, %v2133
        %vm2145 = vcmp.eq.f32.partialorder %v2144, 8.507059e+37
        %v2146 = vand.u32 %v2133, 2147483648
        %v2147 = vor.u32 1.1754944e-38, %v2146
        %v2148 = vsel %vm2145, %v2147, %v2143
        %v2149 = vmul.f32 1.0, %v2148
        %v2150 = vrcp.pop %v2134
        %v2151 = vmul.f32 %v2134, %v2150
        %v2152 = vsub.f32 1.0, %v2151
        %v2153 = vmul.f32 %v2150, %v2152
        %v2154 = vadd.f32 %v2150, %v2153
        %vm2155 = vweird.f32 %v2134
        %vm2156 = vweird.f32 %v2150
        %vm2157 = vmor %vm2155, %vm2156
        %v2158 = vsel %vm2157, %v2150, %v2154
        %v2159 = vand.u32 2147483647, %v2134
        %vm2160 = vcmp.eq.f32.partialorder %v2159, 8.507059e+37
        %v2161 = vand.u32 %v2134, 2147483648
        %v2162 = vor.u32 1.1754944e-38, %v2161
        %v2163 = vsel %vm2160, %v2162, %v2158
        %v2164 = vmul.f32 1.0, %v2163
        %v2165 = vxor.u32 %v2121, 2147483648
        %v2166 = vxor.u32 %v2122, 2147483648
        %v2167 = vmul.f32 %v2165, 1.442695
        %v2168 = vpow.pop %v2167
        %v2169 = vmul.f32 %v2166, 1.442695
        %v2170 = vpow.pop %v2169
        %v2171 = vadd.f32 %v2168, 1.0
        %v2172 = vadd.f32 %v2170, 1.0
        %v2173 = vrcp.pop %v2171
        %v2174 = vmul.f32 %v2171, %v2173
        %v2175 = vsub.f32 1.0, %v2174
        %v2176 = vmul.f32 %v2173, %v2175
        %v2177 = vadd.f32 %v2173, %v2176
        %vm2178 = vweird.f32 %v2171
        %vm2179 = vweird.f32 %v2173
        %vm2180 = vmor %vm2178, %vm2179
        %v2181 = vsel %vm2180, %v2173, %v2177
        %v2182 = vand.u32 2147483647, %v2171
        %vm2183 = vcmp.eq.f32.partialorder %v2182, 8.507059e+37
        %v2184 = vand.u32 %v2171, 2147483648
        %v2185 = vor.u32 1.1754944e-38, %v2184
        %v2186 = vsel %vm2183, %v2185, %v2181
        %v2187 = vmul.f32 1.0, %v2186
        %v2188 = vrcp.pop %v2172
        %v2189 = vmul.f32 %v2172, %v2188
        %v2190 = vsub.f32 1.0, %v2189
        %v2191 = vmul.f32 %v2188, %v2190
        %v2192 = vadd.f32 %v2188, %v2191
        %vm2193 = vweird.f32 %v2172
        %vm2194 = vweird.f32 %v2188
        %vm2195 = vmor %vm2193, %vm2194
        %v2196 = vsel %vm2195, %v2188, %v2192
        %v2197 = vand.u32 2147483647, %v2172
        %vm2198 = vcmp.eq.f32.partialorder %v2197, 8.507059e+37
        %v2199 = vand.u32 %v2172, 2147483648
        %v2200 = vor.u32 1.1754944e-38, %v2199
        %v2201 = vsel %vm2198, %v2200, %v2196
        %v2202 = vmul.f32 1.0, %v2201
        %v2203 = vtanh.pop %v2123
        %v2204 = vtanh.pop %v2124
        %v2205 = vxor.u32 %v2125, 2147483648
        %v2206 = vxor.u32 %v2126, 2147483648
        %v2207 = vmul.f32 %v2205, 1.442695
        %v2208 = vpow.pop %v2207
        %v2209 = vmul.f32 %v2206, 1.442695
        %v2210 = vpow.pop %v2209
        %v2211 = vadd.f32 %v2208, 1.0
        %v2212 = vadd.f32 %v2210, 1.0
        %v2213 = vrcp.pop %v2211
        %v2214 = vmul.f32 %v2211, %v2213
        %v2215 = vsub.f32 1.0, %v2214
        %v2216 = vmul.f32 %v2213, %v2215
        %v2217 = vadd.f32 %v2213, %v2216
        %vm2218 = vweird.f32 %v2211
        %vm2219 = vweird.f32 %v2213
        %vm2220 = vmor %vm2218, %vm2219
        %v2221 = vsel %vm2220, %v2213, %v2217
        %v2222 = vand.u32 2147483647, %v2211
        %vm2223 = vcmp.eq.f32.partialorder %v2222, 8.507059e+37
        %v2224 = vand.u32 %v2211, 2147483648
        %v2225 = vor.u32 1.1754944e-38, %v2224
        %v2226 = vsel %vm2223, %v2225, %v2221
        %v2227 = vmul.f32 1.0, %v2226
        %v2228 = vrcp.pop %v2212
        %v2229 = vmul.f32 %v2212, %v2228
        %v2230 = vsub.f32 1.0, %v2229
        %v2231 = vmul.f32 %v2228, %v2230
        %v2232 = vadd.f32 %v2228, %v2231
        %vm2233 = vweird.f32 %v2212
        %vm2234 = vweird.f32 %v2228
        %vm2235 = vmor %vm2233, %vm2234
        %v2236 = vsel %vm2235, %v2228, %v2232
        %v2237 = vand.u32 2147483647, %v2212
        %vm2238 = vcmp.eq.f32.partialorder %v2237, 8.507059e+37
        %v2239 = vand.u32 %v2212, 2147483648
        %v2240 = vor.u32 1.1754944e-38, %v2239
        %v2241 = vsel %vm2238, %v2240, %v2236
        %v2242 = vmul.f32 1.0, %v2241
        %v2243 = vmul.f32 %v2187, %v1835
        %v2244 = vmul.f32 %v2202, %v1836
        %v2245 = vmul.f32 %v2149, %v2203
        %v2246 = vmul.f32 %v2164, %v2204
        %v2247 = vadd.f32 %v2243, %v2245
        %v2248 = vadd.f32 %v2244, %v2246
        %v2249 = vtanh.pop %v2247
        %v2250 = vtanh.pop %v2248
        %v2251 = vmul.f32 %v2227, %v2249
        %v2252 = vmul.f32 %v2242, %v2250
        %s2253 = smul.u32 %s1842, 2
        %s2254 = sadd.s32 %s792, %s2253
        %s2255 = sshra.s32 %s2254, 3
        %s2256 = sand.u32 %s2254, 7
        %s2257 = sshra.s32 %s2254, 3
        %s2258 = sand.u32 %s2254, 7
        %s2259 = smul.u32 %s2255, 8
        %s2260 = smul.u32 %s2259, 8
        %s2261 = sadd.s32 %s2260, %s2258
        %s2262 = scalar_lea.vmem [#allocation2], %s2261
        %v2263 = vld [vmem:[%s2262] ss:$8 sm:$0xf]
        %v2264 = vld [vmem:[%s2262] ss:$8 sm:$0xf0]
        %v2265 = vor.u32 %v2263, %v2264
        %s2266 = sadd.s32 %s2254, 8
        %s2267 = sshra.s32 %s2266, 3
        %s2268 = sand.u32 %s2266, 7
        %s2269 = sshra.s32 %s2266, 3
        %s2270 = sand.u32 %s2266, 7
        %s2271 = smul.u32 %s2267, 8
        %s2272 = smul.u32 %s2271, 8
        %s2273 = sadd.s32 %s2272, %s2270
        %s2274 = scalar_lea.vmem [#allocation2], %s2273
        %v2275 = vld [vmem:[%s2274] ss:$8 sm:$0xf]
        %v2276 = vld [vmem:[%s2274] ss:$8 sm:$0xf0]
        %v2277 = vor.u32 %v2275, %v2276
        %v2279 = vperm.slane %v2265, 0
        %v2280 = vperm.slane %v2265, 1
        %v2281 = vperm.slane %v2265, 2
        %v2282 = vperm.slane %v2265, 3
        %v2283 = vperm.slane %v2265, 4
        %v2284 = vperm.slane %v2265, 5
        %v2285 = vperm.slane %v2265, 6
        %v2286 = vperm.slane %v2265, 7
        %v2296 = vperm.slane %v2277, 0
        %v2297 = vperm.slane %v2277, 1
        %v2298 = vperm.slane %v2277, 2
        %v2299 = vperm.slane %v2277, 3
        %v2300 = vperm.slane %v2277, 4
        %v2301 = vperm.slane %v2277, 5
        %v2302 = vperm.slane %v2277, 6
        %v2303 = vperm.slane %v2277, 7
        %v2312 = vsel %vm850, %v2279, %v2296
        %v2313 = vsel %vm850, %v2280, %v2297
        %v2314 = vsel %vm850, %v2281, %v2298
        %v2315 = vsel %vm850, %v2282, %v2299
        %v2316 = vsel %vm850, %v2283, %v2300
        %v2317 = vsel %vm850, %v2284, %v2301
        %v2318 = vsel %vm850, %v2285, %v2302
        %v2319 = vsel %vm850, %v2286, %v2303
        %v2320 = vpack.c.bf16 %v2251, %v2251
        %v2321 = vpack.c.bf16 %v2252, %v2252
        %2322 = vmatpush.bf16.msra.mxu0 %v1299
        %2323 = vmatpush.bf16.msra.mxu0 %v1291
        %2324 = vmatpush.bf16.msra.mxu0 %v1283
        %2325 = vmatpush.bf16.msra.mxu0 %v1275
        %2326 = vmatpush.bf16.msra.mxu0 %v1267
        %2327 = vmatpush.bf16.msra.mxu0 %v1259
        %2328 = vmatpush.bf16.msra.mxu0 %v1251
        %2329 = vmatpush.bf16.msra.mxu0 %v1243
        %2330 = vmatmul.bf16.gmra.mxu0 %v2320
        %v2331 = vpop.f32.mrf.mxu0
        %v2332 = vadd.f32 0.0, %v2331
        %v2333 = vpop.f32.mrf.mxu0
        %2334 = vdwg.mxu0
        %2335 = vmatpush.bf16.msra.mxu0 %v1363
        %2336 = vmatpush.bf16.msra.mxu0 %v1355
        %2337 = vmatpush.bf16.msra.mxu0 %v1347
        %2338 = vmatpush.bf16.msra.mxu0 %v1339
        %2339 = vmatpush.bf16.msra.mxu0 %v1331
        %2340 = vmatpush.bf16.msra.mxu0 %v1323
        %2341 = vmatpush.bf16.msra.mxu0 %v1315
        %2342 = vmatpush.bf16.msra.mxu0 %v1307
        %2343 = vmatmul.bf16.gmra.mxu0 %v2321
        %v2344 = vpop.f32.mrf.mxu0
        %v2345 = vadd.f32 %v2332, %v2344
        %v2346 = vpop.f32.mrf.mxu0
        %2347 = vdwg.mxu0
        %2348 = vmatpush.bf16.msra.mxu0 %v1300
        %2349 = vmatpush.bf16.msra.mxu0 %v1292
        %2350 = vmatpush.bf16.msra.mxu0 %v1284
        %2351 = vmatpush.bf16.msra.mxu0 %v1276
        %2352 = vmatpush.bf16.msra.mxu0 %v1268
        %2353 = vmatpush.bf16.msra.mxu0 %v1260
        %2354 = vmatpush.bf16.msra.mxu0 %v1252
        %2355 = vmatpush.bf16.msra.mxu0 %v1244
        %2356 = vmatmul.bf16.gmra.mxu0 %v2320
        %v2357 = vpop.f32.mrf.mxu0
        %v2358 = vadd.f32 0.0, %v2357
        %v2359 = vpop.f32.mrf.mxu0
        %2360 = vdwg.mxu0
        %2361 = vmatpush.bf16.msra.mxu0 %v1364
        %2362 = vmatpush.bf16.msra.mxu0 %v1356
        %2363 = vmatpush.bf16.msra.mxu0 %v1348
        %2364 = vmatpush.bf16.msra.mxu0 %v1340
        %2365 = vmatpush.bf16.msra.mxu0 %v1332
        %2366 = vmatpush.bf16.msra.mxu0 %v1324
        %2367 = vmatpush.bf16.msra.mxu0 %v1316
        %2368 = vmatpush.bf16.msra.mxu0 %v1308
        %2369 = vmatmul.bf16.gmra.mxu0 %v2321
        %v2370 = vpop.f32.mrf.mxu0
        %v2371 = vadd.f32 %v2358, %v2370
        %v2372 = vpop.f32.mrf.mxu0
        %2373 = vdwg.mxu0
        %2374 = vmatpush.bf16.msra.mxu0 %v1301
        %2375 = vmatpush.bf16.msra.mxu0 %v1293
        %2376 = vmatpush.bf16.msra.mxu0 %v1285
        %2377 = vmatpush.bf16.msra.mxu0 %v1277
        %2378 = vmatpush.bf16.msra.mxu0 %v1269
        %2379 = vmatpush.bf16.msra.mxu0 %v1261
        %2380 = vmatpush.bf16.msra.mxu0 %v1253
        %2381 = vmatpush.bf16.msra.mxu0 %v1245
        %2382 = vmatmul.bf16.gmra.mxu0 %v2320
        %v2383 = vpop.f32.mrf.mxu0
        %v2384 = vadd.f32 0.0, %v2383
        %v2385 = vpop.f32.mrf.mxu0
        %2386 = vdwg.mxu0
        %2387 = vmatpush.bf16.msra.mxu0 %v1365
        %2388 = vmatpush.bf16.msra.mxu0 %v1357
        %2389 = vmatpush.bf16.msra.mxu0 %v1349
        %2390 = vmatpush.bf16.msra.mxu0 %v1341
        %2391 = vmatpush.bf16.msra.mxu0 %v1333
        %2392 = vmatpush.bf16.msra.mxu0 %v1325
        %2393 = vmatpush.bf16.msra.mxu0 %v1317
        %2394 = vmatpush.bf16.msra.mxu0 %v1309
        %2395 = vmatmul.bf16.gmra.mxu0 %v2321
        %v2396 = vpop.f32.mrf.mxu0
        %v2397 = vadd.f32 %v2384, %v2396
        %v2398 = vpop.f32.mrf.mxu0
        %2399 = vdwg.mxu0
        %2400 = vmatpush.bf16.msra.mxu0 %v1302
        %2401 = vmatpush.bf16.msra.mxu0 %v1294
        %2402 = vmatpush.bf16.msra.mxu0 %v1286
        %2403 = vmatpush.bf16.msra.mxu0 %v1278
        %2404 = vmatpush.bf16.msra.mxu0 %v1270
        %2405 = vmatpush.bf16.msra.mxu0 %v1262
        %2406 = vmatpush.bf16.msra.mxu0 %v1254
        %2407 = vmatpush.bf16.msra.mxu0 %v1246
        %2408 = vmatmul.bf16.gmra.mxu0 %v2320
        %v2409 = vpop.f32.mrf.mxu0
        %v2410 = vadd.f32 0.0, %v2409
        %v2411 = vpop.f32.mrf.mxu0
        %2412 = vdwg.mxu0
        %2413 = vmatpush.bf16.msra.mxu0 %v1366
        %2414 = vmatpush.bf16.msra.mxu0 %v1358
        %2415 = vmatpush.bf16.msra.mxu0 %v1350
        %2416 = vmatpush.bf16.msra.mxu0 %v1342
        %2417 = vmatpush.bf16.msra.mxu0 %v1334
        %2418 = vmatpush.bf16.msra.mxu0 %v1326
        %2419 = vmatpush.bf16.msra.mxu0 %v1318
        %2420 = vmatpush.bf16.msra.mxu0 %v1310
        %2421 = vmatmul.bf16.gmra.mxu0 %v2321
        %v2422 = vpop.f32.mrf.mxu0
        %v2423 = vadd.f32 %v2410, %v2422
        %v2424 = vpop.f32.mrf.mxu0
        %2425 = vdwg.mxu0
        %2426 = vmatpush.bf16.msra.mxu0 %v1303
        %2427 = vmatpush.bf16.msra.mxu0 %v1295
        %2428 = vmatpush.bf16.msra.mxu0 %v1287
        %2429 = vmatpush.bf16.msra.mxu0 %v1279
        %2430 = vmatpush.bf16.msra.mxu0 %v1271
        %2431 = vmatpush.bf16.msra.mxu0 %v1263
        %2432 = vmatpush.bf16.msra.mxu0 %v1255
        %2433 = vmatpush.bf16.msra.mxu0 %v1247
        %2434 = vmatmul.bf16.gmra.mxu0 %v2320
        %v2435 = vpop.f32.mrf.mxu0
        %v2436 = vadd.f32 0.0, %v2435
        %v2437 = vpop.f32.mrf.mxu0
        %2438 = vdwg.mxu0
        %2439 = vmatpush.bf16.msra.mxu0 %v1367
        %2440 = vmatpush.bf16.msra.mxu0 %v1359
        %2441 = vmatpush.bf16.msra.mxu0 %v1351
        %2442 = vmatpush.bf16.msra.mxu0 %v1343
        %2443 = vmatpush.bf16.msra.mxu0 %v1335
        %2444 = vmatpush.bf16.msra.mxu0 %v1327
        %2445 = vmatpush.bf16.msra.mxu0 %v1319
        %2446 = vmatpush.bf16.msra.mxu0 %v1311
        %2447 = vmatmul.bf16.gmra.mxu0 %v2321
        %v2448 = vpop.f32.mrf.mxu0
        %v2449 = vadd.f32 %v2436, %v2448
        %v2450 = vpop.f32.mrf.mxu0
        %2451 = vdwg.mxu0
        %2452 = vmatpush.bf16.msra.mxu0 %v1304
        %2453 = vmatpush.bf16.msra.mxu0 %v1296
        %2454 = vmatpush.bf16.msra.mxu0 %v1288
        %2455 = vmatpush.bf16.msra.mxu0 %v1280
        %2456 = vmatpush.bf16.msra.mxu0 %v1272
        %2457 = vmatpush.bf16.msra.mxu0 %v1264
        %2458 = vmatpush.bf16.msra.mxu0 %v1256
        %2459 = vmatpush.bf16.msra.mxu0 %v1248
        %2460 = vmatmul.bf16.gmra.mxu0 %v2320
        %v2461 = vpop.f32.mrf.mxu0
        %v2462 = vadd.f32 0.0, %v2461
        %v2463 = vpop.f32.mrf.mxu0
        %2464 = vdwg.mxu0
        %2465 = vmatpush.bf16.msra.mxu0 %v1368
        %2466 = vmatpush.bf16.msra.mxu0 %v1360
        %2467 = vmatpush.bf16.msra.mxu0 %v1352
        %2468 = vmatpush.bf16.msra.mxu0 %v1344
        %2469 = vmatpush.bf16.msra.mxu0 %v1336
        %2470 = vmatpush.bf16.msra.mxu0 %v1328
        %2471 = vmatpush.bf16.msra.mxu0 %v1320
        %2472 = vmatpush.bf16.msra.mxu0 %v1312
        %2473 = vmatmul.bf16.gmra.mxu0 %v2321
        %v2474 = vpop.f32.mrf.mxu0
        %v2475 = vadd.f32 %v2462, %v2474
        %v2476 = vpop.f32.mrf.mxu0
        %2477 = vdwg.mxu0
        %2478 = vmatpush.bf16.msra.mxu0 %v1305
        %2479 = vmatpush.bf16.msra.mxu0 %v1297
        %2480 = vmatpush.bf16.msra.mxu0 %v1289
        %2481 = vmatpush.bf16.msra.mxu0 %v1281
        %2482 = vmatpush.bf16.msra.mxu0 %v1273
        %2483 = vmatpush.bf16.msra.mxu0 %v1265
        %2484 = vmatpush.bf16.msra.mxu0 %v1257
        %2485 = vmatpush.bf16.msra.mxu0 %v1249
        %2486 = vmatmul.bf16.gmra.mxu0 %v2320
        %v2487 = vpop.f32.mrf.mxu0
        %v2488 = vadd.f32 0.0, %v2487
        %v2489 = vpop.f32.mrf.mxu0
        %2490 = vdwg.mxu0
        %2491 = vmatpush.bf16.msra.mxu0 %v1369
        %2492 = vmatpush.bf16.msra.mxu0 %v1361
        %2493 = vmatpush.bf16.msra.mxu0 %v1353
        %2494 = vmatpush.bf16.msra.mxu0 %v1345
        %2495 = vmatpush.bf16.msra.mxu0 %v1337
        %2496 = vmatpush.bf16.msra.mxu0 %v1329
        %2497 = vmatpush.bf16.msra.mxu0 %v1321
        %2498 = vmatpush.bf16.msra.mxu0 %v1313
        %2499 = vmatmul.bf16.gmra.mxu0 %v2321
        %v2500 = vpop.f32.mrf.mxu0
        %v2501 = vadd.f32 %v2488, %v2500
        %v2502 = vpop.f32.mrf.mxu0
        %2503 = vdwg.mxu0
        %2504 = vmatpush.bf16.msra.mxu0 %v1306
        %2505 = vmatpush.bf16.msra.mxu0 %v1298
        %2506 = vmatpush.bf16.msra.mxu0 %v1290
        %2507 = vmatpush.bf16.msra.mxu0 %v1282
        %2508 = vmatpush.bf16.msra.mxu0 %v1274
        %2509 = vmatpush.bf16.msra.mxu0 %v1266
        %2510 = vmatpush.bf16.msra.mxu0 %v1258
        %2511 = vmatpush.bf16.msra.mxu0 %v1250
        %2512 = vmatmul.bf16.gmra.mxu0 %v2320
        %v2513 = vpop.f32.mrf.mxu0
        %v2514 = vadd.f32 0.0, %v2513
        %v2515 = vpop.f32.mrf.mxu0
        %2516 = vdwg.mxu0
        %2517 = vmatpush.bf16.msra.mxu0 %v1370
        %2518 = vmatpush.bf16.msra.mxu0 %v1362
        %2519 = vmatpush.bf16.msra.mxu0 %v1354
        %2520 = vmatpush.bf16.msra.mxu0 %v1346
        %2521 = vmatpush.bf16.msra.mxu0 %v1338
        %2522 = vmatpush.bf16.msra.mxu0 %v1330
        %2523 = vmatpush.bf16.msra.mxu0 %v1322
        %2524 = vmatpush.bf16.msra.mxu0 %v1314
        %2525 = vmatmul.bf16.gmra.mxu0 %v2321
        %v2526 = vpop.f32.mrf.mxu0
        %v2527 = vadd.f32 %v2514, %v2526
        %v2528 = vpop.f32.mrf.mxu0
        %2529 = vdwg.mxu0
        %v2530 = vadd.f32 %v2312, %v2345
        %v2531 = vadd.f32 %v2313, %v2371
        %v2532 = vadd.f32 %v2314, %v2397
        %v2533 = vadd.f32 %v2315, %v2423
        %v2534 = vadd.f32 %v2316, %v2449
        %v2535 = vadd.f32 %v2317, %v2475
        %v2536 = vadd.f32 %v2318, %v2501
        %v2537 = vadd.f32 %v2319, %v2527
        %v2538 = vxor.u32 %v2530, 2147483648
        %v2539 = vxor.u32 %v2531, 2147483648
        %v2540 = vmul.f32 %v2538, 1.442695
        %v2541 = vpow.pop %v2540
        %v2542 = vmul.f32 %v2539, 1.442695
        %v2543 = vpow.pop %v2542
        %v2544 = vadd.f32 %v2541, 1.0
        %v2545 = vadd.f32 %v2543, 1.0
        %v2546 = vrcp.pop %v2544
        %v2547 = vmul.f32 %v2544, %v2546
        %v2548 = vsub.f32 1.0, %v2547
        %v2549 = vmul.f32 %v2546, %v2548
        %v2550 = vadd.f32 %v2546, %v2549
        %vm2551 = vweird.f32 %v2544
        %vm2552 = vweird.f32 %v2546
        %vm2553 = vmor %vm2551, %vm2552
        %v2554 = vsel %vm2553, %v2546, %v2550
        %v2555 = vand.u32 2147483647, %v2544
        %vm2556 = vcmp.eq.f32.partialorder %v2555, 8.507059e+37
        %v2557 = vand.u32 %v2544, 2147483648
        %v2558 = vor.u32 1.1754944e-38, %v2557
        %v2559 = vsel %vm2556, %v2558, %v2554
        %v2560 = vmul.f32 1.0, %v2559
        %v2561 = vrcp.pop %v2545
        %v2562 = vmul.f32 %v2545, %v2561
        %v2563 = vsub.f32 1.0, %v2562
        %v2564 = vmul.f32 %v2561, %v2563
        %v2565 = vadd.f32 %v2561, %v2564
        %vm2566 = vweird.f32 %v2545
        %vm2567 = vweird.f32 %v2561
        %vm2568 = vmor %vm2566, %vm2567
        %v2569 = vsel %vm2568, %v2561, %v2565
        %v2570 = vand.u32 2147483647, %v2545
        %vm2571 = vcmp.eq.f32.partialorder %v2570, 8.507059e+37
        %v2572 = vand.u32 %v2545, 2147483648
        %v2573 = vor.u32 1.1754944e-38, %v2572
        %v2574 = vsel %vm2571, %v2573, %v2569
        %v2575 = vmul.f32 1.0, %v2574
        %v2576 = vxor.u32 %v2532, 2147483648
        %v2577 = vxor.u32 %v2533, 2147483648
        %v2578 = vmul.f32 %v2576, 1.442695
        %v2579 = vpow.pop %v2578
        %v2580 = vmul.f32 %v2577, 1.442695
        %v2581 = vpow.pop %v2580
        %v2582 = vadd.f32 %v2579, 1.0
        %v2583 = vadd.f32 %v2581, 1.0
        %v2584 = vrcp.pop %v2582
        %v2585 = vmul.f32 %v2582, %v2584
        %v2586 = vsub.f32 1.0, %v2585
        %v2587 = vmul.f32 %v2584, %v2586
        %v2588 = vadd.f32 %v2584, %v2587
        %vm2589 = vweird.f32 %v2582
        %vm2590 = vweird.f32 %v2584
        %vm2591 = vmor %vm2589, %vm2590
        %v2592 = vsel %vm2591, %v2584, %v2588
        %v2593 = vand.u32 2147483647, %v2582
        %vm2594 = vcmp.eq.f32.partialorder %v2593, 8.507059e+37
        %v2595 = vand.u32 %v2582, 2147483648
        %v2596 = vor.u32 1.1754944e-38, %v2595
        %v2597 = vsel %vm2594, %v2596, %v2592
        %v2598 = vmul.f32 1.0, %v2597
        %v2599 = vrcp.pop %v2583
        %v2600 = vmul.f32 %v2583, %v2599
        %v2601 = vsub.f32 1.0, %v2600
        %v2602 = vmul.f32 %v2599, %v2601
        %v2603 = vadd.f32 %v2599, %v2602
        %vm2604 = vweird.f32 %v2583
        %vm2605 = vweird.f32 %v2599
        %vm2606 = vmor %vm2604, %vm2605
        %v2607 = vsel %vm2606, %v2599, %v2603
        %v2608 = vand.u32 2147483647, %v2583
        %vm2609 = vcmp.eq.f32.partialorder %v2608, 8.507059e+37
        %v2610 = vand.u32 %v2583, 2147483648
        %v2611 = vor.u32 1.1754944e-38, %v2610
        %v2612 = vsel %vm2609, %v2611, %v2607
        %v2613 = vmul.f32 1.0, %v2612
        %v2614 = vtanh.pop %v2534
        %v2615 = vtanh.pop %v2535
        %v2616 = vxor.u32 %v2536, 2147483648
        %v2617 = vxor.u32 %v2537, 2147483648
        %v2618 = vmul.f32 %v2616, 1.442695
        %v2619 = vpow.pop %v2618
        %v2620 = vmul.f32 %v2617, 1.442695
        %v2621 = vpow.pop %v2620
        %v2622 = vadd.f32 %v2619, 1.0
        %v2623 = vadd.f32 %v2621, 1.0
        %v2624 = vrcp.pop %v2622
        %v2625 = vmul.f32 %v2622, %v2624
        %v2626 = vsub.f32 1.0, %v2625
        %v2627 = vmul.f32 %v2624, %v2626
        %v2628 = vadd.f32 %v2624, %v2627
        %vm2629 = vweird.f32 %v2622
        %vm2630 = vweird.f32 %v2624
        %vm2631 = vmor %vm2629, %vm2630
        %v2632 = vsel %vm2631, %v2624, %v2628
        %v2633 = vand.u32 2147483647, %v2622
        %vm2634 = vcmp.eq.f32.partialorder %v2633, 8.507059e+37
        %v2635 = vand.u32 %v2622, 2147483648
        %v2636 = vor.u32 1.1754944e-38, %v2635
        %v2637 = vsel %vm2634, %v2636, %v2632
        %v2638 = vmul.f32 1.0, %v2637
        %v2639 = vrcp.pop %v2623
        %v2640 = vmul.f32 %v2623, %v2639
        %v2641 = vsub.f32 1.0, %v2640
        %v2642 = vmul.f32 %v2639, %v2641
        %v2643 = vadd.f32 %v2639, %v2642
        %vm2644 = vweird.f32 %v2623
        %vm2645 = vweird.f32 %v2639
        %vm2646 = vmor %vm2644, %vm2645
        %v2647 = vsel %vm2646, %v2639, %v2643
        %v2648 = vand.u32 2147483647, %v2623
        %vm2649 = vcmp.eq.f32.partialorder %v2648, 8.507059e+37
        %v2650 = vand.u32 %v2623, 2147483648
        %v2651 = vor.u32 1.1754944e-38, %v2650
        %v2652 = vsel %vm2649, %v2651, %v2647
        %v2653 = vmul.f32 1.0, %v2652
        %v2654 = vmul.f32 %v2598, %v2247
        %v2655 = vmul.f32 %v2613, %v2248
        %v2656 = vmul.f32 %v2560, %v2614
        %v2657 = vmul.f32 %v2575, %v2615
        %v2658 = vadd.f32 %v2654, %v2656
        %v2659 = vadd.f32 %v2655, %v2657
        %v2660 = vtanh.pop %v2658
        %v2661 = vtanh.pop %v2659
        %v2662 = vmul.f32 %v2638, %v2660
        %v2663 = vmul.f32 %v2653, %v2661
        %s2664 = smul.u32 %s1842, 3
        %s2665 = sadd.s32 %s792, %s2664
        %s2666 = sshra.s32 %s2665, 3
        %s2667 = sand.u32 %s2665, 7
        %s2668 = sshra.s32 %s2665, 3
        %s2669 = sand.u32 %s2665, 7
        %s2670 = smul.u32 %s2666, 8
        %s2671 = smul.u32 %s2670, 8
        %s2672 = sadd.s32 %s2671, %s2669
        %s2673 = scalar_lea.vmem [#allocation2], %s2672
        %v2674 = vld [vmem:[%s2673] ss:$8 sm:$0xf]
        %v2675 = vld [vmem:[%s2673] ss:$8 sm:$0xf0]
        %v2676 = vor.u32 %v2674, %v2675
        %s2677 = sadd.s32 %s2665, 8
        %s2678 = sshra.s32 %s2677, 3
        %s2679 = sand.u32 %s2677, 7
        %s2680 = sshra.s32 %s2677, 3
        %s2681 = sand.u32 %s2677, 7
        %s2682 = smul.u32 %s2678, 8
        %s2683 = smul.u32 %s2682, 8
        %s2684 = sadd.s32 %s2683, %s2681
        %s2685 = scalar_lea.vmem [#allocation2], %s2684
        %v2686 = vld [vmem:[%s2685] ss:$8 sm:$0xf]
        %v2687 = vld [vmem:[%s2685] ss:$8 sm:$0xf0]
        %v2688 = vor.u32 %v2686, %v2687
        %v2690 = vperm.slane %v2676, 0
        %v2691 = vperm.slane %v2676, 1
        %v2692 = vperm.slane %v2676, 2
        %v2693 = vperm.slane %v2676, 3
        %v2694 = vperm.slane %v2676, 4
        %v2695 = vperm.slane %v2676, 5
        %v2696 = vperm.slane %v2676, 6
        %v2697 = vperm.slane %v2676, 7
        %v2707 = vperm.slane %v2688, 0
        %v2708 = vperm.slane %v2688, 1
        %v2709 = vperm.slane %v2688, 2
        %v2710 = vperm.slane %v2688, 3
        %v2711 = vperm.slane %v2688, 4
        %v2712 = vperm.slane %v2688, 5
        %v2713 = vperm.slane %v2688, 6
        %v2714 = vperm.slane %v2688, 7
        %v2723 = vsel %vm850, %v2690, %v2707
        %v2724 = vsel %vm850, %v2691, %v2708
        %v2725 = vsel %vm850, %v2692, %v2709
        %v2726 = vsel %vm850, %v2693, %v2710
        %v2727 = vsel %vm850, %v2694, %v2711
        %v2728 = vsel %vm850, %v2695, %v2712
        %v2729 = vsel %vm850, %v2696, %v2713
        %v2730 = vsel %vm850, %v2697, %v2714
        %v2731 = vpack.c.bf16 %v2662, %v2662
        %v2732 = vpack.c.bf16 %v2663, %v2663
        %2733 = vmatpush.bf16.msra.mxu0 %v1299
        %2734 = vmatpush.bf16.msra.mxu0 %v1291
        %2735 = vmatpush.bf16.msra.mxu0 %v1283
        %2736 = vmatpush.bf16.msra.mxu0 %v1275
        %2737 = vmatpush.bf16.msra.mxu0 %v1267
        %2738 = vmatpush.bf16.msra.mxu0 %v1259
        %2739 = vmatpush.bf16.msra.mxu0 %v1251
        %2740 = vmatpush.bf16.msra.mxu0 %v1243
        %2741 = vmatmul.bf16.gmra.mxu0 %v2731
        %v2742 = vpop.f32.mrf.mxu0
        %v2743 = vadd.f32 0.0, %v2742
        %v2744 = vpop.f32.mrf.mxu0
        %2745 = vdwg.mxu0
        %2746 = vmatpush.bf16.msra.mxu0 %v1363
        %2747 = vmatpush.bf16.msra.mxu0 %v1355
        %2748 = vmatpush.bf16.msra.mxu0 %v1347
        %2749 = vmatpush.bf16.msra.mxu0 %v1339
        %2750 = vmatpush.bf16.msra.mxu0 %v1331
        %2751 = vmatpush.bf16.msra.mxu0 %v1323
        %2752 = vmatpush.bf16.msra.mxu0 %v1315
        %2753 = vmatpush.bf16.msra.mxu0 %v1307
        %2754 = vmatmul.bf16.gmra.mxu0 %v2732
        %v2755 = vpop.f32.mrf.mxu0
        %v2756 = vadd.f32 %v2743, %v2755
        %v2757 = vpop.f32.mrf.mxu0
        %2758 = vdwg.mxu0
        %2759 = vmatpush.bf16.msra.mxu0 %v1300
        %2760 = vmatpush.bf16.msra.mxu0 %v1292
        %2761 = vmatpush.bf16.msra.mxu0 %v1284
        %2762 = vmatpush.bf16.msra.mxu0 %v1276
        %2763 = vmatpush.bf16.msra.mxu0 %v1268
        %2764 = vmatpush.bf16.msra.mxu0 %v1260
        %2765 = vmatpush.bf16.msra.mxu0 %v1252
        %2766 = vmatpush.bf16.msra.mxu0 %v1244
        %2767 = vmatmul.bf16.gmra.mxu0 %v2731
        %v2768 = vpop.f32.mrf.mxu0
        %v2769 = vadd.f32 0.0, %v2768
        %v2770 = vpop.f32.mrf.mxu0
        %2771 = vdwg.mxu0
        %2772 = vmatpush.bf16.msra.mxu0 %v1364
        %2773 = vmatpush.bf16.msra.mxu0 %v1356
        %2774 = vmatpush.bf16.msra.mxu0 %v1348
        %2775 = vmatpush.bf16.msra.mxu0 %v1340
        %2776 = vmatpush.bf16.msra.mxu0 %v1332
        %2777 = vmatpush.bf16.msra.mxu0 %v1324
        %2778 = vmatpush.bf16.msra.mxu0 %v1316
        %2779 = vmatpush.bf16.msra.mxu0 %v1308
        %2780 = vmatmul.bf16.gmra.mxu0 %v2732
        %v2781 = vpop.f32.mrf.mxu0
        %v2782 = vadd.f32 %v2769, %v2781
        %v2783 = vpop.f32.mrf.mxu0
        %2784 = vdwg.mxu0
        %2785 = vmatpush.bf16.msra.mxu0 %v1301
        %2786 = vmatpush.bf16.msra.mxu0 %v1293
        %2787 = vmatpush.bf16.msra.mxu0 %v1285
        %2788 = vmatpush.bf16.msra.mxu0 %v1277
        %2789 = vmatpush.bf16.msra.mxu0 %v1269
        %2790 = vmatpush.bf16.msra.mxu0 %v1261
        %2791 = vmatpush.bf16.msra.mxu0 %v1253
        %2792 = vmatpush.bf16.msra.mxu0 %v1245
        %2793 = vmatmul.bf16.gmra.mxu0 %v2731
        %v2794 = vpop.f32.mrf.mxu0
        %v2795 = vadd.f32 0.0, %v2794
        %v2796 = vpop.f32.mrf.mxu0
        %2797 = vdwg.mxu0
        %2798 = vmatpush.bf16.msra.mxu0 %v1365
        %2799 = vmatpush.bf16.msra.mxu0 %v1357
        %2800 = vmatpush.bf16.msra.mxu0 %v1349
        %2801 = vmatpush.bf16.msra.mxu0 %v1341
        %2802 = vmatpush.bf16.msra.mxu0 %v1333
        %2803 = vmatpush.bf16.msra.mxu0 %v1325
        %2804 = vmatpush.bf16.msra.mxu0 %v1317
        %2805 = vmatpush.bf16.msra.mxu0 %v1309
        %2806 = vmatmul.bf16.gmra.mxu0 %v2732
        %v2807 = vpop.f32.mrf.mxu0
        %v2808 = vadd.f32 %v2795, %v2807
        %v2809 = vpop.f32.mrf.mxu0
        %2810 = vdwg.mxu0
        %2811 = vmatpush.bf16.msra.mxu0 %v1302
        %2812 = vmatpush.bf16.msra.mxu0 %v1294
        %2813 = vmatpush.bf16.msra.mxu0 %v1286
        %2814 = vmatpush.bf16.msra.mxu0 %v1278
        %2815 = vmatpush.bf16.msra.mxu0 %v1270
        %2816 = vmatpush.bf16.msra.mxu0 %v1262
        %2817 = vmatpush.bf16.msra.mxu0 %v1254
        %2818 = vmatpush.bf16.msra.mxu0 %v1246
        %2819 = vmatmul.bf16.gmra.mxu0 %v2731
        %v2820 = vpop.f32.mrf.mxu0
        %v2821 = vadd.f32 0.0, %v2820
        %v2822 = vpop.f32.mrf.mxu0
        %2823 = vdwg.mxu0
        %2824 = vmatpush.bf16.msra.mxu0 %v1366
        %2825 = vmatpush.bf16.msra.mxu0 %v1358
        %2826 = vmatpush.bf16.msra.mxu0 %v1350
        %2827 = vmatpush.bf16.msra.mxu0 %v1342
        %2828 = vmatpush.bf16.msra.mxu0 %v1334
        %2829 = vmatpush.bf16.msra.mxu0 %v1326
        %2830 = vmatpush.bf16.msra.mxu0 %v1318
        %2831 = vmatpush.bf16.msra.mxu0 %v1310
        %2832 = vmatmul.bf16.gmra.mxu0 %v2732
        %v2833 = vpop.f32.mrf.mxu0
        %v2834 = vadd.f32 %v2821, %v2833
        %v2835 = vpop.f32.mrf.mxu0
        %2836 = vdwg.mxu0
        %2837 = vmatpush.bf16.msra.mxu0 %v1303
        %2838 = vmatpush.bf16.msra.mxu0 %v1295
        %2839 = vmatpush.bf16.msra.mxu0 %v1287
        %2840 = vmatpush.bf16.msra.mxu0 %v1279
        %2841 = vmatpush.bf16.msra.mxu0 %v1271
        %2842 = vmatpush.bf16.msra.mxu0 %v1263
        %2843 = vmatpush.bf16.msra.mxu0 %v1255
        %2844 = vmatpush.bf16.msra.mxu0 %v1247
        %2845 = vmatmul.bf16.gmra.mxu0 %v2731
        %v2846 = vpop.f32.mrf.mxu0
        %v2847 = vadd.f32 0.0, %v2846
        %v2848 = vpop.f32.mrf.mxu0
        %2849 = vdwg.mxu0
        %2850 = vmatpush.bf16.msra.mxu0 %v1367
        %2851 = vmatpush.bf16.msra.mxu0 %v1359
        %2852 = vmatpush.bf16.msra.mxu0 %v1351
        %2853 = vmatpush.bf16.msra.mxu0 %v1343
        %2854 = vmatpush.bf16.msra.mxu0 %v1335
        %2855 = vmatpush.bf16.msra.mxu0 %v1327
        %2856 = vmatpush.bf16.msra.mxu0 %v1319
        %2857 = vmatpush.bf16.msra.mxu0 %v1311
        %2858 = vmatmul.bf16.gmra.mxu0 %v2732
        %v2859 = vpop.f32.mrf.mxu0
        %v2860 = vadd.f32 %v2847, %v2859
        %v2861 = vpop.f32.mrf.mxu0
        %2862 = vdwg.mxu0
        %2863 = vmatpush.bf16.msra.mxu0 %v1304
        %2864 = vmatpush.bf16.msra.mxu0 %v1296
        %2865 = vmatpush.bf16.msra.mxu0 %v1288
        %2866 = vmatpush.bf16.msra.mxu0 %v1280
        %2867 = vmatpush.bf16.msra.mxu0 %v1272
        %2868 = vmatpush.bf16.msra.mxu0 %v1264
        %2869 = vmatpush.bf16.msra.mxu0 %v1256
        %2870 = vmatpush.bf16.msra.mxu0 %v1248
        %2871 = vmatmul.bf16.gmra.mxu0 %v2731
        %v2872 = vpop.f32.mrf.mxu0
        %v2873 = vadd.f32 0.0, %v2872
        %v2874 = vpop.f32.mrf.mxu0
        %2875 = vdwg.mxu0
        %2876 = vmatpush.bf16.msra.mxu0 %v1368
        %2877 = vmatpush.bf16.msra.mxu0 %v1360
        %2878 = vmatpush.bf16.msra.mxu0 %v1352
        %2879 = vmatpush.bf16.msra.mxu0 %v1344
        %2880 = vmatpush.bf16.msra.mxu0 %v1336
        %2881 = vmatpush.bf16.msra.mxu0 %v1328
        %2882 = vmatpush.bf16.msra.mxu0 %v1320
        %2883 = vmatpush.bf16.msra.mxu0 %v1312
        %2884 = vmatmul.bf16.gmra.mxu0 %v2732
        %v2885 = vpop.f32.mrf.mxu0
        %v2886 = vadd.f32 %v2873, %v2885
        %v2887 = vpop.f32.mrf.mxu0
        %2888 = vdwg.mxu0
        %2889 = vmatpush.bf16.msra.mxu0 %v1305
        %2890 = vmatpush.bf16.msra.mxu0 %v1297
        %2891 = vmatpush.bf16.msra.mxu0 %v1289
        %2892 = vmatpush.bf16.msra.mxu0 %v1281
        %2893 = vmatpush.bf16.msra.mxu0 %v1273
        %2894 = vmatpush.bf16.msra.mxu0 %v1265
        %2895 = vmatpush.bf16.msra.mxu0 %v1257
        %2896 = vmatpush.bf16.msra.mxu0 %v1249
        %2897 = vmatmul.bf16.gmra.mxu0 %v2731
        %v2898 = vpop.f32.mrf.mxu0
        %v2899 = vadd.f32 0.0, %v2898
        %v2900 = vpop.f32.mrf.mxu0
        %2901 = vdwg.mxu0
        %2902 = vmatpush.bf16.msra.mxu0 %v1369
        %2903 = vmatpush.bf16.msra.mxu0 %v1361
        %2904 = vmatpush.bf16.msra.mxu0 %v1353
        %2905 = vmatpush.bf16.msra.mxu0 %v1345
        %2906 = vmatpush.bf16.msra.mxu0 %v1337
        %2907 = vmatpush.bf16.msra.mxu0 %v1329
        %2908 = vmatpush.bf16.msra.mxu0 %v1321
        %2909 = vmatpush.bf16.msra.mxu0 %v1313
        %2910 = vmatmul.bf16.gmra.mxu0 %v2732
        %v2911 = vpop.f32.mrf.mxu0
        %v2912 = vadd.f32 %v2899, %v2911
        %v2913 = vpop.f32.mrf.mxu0
        %2914 = vdwg.mxu0
        %2915 = vmatpush.bf16.msra.mxu0 %v1306
        %2916 = vmatpush.bf16.msra.mxu0 %v1298
        %2917 = vmatpush.bf16.msra.mxu0 %v1290
        %2918 = vmatpush.bf16.msra.mxu0 %v1282
        %2919 = vmatpush.bf16.msra.mxu0 %v1274
        %2920 = vmatpush.bf16.msra.mxu0 %v1266
        %2921 = vmatpush.bf16.msra.mxu0 %v1258
        %2922 = vmatpush.bf16.msra.mxu0 %v1250
        %2923 = vmatmul.bf16.gmra.mxu0 %v2731
        %v2924 = vpop.f32.mrf.mxu0
        %v2925 = vadd.f32 0.0, %v2924
        %v2926 = vpop.f32.mrf.mxu0
        %2927 = vdwg.mxu0
        %2928 = vmatpush.bf16.msra.mxu0 %v1370
        %2929 = vmatpush.bf16.msra.mxu0 %v1362
        %2930 = vmatpush.bf16.msra.mxu0 %v1354
        %2931 = vmatpush.bf16.msra.mxu0 %v1346
        %2932 = vmatpush.bf16.msra.mxu0 %v1338
        %2933 = vmatpush.bf16.msra.mxu0 %v1330
        %2934 = vmatpush.bf16.msra.mxu0 %v1322
        %2935 = vmatpush.bf16.msra.mxu0 %v1314
        %2936 = vmatmul.bf16.gmra.mxu0 %v2732
        %v2937 = vpop.f32.mrf.mxu0
        %v2938 = vadd.f32 %v2925, %v2937
        %v2939 = vpop.f32.mrf.mxu0
        %2940 = vdwg.mxu0
        %v2941 = vadd.f32 %v2723, %v2756
        %v2942 = vadd.f32 %v2724, %v2782
        %v2943 = vadd.f32 %v2725, %v2808
        %v2944 = vadd.f32 %v2726, %v2834
        %v2945 = vadd.f32 %v2727, %v2860
        %v2946 = vadd.f32 %v2728, %v2886
        %v2947 = vadd.f32 %v2729, %v2912
        %v2948 = vadd.f32 %v2730, %v2938
        %v2949 = vxor.u32 %v2941, 2147483648
        %v2950 = vxor.u32 %v2942, 2147483648
        %v2951 = vmul.f32 %v2949, 1.442695
        %v2952 = vpow.pop %v2951
        %v2953 = vmul.f32 %v2950, 1.442695
        %v2954 = vpow.pop %v2953
        %v2955 = vadd.f32 %v2952, 1.0
        %v2956 = vadd.f32 %v2954, 1.0
        %v2957 = vrcp.pop %v2955
        %v2958 = vmul.f32 %v2955, %v2957
        %v2959 = vsub.f32 1.0, %v2958
        %v2960 = vmul.f32 %v2957, %v2959
        %v2961 = vadd.f32 %v2957, %v2960
        %vm2962 = vweird.f32 %v2955
        %vm2963 = vweird.f32 %v2957
        %vm2964 = vmor %vm2962, %vm2963
        %v2965 = vsel %vm2964, %v2957, %v2961
        %v2966 = vand.u32 2147483647, %v2955
        %vm2967 = vcmp.eq.f32.partialorder %v2966, 8.507059e+37
        %v2968 = vand.u32 %v2955, 2147483648
        %v2969 = vor.u32 1.1754944e-38, %v2968
        %v2970 = vsel %vm2967, %v2969, %v2965
        %v2971 = vmul.f32 1.0, %v2970
        %v2972 = vrcp.pop %v2956
        %v2973 = vmul.f32 %v2956, %v2972
        %v2974 = vsub.f32 1.0, %v2973
        %v2975 = vmul.f32 %v2972, %v2974
        %v2976 = vadd.f32 %v2972, %v2975
        %vm2977 = vweird.f32 %v2956
        %vm2978 = vweird.f32 %v2972
        %vm2979 = vmor %vm2977, %vm2978
        %v2980 = vsel %vm2979, %v2972, %v2976
        %v2981 = vand.u32 2147483647, %v2956
        %vm2982 = vcmp.eq.f32.partialorder %v2981, 8.507059e+37
        %v2983 = vand.u32 %v2956, 2147483648
        %v2984 = vor.u32 1.1754944e-38, %v2983
        %v2985 = vsel %vm2982, %v2984, %v2980
        %v2986 = vmul.f32 1.0, %v2985
        %v2987 = vxor.u32 %v2943, 2147483648
        %v2988 = vxor.u32 %v2944, 2147483648
        %v2989 = vmul.f32 %v2987, 1.442695
        %v2990 = vpow.pop %v2989
        %v2991 = vmul.f32 %v2988, 1.442695
        %v2992 = vpow.pop %v2991
        %v2993 = vadd.f32 %v2990, 1.0
        %v2994 = vadd.f32 %v2992, 1.0
        %v2995 = vrcp.pop %v2993
        %v2996 = vmul.f32 %v2993, %v2995
        %v2997 = vsub.f32 1.0, %v2996
        %v2998 = vmul.f32 %v2995, %v2997
        %v2999 = vadd.f32 %v2995, %v2998
        %vm3000 = vweird.f32 %v2993
        %vm3001 = vweird.f32 %v2995
        %vm3002 = vmor %vm3000, %vm3001
        %v3003 = vsel %vm3002, %v2995, %v2999
        %v3004 = vand.u32 2147483647, %v2993
        %vm3005 = vcmp.eq.f32.partialorder %v3004, 8.507059e+37
        %v3006 = vand.u32 %v2993, 2147483648
        %v3007 = vor.u32 1.1754944e-38, %v3006
        %v3008 = vsel %vm3005, %v3007, %v3003
        %v3009 = vmul.f32 1.0, %v3008
        %v3010 = vrcp.pop %v2994
        %v3011 = vmul.f32 %v2994, %v3010
        %v3012 = vsub.f32 1.0, %v3011
        %v3013 = vmul.f32 %v3010, %v3012
        %v3014 = vadd.f32 %v3010, %v3013
        %vm3015 = vweird.f32 %v2994
        %vm3016 = vweird.f32 %v3010
        %vm3017 = vmor %vm3015, %vm3016
        %v3018 = vsel %vm3017, %v3010, %v3014
        %v3019 = vand.u32 2147483647, %v2994
        %vm3020 = vcmp.eq.f32.partialorder %v3019, 8.507059e+37
        %v3021 = vand.u32 %v2994, 2147483648
        %v3022 = vor.u32 1.1754944e-38, %v3021
        %v3023 = vsel %vm3020, %v3022, %v3018
        %v3024 = vmul.f32 1.0, %v3023
        %v3025 = vtanh.pop %v2945
        %v3026 = vtanh.pop %v2946
        %v3027 = vxor.u32 %v2947, 2147483648
        %v3028 = vxor.u32 %v2948, 2147483648
        %v3029 = vmul.f32 %v3027, 1.442695
        %v3030 = vpow.pop %v3029
        %v3031 = vmul.f32 %v3028, 1.442695
        %v3032 = vpow.pop %v3031
        %v3033 = vadd.f32 %v3030, 1.0
        %v3034 = vadd.f32 %v3032, 1.0
        %v3035 = vrcp.pop %v3033
        %v3036 = vmul.f32 %v3033, %v3035
        %v3037 = vsub.f32 1.0, %v3036
        %v3038 = vmul.f32 %v3035, %v3037
        %v3039 = vadd.f32 %v3035, %v3038
        %vm3040 = vweird.f32 %v3033
        %vm3041 = vweird.f32 %v3035
        %vm3042 = vmor %vm3040, %vm3041
        %v3043 = vsel %vm3042, %v3035, %v3039
        %v3044 = vand.u32 2147483647, %v3033
        %vm3045 = vcmp.eq.f32.partialorder %v3044, 8.507059e+37
        %v3046 = vand.u32 %v3033, 2147483648
        %v3047 = vor.u32 1.1754944e-38, %v3046
        %v3048 = vsel %vm3045, %v3047, %v3043
        %v3049 = vmul.f32 1.0, %v3048
        %v3050 = vrcp.pop %v3034
        %v3051 = vmul.f32 %v3034, %v3050
        %v3052 = vsub.f32 1.0, %v3051
        %v3053 = vmul.f32 %v3050, %v3052
        %v3054 = vadd.f32 %v3050, %v3053
        %vm3055 = vweird.f32 %v3034
        %vm3056 = vweird.f32 %v3050
        %vm3057 = vmor %vm3055, %vm3056
        %v3058 = vsel %vm3057, %v3050, %v3054
        %v3059 = vand.u32 2147483647, %v3034
        %vm3060 = vcmp.eq.f32.partialorder %v3059, 8.507059e+37
        %v3061 = vand.u32 %v3034, 2147483648
        %v3062 = vor.u32 1.1754944e-38, %v3061
        %v3063 = vsel %vm3060, %v3062, %v3058
        %v3064 = vmul.f32 1.0, %v3063
        %v3065 = vmul.f32 %v3009, %v2658
        %v3066 = vmul.f32 %v3024, %v2659
        %v3067 = vmul.f32 %v2971, %v3025
        %v3068 = vmul.f32 %v2986, %v3026
        %v3069 = vadd.f32 %v3065, %v3067
        %v3070 = vadd.f32 %v3066, %v3068
        %v3071 = vtanh.pop %v3069
        %v3072 = vtanh.pop %v3070
        %v3073 = vmul.f32 %v3049, %v3071
        %v3074 = vmul.f32 %v3064, %v3072
        %s3075 = smul.u32 %s1842, 4
        %s3076 = sadd.s32 %s792, %s3075
        %s3077 = sshra.s32 %s3076, 3
        %s3078 = sand.u32 %s3076, 7
        %s3079 = sshra.s32 %s3076, 3
        %s3080 = sand.u32 %s3076, 7
        %s3081 = smul.u32 %s3077, 8
        %s3082 = smul.u32 %s3081, 8
        %s3083 = sadd.s32 %s3082, %s3080
        %s3084 = scalar_lea.vmem [#allocation2], %s3083
        %v3085 = vld [vmem:[%s3084] ss:$8 sm:$0xf]
        %v3086 = vld [vmem:[%s3084] ss:$8 sm:$0xf0]
        %v3087 = vor.u32 %v3085, %v3086
        %s3088 = sadd.s32 %s3076, 8
        %s3089 = sshra.s32 %s3088, 3
        %s3090 = sand.u32 %s3088, 7
        %s3091 = sshra.s32 %s3088, 3
        %s3092 = sand.u32 %s3088, 7
        %s3093 = smul.u32 %s3089, 8
        %s3094 = smul.u32 %s3093, 8
        %s3095 = sadd.s32 %s3094, %s3092
        %s3096 = scalar_lea.vmem [#allocation2], %s3095
        %v3097 = vld [vmem:[%s3096] ss:$8 sm:$0xf]
        %v3098 = vld [vmem:[%s3096] ss:$8 sm:$0xf0]
        %v3099 = vor.u32 %v3097, %v3098
        %v3101 = vperm.slane %v3087, 0
        %v3102 = vperm.slane %v3087, 1
        %v3103 = vperm.slane %v3087, 2
        %v3104 = vperm.slane %v3087, 3
        %v3105 = vperm.slane %v3087, 4
        %v3106 = vperm.slane %v3087, 5
        %v3107 = vperm.slane %v3087, 6
        %v3108 = vperm.slane %v3087, 7
        %v3118 = vperm.slane %v3099, 0
        %v3119 = vperm.slane %v3099, 1
        %v3120 = vperm.slane %v3099, 2
        %v3121 = vperm.slane %v3099, 3
        %v3122 = vperm.slane %v3099, 4
        %v3123 = vperm.slane %v3099, 5
        %v3124 = vperm.slane %v3099, 6
        %v3125 = vperm.slane %v3099, 7
        %v3134 = vsel %vm850, %v3101, %v3118
        %v3135 = vsel %vm850, %v3102, %v3119
        %v3136 = vsel %vm850, %v3103, %v3120
        %v3137 = vsel %vm850, %v3104, %v3121
        %v3138 = vsel %vm850, %v3105, %v3122
        %v3139 = vsel %vm850, %v3106, %v3123
        %v3140 = vsel %vm850, %v3107, %v3124
        %v3141 = vsel %vm850, %v3108, %v3125
        %v3142 = vpack.c.bf16 %v3073, %v3073
        %v3143 = vpack.c.bf16 %v3074, %v3074
        %3144 = vmatpush.bf16.msra.mxu0 %v1299
        %3145 = vmatpush.bf16.msra.mxu0 %v1291
        %3146 = vmatpush.bf16.msra.mxu0 %v1283
        %3147 = vmatpush.bf16.msra.mxu0 %v1275
        %3148 = vmatpush.bf16.msra.mxu0 %v1267
        %3149 = vmatpush.bf16.msra.mxu0 %v1259
        %3150 = vmatpush.bf16.msra.mxu0 %v1251
        %3151 = vmatpush.bf16.msra.mxu0 %v1243
        %3152 = vmatmul.bf16.gmra.mxu0 %v3142
        %v3153 = vpop.f32.mrf.mxu0
        %v3154 = vadd.f32 0.0, %v3153
        %v3155 = vpop.f32.mrf.mxu0
        %3156 = vdwg.mxu0
        %3157 = vmatpush.bf16.msra.mxu0 %v1363
        %3158 = vmatpush.bf16.msra.mxu0 %v1355
        %3159 = vmatpush.bf16.msra.mxu0 %v1347
        %3160 = vmatpush.bf16.msra.mxu0 %v1339
        %3161 = vmatpush.bf16.msra.mxu0 %v1331
        %3162 = vmatpush.bf16.msra.mxu0 %v1323
        %3163 = vmatpush.bf16.msra.mxu0 %v1315
        %3164 = vmatpush.bf16.msra.mxu0 %v1307
        %3165 = vmatmul.bf16.gmra.mxu0 %v3143
        %v3166 = vpop.f32.mrf.mxu0
        %v3167 = vadd.f32 %v3154, %v3166
        %v3168 = vpop.f32.mrf.mxu0
        %3169 = vdwg.mxu0
        %3170 = vmatpush.bf16.msra.mxu0 %v1300
        %3171 = vmatpush.bf16.msra.mxu0 %v1292
        %3172 = vmatpush.bf16.msra.mxu0 %v1284
        %3173 = vmatpush.bf16.msra.mxu0 %v1276
        %3174 = vmatpush.bf16.msra.mxu0 %v1268
        %3175 = vmatpush.bf16.msra.mxu0 %v1260
        %3176 = vmatpush.bf16.msra.mxu0 %v1252
        %3177 = vmatpush.bf16.msra.mxu0 %v1244
        %3178 = vmatmul.bf16.gmra.mxu0 %v3142
        %v3179 = vpop.f32.mrf.mxu0
        %v3180 = vadd.f32 0.0, %v3179
        %v3181 = vpop.f32.mrf.mxu0
        %3182 = vdwg.mxu0
        %3183 = vmatpush.bf16.msra.mxu0 %v1364
        %3184 = vmatpush.bf16.msra.mxu0 %v1356
        %3185 = vmatpush.bf16.msra.mxu0 %v1348
        %3186 = vmatpush.bf16.msra.mxu0 %v1340
        %3187 = vmatpush.bf16.msra.mxu0 %v1332
        %3188 = vmatpush.bf16.msra.mxu0 %v1324
        %3189 = vmatpush.bf16.msra.mxu0 %v1316
        %3190 = vmatpush.bf16.msra.mxu0 %v1308
        %3191 = vmatmul.bf16.gmra.mxu0 %v3143
        %v3192 = vpop.f32.mrf.mxu0
        %v3193 = vadd.f32 %v3180, %v3192
        %v3194 = vpop.f32.mrf.mxu0
        %3195 = vdwg.mxu0
        %3196 = vmatpush.bf16.msra.mxu0 %v1301
        %3197 = vmatpush.bf16.msra.mxu0 %v1293
        %3198 = vmatpush.bf16.msra.mxu0 %v1285
        %3199 = vmatpush.bf16.msra.mxu0 %v1277
        %3200 = vmatpush.bf16.msra.mxu0 %v1269
        %3201 = vmatpush.bf16.msra.mxu0 %v1261
        %3202 = vmatpush.bf16.msra.mxu0 %v1253
        %3203 = vmatpush.bf16.msra.mxu0 %v1245
        %3204 = vmatmul.bf16.gmra.mxu0 %v3142
        %v3205 = vpop.f32.mrf.mxu0
        %v3206 = vadd.f32 0.0, %v3205
        %v3207 = vpop.f32.mrf.mxu0
        %3208 = vdwg.mxu0
        %3209 = vmatpush.bf16.msra.mxu0 %v1365
        %3210 = vmatpush.bf16.msra.mxu0 %v1357
        %3211 = vmatpush.bf16.msra.mxu0 %v1349
        %3212 = vmatpush.bf16.msra.mxu0 %v1341
        %3213 = vmatpush.bf16.msra.mxu0 %v1333
        %3214 = vmatpush.bf16.msra.mxu0 %v1325
        %3215 = vmatpush.bf16.msra.mxu0 %v1317
        %3216 = vmatpush.bf16.msra.mxu0 %v1309
        %3217 = vmatmul.bf16.gmra.mxu0 %v3143
        %v3218 = vpop.f32.mrf.mxu0
        %v3219 = vadd.f32 %v3206, %v3218
        %v3220 = vpop.f32.mrf.mxu0
        %3221 = vdwg.mxu0
        %3222 = vmatpush.bf16.msra.mxu0 %v1302
        %3223 = vmatpush.bf16.msra.mxu0 %v1294
        %3224 = vmatpush.bf16.msra.mxu0 %v1286
        %3225 = vmatpush.bf16.msra.mxu0 %v1278
        %3226 = vmatpush.bf16.msra.mxu0 %v1270
        %3227 = vmatpush.bf16.msra.mxu0 %v1262
        %3228 = vmatpush.bf16.msra.mxu0 %v1254
        %3229 = vmatpush.bf16.msra.mxu0 %v1246
        %3230 = vmatmul.bf16.gmra.mxu0 %v3142
        %v3231 = vpop.f32.mrf.mxu0
        %v3232 = vadd.f32 0.0, %v3231
        %v3233 = vpop.f32.mrf.mxu0
        %3234 = vdwg.mxu0
        %3235 = vmatpush.bf16.msra.mxu0 %v1366
        %3236 = vmatpush.bf16.msra.mxu0 %v1358
        %3237 = vmatpush.bf16.msra.mxu0 %v1350
        %3238 = vmatpush.bf16.msra.mxu0 %v1342
        %3239 = vmatpush.bf16.msra.mxu0 %v1334
        %3240 = vmatpush.bf16.msra.mxu0 %v1326
        %3241 = vmatpush.bf16.msra.mxu0 %v1318
        %3242 = vmatpush.bf16.msra.mxu0 %v1310
        %3243 = vmatmul.bf16.gmra.mxu0 %v3143
        %v3244 = vpop.f32.mrf.mxu0
        %v3245 = vadd.f32 %v3232, %v3244
        %v3246 = vpop.f32.mrf.mxu0
        %3247 = vdwg.mxu0
        %3248 = vmatpush.bf16.msra.mxu0 %v1303
        %3249 = vmatpush.bf16.msra.mxu0 %v1295
        %3250 = vmatpush.bf16.msra.mxu0 %v1287
        %3251 = vmatpush.bf16.msra.mxu0 %v1279
        %3252 = vmatpush.bf16.msra.mxu0 %v1271
        %3253 = vmatpush.bf16.msra.mxu0 %v1263
        %3254 = vmatpush.bf16.msra.mxu0 %v1255
        %3255 = vmatpush.bf16.msra.mxu0 %v1247
        %3256 = vmatmul.bf16.gmra.mxu0 %v3142
        %v3257 = vpop.f32.mrf.mxu0
        %v3258 = vadd.f32 0.0, %v3257
        %v3259 = vpop.f32.mrf.mxu0
        %3260 = vdwg.mxu0
        %3261 = vmatpush.bf16.msra.mxu0 %v1367
        %3262 = vmatpush.bf16.msra.mxu0 %v1359
        %3263 = vmatpush.bf16.msra.mxu0 %v1351
        %3264 = vmatpush.bf16.msra.mxu0 %v1343
        %3265 = vmatpush.bf16.msra.mxu0 %v1335
        %3266 = vmatpush.bf16.msra.mxu0 %v1327
        %3267 = vmatpush.bf16.msra.mxu0 %v1319
        %3268 = vmatpush.bf16.msra.mxu0 %v1311
        %3269 = vmatmul.bf16.gmra.mxu0 %v3143
        %v3270 = vpop.f32.mrf.mxu0
        %v3271 = vadd.f32 %v3258, %v3270
        %v3272 = vpop.f32.mrf.mxu0
        %3273 = vdwg.mxu0
        %3274 = vmatpush.bf16.msra.mxu0 %v1304
        %3275 = vmatpush.bf16.msra.mxu0 %v1296
        %3276 = vmatpush.bf16.msra.mxu0 %v1288
        %3277 = vmatpush.bf16.msra.mxu0 %v1280
        %3278 = vmatpush.bf16.msra.mxu0 %v1272
        %3279 = vmatpush.bf16.msra.mxu0 %v1264
        %3280 = vmatpush.bf16.msra.mxu0 %v1256
        %3281 = vmatpush.bf16.msra.mxu0 %v1248
        %3282 = vmatmul.bf16.gmra.mxu0 %v3142
        %v3283 = vpop.f32.mrf.mxu0
        %v3284 = vadd.f32 0.0, %v3283
        %v3285 = vpop.f32.mrf.mxu0
        %3286 = vdwg.mxu0
        %3287 = vmatpush.bf16.msra.mxu0 %v1368
        %3288 = vmatpush.bf16.msra.mxu0 %v1360
        %3289 = vmatpush.bf16.msra.mxu0 %v1352
        %3290 = vmatpush.bf16.msra.mxu0 %v1344
        %3291 = vmatpush.bf16.msra.mxu0 %v1336
        %3292 = vmatpush.bf16.msra.mxu0 %v1328
        %3293 = vmatpush.bf16.msra.mxu0 %v1320
        %3294 = vmatpush.bf16.msra.mxu0 %v1312
        %3295 = vmatmul.bf16.gmra.mxu0 %v3143
        %v3296 = vpop.f32.mrf.mxu0
        %v3297 = vadd.f32 %v3284, %v3296
        %v3298 = vpop.f32.mrf.mxu0
        %3299 = vdwg.mxu0
        %3300 = vmatpush.bf16.msra.mxu0 %v1305
        %3301 = vmatpush.bf16.msra.mxu0 %v1297
        %3302 = vmatpush.bf16.msra.mxu0 %v1289
        %3303 = vmatpush.bf16.msra.mxu0 %v1281
        %3304 = vmatpush.bf16.msra.mxu0 %v1273
        %3305 = vmatpush.bf16.msra.mxu0 %v1265
        %3306 = vmatpush.bf16.msra.mxu0 %v1257
        %3307 = vmatpush.bf16.msra.mxu0 %v1249
        %3308 = vmatmul.bf16.gmra.mxu0 %v3142
        %v3309 = vpop.f32.mrf.mxu0
        %v3310 = vadd.f32 0.0, %v3309
        %v3311 = vpop.f32.mrf.mxu0
        %3312 = vdwg.mxu0
        %3313 = vmatpush.bf16.msra.mxu0 %v1369
        %3314 = vmatpush.bf16.msra.mxu0 %v1361
        %3315 = vmatpush.bf16.msra.mxu0 %v1353
        %3316 = vmatpush.bf16.msra.mxu0 %v1345
        %3317 = vmatpush.bf16.msra.mxu0 %v1337
        %3318 = vmatpush.bf16.msra.mxu0 %v1329
        %3319 = vmatpush.bf16.msra.mxu0 %v1321
        %3320 = vmatpush.bf16.msra.mxu0 %v1313
        %3321 = vmatmul.bf16.gmra.mxu0 %v3143
        %v3322 = vpop.f32.mrf.mxu0
        %v3323 = vadd.f32 %v3310, %v3322
        %v3324 = vpop.f32.mrf.mxu0
        %3325 = vdwg.mxu0
        %3326 = vmatpush.bf16.msra.mxu0 %v1306
        %3327 = vmatpush.bf16.msra.mxu0 %v1298
        %3328 = vmatpush.bf16.msra.mxu0 %v1290
        %3329 = vmatpush.bf16.msra.mxu0 %v1282
        %3330 = vmatpush.bf16.msra.mxu0 %v1274
        %3331 = vmatpush.bf16.msra.mxu0 %v1266
        %3332 = vmatpush.bf16.msra.mxu0 %v1258
        %3333 = vmatpush.bf16.msra.mxu0 %v1250
        %3334 = vmatmul.bf16.gmra.mxu0 %v3142
        %v3335 = vpop.f32.mrf.mxu0
        %v3336 = vadd.f32 0.0, %v3335
        %v3337 = vpop.f32.mrf.mxu0
        %3338 = vdwg.mxu0
        %3339 = vmatpush.bf16.msra.mxu0 %v1370
        %3340 = vmatpush.bf16.msra.mxu0 %v1362
        %3341 = vmatpush.bf16.msra.mxu0 %v1354
        %3342 = vmatpush.bf16.msra.mxu0 %v1346
        %3343 = vmatpush.bf16.msra.mxu0 %v1338
        %3344 = vmatpush.bf16.msra.mxu0 %v1330
        %3345 = vmatpush.bf16.msra.mxu0 %v1322
        %3346 = vmatpush.bf16.msra.mxu0 %v1314
        %3347 = vmatmul.bf16.gmra.mxu0 %v3143
        %v3348 = vpop.f32.mrf.mxu0
        %v3349 = vadd.f32 %v3336, %v3348
        %v3350 = vpop.f32.mrf.mxu0
        %3351 = vdwg.mxu0
        %v3352 = vadd.f32 %v3134, %v3167
        %v3353 = vadd.f32 %v3135, %v3193
        %v3354 = vadd.f32 %v3136, %v3219
        %v3355 = vadd.f32 %v3137, %v3245
        %v3356 = vadd.f32 %v3138, %v3271
        %v3357 = vadd.f32 %v3139, %v3297
        %v3358 = vadd.f32 %v3140, %v3323
        %v3359 = vadd.f32 %v3141, %v3349
        %v3360 = vxor.u32 %v3352, 2147483648
        %v3361 = vxor.u32 %v3353, 2147483648
        %v3362 = vmul.f32 %v3360, 1.442695
        %v3363 = vpow.pop %v3362
        %v3364 = vmul.f32 %v3361, 1.442695
        %v3365 = vpow.pop %v3364
        %v3366 = vadd.f32 %v3363, 1.0
        %v3367 = vadd.f32 %v3365, 1.0
        %v3368 = vrcp.pop %v3366
        %v3369 = vmul.f32 %v3366, %v3368
        %v3370 = vsub.f32 1.0, %v3369
        %v3371 = vmul.f32 %v3368, %v3370
        %v3372 = vadd.f32 %v3368, %v3371
        %vm3373 = vweird.f32 %v3366
        %vm3374 = vweird.f32 %v3368
        %vm3375 = vmor %vm3373, %vm3374
        %v3376 = vsel %vm3375, %v3368, %v3372
        %v3377 = vand.u32 2147483647, %v3366
        %vm3378 = vcmp.eq.f32.partialorder %v3377, 8.507059e+37
        %v3379 = vand.u32 %v3366, 2147483648
        %v3380 = vor.u32 1.1754944e-38, %v3379
        %v3381 = vsel %vm3378, %v3380, %v3376
        %v3382 = vmul.f32 1.0, %v3381
        %v3383 = vrcp.pop %v3367
        %v3384 = vmul.f32 %v3367, %v3383
        %v3385 = vsub.f32 1.0, %v3384
        %v3386 = vmul.f32 %v3383, %v3385
        %v3387 = vadd.f32 %v3383, %v3386
        %vm3388 = vweird.f32 %v3367
        %vm3389 = vweird.f32 %v3383
        %vm3390 = vmor %vm3388, %vm3389
        %v3391 = vsel %vm3390, %v3383, %v3387
        %v3392 = vand.u32 2147483647, %v3367
        %vm3393 = vcmp.eq.f32.partialorder %v3392, 8.507059e+37
        %v3394 = vand.u32 %v3367, 2147483648
        %v3395 = vor.u32 1.1754944e-38, %v3394
        %v3396 = vsel %vm3393, %v3395, %v3391
        %v3397 = vmul.f32 1.0, %v3396
        %v3398 = vxor.u32 %v3354, 2147483648
        %v3399 = vxor.u32 %v3355, 2147483648
        %v3400 = vmul.f32 %v3398, 1.442695
        %v3401 = vpow.pop %v3400
        %v3402 = vmul.f32 %v3399, 1.442695
        %v3403 = vpow.pop %v3402
        %v3404 = vadd.f32 %v3401, 1.0
        %v3405 = vadd.f32 %v3403, 1.0
        %v3406 = vrcp.pop %v3404
        %v3407 = vmul.f32 %v3404, %v3406
        %v3408 = vsub.f32 1.0, %v3407
        %v3409 = vmul.f32 %v3406, %v3408
        %v3410 = vadd.f32 %v3406, %v3409
        %vm3411 = vweird.f32 %v3404
        %vm3412 = vweird.f32 %v3406
        %vm3413 = vmor %vm3411, %vm3412
        %v3414 = vsel %vm3413, %v3406, %v3410
        %v3415 = vand.u32 2147483647, %v3404
        %vm3416 = vcmp.eq.f32.partialorder %v3415, 8.507059e+37
        %v3417 = vand.u32 %v3404, 2147483648
        %v3418 = vor.u32 1.1754944e-38, %v3417
        %v3419 = vsel %vm3416, %v3418, %v3414
        %v3420 = vmul.f32 1.0, %v3419
        %v3421 = vrcp.pop %v3405
        %v3422 = vmul.f32 %v3405, %v3421
        %v3423 = vsub.f32 1.0, %v3422
        %v3424 = vmul.f32 %v3421, %v3423
        %v3425 = vadd.f32 %v3421, %v3424
        %vm3426 = vweird.f32 %v3405
        %vm3427 = vweird.f32 %v3421
        %vm3428 = vmor %vm3426, %vm3427
        %v3429 = vsel %vm3428, %v3421, %v3425
        %v3430 = vand.u32 2147483647, %v3405
        %vm3431 = vcmp.eq.f32.partialorder %v3430, 8.507059e+37
        %v3432 = vand.u32 %v3405, 2147483648
        %v3433 = vor.u32 1.1754944e-38, %v3432
        %v3434 = vsel %vm3431, %v3433, %v3429
        %v3435 = vmul.f32 1.0, %v3434
        %v3436 = vtanh.pop %v3356
        %v3437 = vtanh.pop %v3357
        %v3438 = vxor.u32 %v3358, 2147483648
        %v3439 = vxor.u32 %v3359, 2147483648
        %v3440 = vmul.f32 %v3438, 1.442695
        %v3441 = vpow.pop %v3440
        %v3442 = vmul.f32 %v3439, 1.442695
        %v3443 = vpow.pop %v3442
        %v3444 = vadd.f32 %v3441, 1.0
        %v3445 = vadd.f32 %v3443, 1.0
        %v3446 = vrcp.pop %v3444
        %v3447 = vmul.f32 %v3444, %v3446
        %v3448 = vsub.f32 1.0, %v3447
        %v3449 = vmul.f32 %v3446, %v3448
        %v3450 = vadd.f32 %v3446, %v3449
        %vm3451 = vweird.f32 %v3444
        %vm3452 = vweird.f32 %v3446
        %vm3453 = vmor %vm3451, %vm3452
        %v3454 = vsel %vm3453, %v3446, %v3450
        %v3455 = vand.u32 2147483647, %v3444
        %vm3456 = vcmp.eq.f32.partialorder %v3455, 8.507059e+37
        %v3457 = vand.u32 %v3444, 2147483648
        %v3458 = vor.u32 1.1754944e-38, %v3457
        %v3459 = vsel %vm3456, %v3458, %v3454
        %v3460 = vmul.f32 1.0, %v3459
        %v3461 = vrcp.pop %v3445
        %v3462 = vmul.f32 %v3445, %v3461
        %v3463 = vsub.f32 1.0, %v3462
        %v3464 = vmul.f32 %v3461, %v3463
        %v3465 = vadd.f32 %v3461, %v3464
        %vm3466 = vweird.f32 %v3445
        %vm3467 = vweird.f32 %v3461
        %vm3468 = vmor %vm3466, %vm3467
        %v3469 = vsel %vm3468, %v3461, %v3465
        %v3470 = vand.u32 2147483647, %v3445
        %vm3471 = vcmp.eq.f32.partialorder %v3470, 8.507059e+37
        %v3472 = vand.u32 %v3445, 2147483648
        %v3473 = vor.u32 1.1754944e-38, %v3472
        %v3474 = vsel %vm3471, %v3473, %v3469
        %v3475 = vmul.f32 1.0, %v3474
        %v3476 = vmul.f32 %v3420, %v3069
        %v3477 = vmul.f32 %v3435, %v3070
        %v3478 = vmul.f32 %v3382, %v3436
        %v3479 = vmul.f32 %v3397, %v3437
        %v3480 = vadd.f32 %v3476, %v3478
        %v3481 = vadd.f32 %v3477, %v3479
        %v3482 = vtanh.pop %v3480
        %v3483 = vtanh.pop %v3481
        %v3484 = vmul.f32 %v3460, %v3482
        %v3485 = vmul.f32 %v3475, %v3483
        %s3486 = smul.u32 %s1842, 5
        %s3487 = sadd.s32 %s792, %s3486
        %s3488 = sshra.s32 %s3487, 3
        %s3489 = sand.u32 %s3487, 7
        %s3490 = sshra.s32 %s3487, 3
        %s3491 = sand.u32 %s3487, 7
        %s3492 = smul.u32 %s3488, 8
        %s3493 = smul.u32 %s3492, 8
        %s3494 = sadd.s32 %s3493, %s3491
        %s3495 = scalar_lea.vmem [#allocation2], %s3494
        %v3496 = vld [vmem:[%s3495] ss:$8 sm:$0xf]
        %v3497 = vld [vmem:[%s3495] ss:$8 sm:$0xf0]
        %v3498 = vor.u32 %v3496, %v3497
        %s3499 = sadd.s32 %s3487, 8
        %s3500 = sshra.s32 %s3499, 3
        %s3501 = sand.u32 %s3499, 7
        %s3502 = sshra.s32 %s3499, 3
        %s3503 = sand.u32 %s3499, 7
        %s3504 = smul.u32 %s3500, 8
        %s3505 = smul.u32 %s3504, 8
        %s3506 = sadd.s32 %s3505, %s3503
        %s3507 = scalar_lea.vmem [#allocation2], %s3506
        %v3508 = vld [vmem:[%s3507] ss:$8 sm:$0xf]
        %v3509 = vld [vmem:[%s3507] ss:$8 sm:$0xf0]
        %v3510 = vor.u32 %v3508, %v3509
        %v3512 = vperm.slane %v3498, 0
        %v3513 = vperm.slane %v3498, 1
        %v3514 = vperm.slane %v3498, 2
        %v3515 = vperm.slane %v3498, 3
        %v3516 = vperm.slane %v3498, 4
        %v3517 = vperm.slane %v3498, 5
        %v3518 = vperm.slane %v3498, 6
        %v3519 = vperm.slane %v3498, 7
        %v3529 = vperm.slane %v3510, 0
        %v3530 = vperm.slane %v3510, 1
        %v3531 = vperm.slane %v3510, 2
        %v3532 = vperm.slane %v3510, 3
        %v3533 = vperm.slane %v3510, 4
        %v3534 = vperm.slane %v3510, 5
        %v3535 = vperm.slane %v3510, 6
        %v3536 = vperm.slane %v3510, 7
        %v3545 = vsel %vm850, %v3512, %v3529
        %v3546 = vsel %vm850, %v3513, %v3530
        %v3547 = vsel %vm850, %v3514, %v3531
        %v3548 = vsel %vm850, %v3515, %v3532
        %v3549 = vsel %vm850, %v3516, %v3533
        %v3550 = vsel %vm850, %v3517, %v3534
        %v3551 = vsel %vm850, %v3518, %v3535
        %v3552 = vsel %vm850, %v3519, %v3536
        %v3553 = vpack.c.bf16 %v3484, %v3484
        %v3554 = vpack.c.bf16 %v3485, %v3485
        %3555 = vmatpush.bf16.msra.mxu0 %v1299
        %3556 = vmatpush.bf16.msra.mxu0 %v1291
        %3557 = vmatpush.bf16.msra.mxu0 %v1283
        %3558 = vmatpush.bf16.msra.mxu0 %v1275
        %3559 = vmatpush.bf16.msra.mxu0 %v1267
        %3560 = vmatpush.bf16.msra.mxu0 %v1259
        %3561 = vmatpush.bf16.msra.mxu0 %v1251
        %3562 = vmatpush.bf16.msra.mxu0 %v1243
        %3563 = vmatmul.bf16.gmra.mxu0 %v3553
        %v3564 = vpop.f32.mrf.mxu0
        %v3565 = vadd.f32 0.0, %v3564
        %v3566 = vpop.f32.mrf.mxu0
        %3567 = vdwg.mxu0
        %3568 = vmatpush.bf16.msra.mxu0 %v1363
        %3569 = vmatpush.bf16.msra.mxu0 %v1355
        %3570 = vmatpush.bf16.msra.mxu0 %v1347
        %3571 = vmatpush.bf16.msra.mxu0 %v1339
        %3572 = vmatpush.bf16.msra.mxu0 %v1331
        %3573 = vmatpush.bf16.msra.mxu0 %v1323
        %3574 = vmatpush.bf16.msra.mxu0 %v1315
        %3575 = vmatpush.bf16.msra.mxu0 %v1307
        %3576 = vmatmul.bf16.gmra.mxu0 %v3554
        %v3577 = vpop.f32.mrf.mxu0
        %v3578 = vadd.f32 %v3565, %v3577
        %v3579 = vpop.f32.mrf.mxu0
        %3580 = vdwg.mxu0
        %3581 = vmatpush.bf16.msra.mxu0 %v1300
        %3582 = vmatpush.bf16.msra.mxu0 %v1292
        %3583 = vmatpush.bf16.msra.mxu0 %v1284
        %3584 = vmatpush.bf16.msra.mxu0 %v1276
        %3585 = vmatpush.bf16.msra.mxu0 %v1268
        %3586 = vmatpush.bf16.msra.mxu0 %v1260
        %3587 = vmatpush.bf16.msra.mxu0 %v1252
        %3588 = vmatpush.bf16.msra.mxu0 %v1244
        %3589 = vmatmul.bf16.gmra.mxu0 %v3553
        %v3590 = vpop.f32.mrf.mxu0
        %v3591 = vadd.f32 0.0, %v3590
        %v3592 = vpop.f32.mrf.mxu0
        %3593 = vdwg.mxu0
        %3594 = vmatpush.bf16.msra.mxu0 %v1364
        %3595 = vmatpush.bf16.msra.mxu0 %v1356
        %3596 = vmatpush.bf16.msra.mxu0 %v1348
        %3597 = vmatpush.bf16.msra.mxu0 %v1340
        %3598 = vmatpush.bf16.msra.mxu0 %v1332
        %3599 = vmatpush.bf16.msra.mxu0 %v1324
        %3600 = vmatpush.bf16.msra.mxu0 %v1316
        %3601 = vmatpush.bf16.msra.mxu0 %v1308
        %3602 = vmatmul.bf16.gmra.mxu0 %v3554
        %v3603 = vpop.f32.mrf.mxu0
        %v3604 = vadd.f32 %v3591, %v3603
        %v3605 = vpop.f32.mrf.mxu0
        %3606 = vdwg.mxu0
        %3607 = vmatpush.bf16.msra.mxu0 %v1301
        %3608 = vmatpush.bf16.msra.mxu0 %v1293
        %3609 = vmatpush.bf16.msra.mxu0 %v1285
        %3610 = vmatpush.bf16.msra.mxu0 %v1277
        %3611 = vmatpush.bf16.msra.mxu0 %v1269
        %3612 = vmatpush.bf16.msra.mxu0 %v1261
        %3613 = vmatpush.bf16.msra.mxu0 %v1253
        %3614 = vmatpush.bf16.msra.mxu0 %v1245
        %3615 = vmatmul.bf16.gmra.mxu0 %v3553
        %v3616 = vpop.f32.mrf.mxu0
        %v3617 = vadd.f32 0.0, %v3616
        %v3618 = vpop.f32.mrf.mxu0
        %3619 = vdwg.mxu0
        %3620 = vmatpush.bf16.msra.mxu0 %v1365
        %3621 = vmatpush.bf16.msra.mxu0 %v1357
        %3622 = vmatpush.bf16.msra.mxu0 %v1349
        %3623 = vmatpush.bf16.msra.mxu0 %v1341
        %3624 = vmatpush.bf16.msra.mxu0 %v1333
        %3625 = vmatpush.bf16.msra.mxu0 %v1325
        %3626 = vmatpush.bf16.msra.mxu0 %v1317
        %3627 = vmatpush.bf16.msra.mxu0 %v1309
        %3628 = vmatmul.bf16.gmra.mxu0 %v3554
        %v3629 = vpop.f32.mrf.mxu0
        %v3630 = vadd.f32 %v3617, %v3629
        %v3631 = vpop.f32.mrf.mxu0
        %3632 = vdwg.mxu0
        %3633 = vmatpush.bf16.msra.mxu0 %v1302
        %3634 = vmatpush.bf16.msra.mxu0 %v1294
        %3635 = vmatpush.bf16.msra.mxu0 %v1286
        %3636 = vmatpush.bf16.msra.mxu0 %v1278
        %3637 = vmatpush.bf16.msra.mxu0 %v1270
        %3638 = vmatpush.bf16.msra.mxu0 %v1262
        %3639 = vmatpush.bf16.msra.mxu0 %v1254
        %3640 = vmatpush.bf16.msra.mxu0 %v1246
        %3641 = vmatmul.bf16.gmra.mxu0 %v3553
        %v3642 = vpop.f32.mrf.mxu0
        %v3643 = vadd.f32 0.0, %v3642
        %v3644 = vpop.f32.mrf.mxu0
        %3645 = vdwg.mxu0
        %3646 = vmatpush.bf16.msra.mxu0 %v1366
        %3647 = vmatpush.bf16.msra.mxu0 %v1358
        %3648 = vmatpush.bf16.msra.mxu0 %v1350
        %3649 = vmatpush.bf16.msra.mxu0 %v1342
        %3650 = vmatpush.bf16.msra.mxu0 %v1334
        %3651 = vmatpush.bf16.msra.mxu0 %v1326
        %3652 = vmatpush.bf16.msra.mxu0 %v1318
        %3653 = vmatpush.bf16.msra.mxu0 %v1310
        %3654 = vmatmul.bf16.gmra.mxu0 %v3554
        %v3655 = vpop.f32.mrf.mxu0
        %v3656 = vadd.f32 %v3643, %v3655
        %v3657 = vpop.f32.mrf.mxu0
        %3658 = vdwg.mxu0
        %3659 = vmatpush.bf16.msra.mxu0 %v1303
        %3660 = vmatpush.bf16.msra.mxu0 %v1295
        %3661 = vmatpush.bf16.msra.mxu0 %v1287
        %3662 = vmatpush.bf16.msra.mxu0 %v1279
        %3663 = vmatpush.bf16.msra.mxu0 %v1271
        %3664 = vmatpush.bf16.msra.mxu0 %v1263
        %3665 = vmatpush.bf16.msra.mxu0 %v1255
        %3666 = vmatpush.bf16.msra.mxu0 %v1247
        %3667 = vmatmul.bf16.gmra.mxu0 %v3553
        %v3668 = vpop.f32.mrf.mxu0
        %v3669 = vadd.f32 0.0, %v3668
        %v3670 = vpop.f32.mrf.mxu0
        %3671 = vdwg.mxu0
        %3672 = vmatpush.bf16.msra.mxu0 %v1367
        %3673 = vmatpush.bf16.msra.mxu0 %v1359
        %3674 = vmatpush.bf16.msra.mxu0 %v1351
        %3675 = vmatpush.bf16.msra.mxu0 %v1343
        %3676 = vmatpush.bf16.msra.mxu0 %v1335
        %3677 = vmatpush.bf16.msra.mxu0 %v1327
        %3678 = vmatpush.bf16.msra.mxu0 %v1319
        %3679 = vmatpush.bf16.msra.mxu0 %v1311
        %3680 = vmatmul.bf16.gmra.mxu0 %v3554
        %v3681 = vpop.f32.mrf.mxu0
        %v3682 = vadd.f32 %v3669, %v3681
        %v3683 = vpop.f32.mrf.mxu0
        %3684 = vdwg.mxu0
        %3685 = vmatpush.bf16.msra.mxu0 %v1304
        %3686 = vmatpush.bf16.msra.mxu0 %v1296
        %3687 = vmatpush.bf16.msra.mxu0 %v1288
        %3688 = vmatpush.bf16.msra.mxu0 %v1280
        %3689 = vmatpush.bf16.msra.mxu0 %v1272
        %3690 = vmatpush.bf16.msra.mxu0 %v1264
        %3691 = vmatpush.bf16.msra.mxu0 %v1256
        %3692 = vmatpush.bf16.msra.mxu0 %v1248
        %3693 = vmatmul.bf16.gmra.mxu0 %v3553
        %v3694 = vpop.f32.mrf.mxu0
        %v3695 = vadd.f32 0.0, %v3694
        %v3696 = vpop.f32.mrf.mxu0
        %3697 = vdwg.mxu0
        %3698 = vmatpush.bf16.msra.mxu0 %v1368
        %3699 = vmatpush.bf16.msra.mxu0 %v1360
        %3700 = vmatpush.bf16.msra.mxu0 %v1352
        %3701 = vmatpush.bf16.msra.mxu0 %v1344
        %3702 = vmatpush.bf16.msra.mxu0 %v1336
        %3703 = vmatpush.bf16.msra.mxu0 %v1328
        %3704 = vmatpush.bf16.msra.mxu0 %v1320
        %3705 = vmatpush.bf16.msra.mxu0 %v1312
        %3706 = vmatmul.bf16.gmra.mxu0 %v3554
        %v3707 = vpop.f32.mrf.mxu0
        %v3708 = vadd.f32 %v3695, %v3707
        %v3709 = vpop.f32.mrf.mxu0
        %3710 = vdwg.mxu0
        %3711 = vmatpush.bf16.msra.mxu0 %v1305
        %3712 = vmatpush.bf16.msra.mxu0 %v1297
        %3713 = vmatpush.bf16.msra.mxu0 %v1289
        %3714 = vmatpush.bf16.msra.mxu0 %v1281
        %3715 = vmatpush.bf16.msra.mxu0 %v1273
        %3716 = vmatpush.bf16.msra.mxu0 %v1265
        %3717 = vmatpush.bf16.msra.mxu0 %v1257
        %3718 = vmatpush.bf16.msra.mxu0 %v1249
        %3719 = vmatmul.bf16.gmra.mxu0 %v3553
        %v3720 = vpop.f32.mrf.mxu0
        %v3721 = vadd.f32 0.0, %v3720
        %v3722 = vpop.f32.mrf.mxu0
        %3723 = vdwg.mxu0
        %3724 = vmatpush.bf16.msra.mxu0 %v1369
        %3725 = vmatpush.bf16.msra.mxu0 %v1361
        %3726 = vmatpush.bf16.msra.mxu0 %v1353
        %3727 = vmatpush.bf16.msra.mxu0 %v1345
        %3728 = vmatpush.bf16.msra.mxu0 %v1337
        %3729 = vmatpush.bf16.msra.mxu0 %v1329
        %3730 = vmatpush.bf16.msra.mxu0 %v1321
        %3731 = vmatpush.bf16.msra.mxu0 %v1313
        %3732 = vmatmul.bf16.gmra.mxu0 %v3554
        %v3733 = vpop.f32.mrf.mxu0
        %v3734 = vadd.f32 %v3721, %v3733
        %v3735 = vpop.f32.mrf.mxu0
        %3736 = vdwg.mxu0
        %3737 = vmatpush.bf16.msra.mxu0 %v1306
        %3738 = vmatpush.bf16.msra.mxu0 %v1298
        %3739 = vmatpush.bf16.msra.mxu0 %v1290
        %3740 = vmatpush.bf16.msra.mxu0 %v1282
        %3741 = vmatpush.bf16.msra.mxu0 %v1274
        %3742 = vmatpush.bf16.msra.mxu0 %v1266
        %3743 = vmatpush.bf16.msra.mxu0 %v1258
        %3744 = vmatpush.bf16.msra.mxu0 %v1250
        %3745 = vmatmul.bf16.gmra.mxu0 %v3553
        %v3746 = vpop.f32.mrf.mxu0
        %v3747 = vadd.f32 0.0, %v3746
        %v3748 = vpop.f32.mrf.mxu0
        %3749 = vdwg.mxu0
        %3750 = vmatpush.bf16.msra.mxu0 %v1370
        %3751 = vmatpush.bf16.msra.mxu0 %v1362
        %3752 = vmatpush.bf16.msra.mxu0 %v1354
        %3753 = vmatpush.bf16.msra.mxu0 %v1346
        %3754 = vmatpush.bf16.msra.mxu0 %v1338
        %3755 = vmatpush.bf16.msra.mxu0 %v1330
        %3756 = vmatpush.bf16.msra.mxu0 %v1322
        %3757 = vmatpush.bf16.msra.mxu0 %v1314
        %3758 = vmatmul.bf16.gmra.mxu0 %v3554
        %v3759 = vpop.f32.mrf.mxu0
        %v3760 = vadd.f32 %v3747, %v3759
        %v3761 = vpop.f32.mrf.mxu0
        %3762 = vdwg.mxu0
        %v3763 = vadd.f32 %v3545, %v3578
        %v3764 = vadd.f32 %v3546, %v3604
        %v3765 = vadd.f32 %v3547, %v3630
        %v3766 = vadd.f32 %v3548, %v3656
        %v3767 = vadd.f32 %v3549, %v3682
        %v3768 = vadd.f32 %v3550, %v3708
        %v3769 = vadd.f32 %v3551, %v3734
        %v3770 = vadd.f32 %v3552, %v3760
        %v3771 = vxor.u32 %v3763, 2147483648
        %v3772 = vxor.u32 %v3764, 2147483648
        %v3773 = vmul.f32 %v3771, 1.442695
        %v3774 = vpow.pop %v3773
        %v3775 = vmul.f32 %v3772, 1.442695
        %v3776 = vpow.pop %v3775
        %v3777 = vadd.f32 %v3774, 1.0
        %v3778 = vadd.f32 %v3776, 1.0
        %v3779 = vrcp.pop %v3777
        %v3780 = vmul.f32 %v3777, %v3779
        %v3781 = vsub.f32 1.0, %v3780
        %v3782 = vmul.f32 %v3779, %v3781
        %v3783 = vadd.f32 %v3779, %v3782
        %vm3784 = vweird.f32 %v3777
        %vm3785 = vweird.f32 %v3779
        %vm3786 = vmor %vm3784, %vm3785
        %v3787 = vsel %vm3786, %v3779, %v3783
        %v3788 = vand.u32 2147483647, %v3777
        %vm3789 = vcmp.eq.f32.partialorder %v3788, 8.507059e+37
        %v3790 = vand.u32 %v3777, 2147483648
        %v3791 = vor.u32 1.1754944e-38, %v3790
        %v3792 = vsel %vm3789, %v3791, %v3787
        %v3793 = vmul.f32 1.0, %v3792
        %v3794 = vrcp.pop %v3778
        %v3795 = vmul.f32 %v3778, %v3794
        %v3796 = vsub.f32 1.0, %v3795
        %v3797 = vmul.f32 %v3794, %v3796
        %v3798 = vadd.f32 %v3794, %v3797
        %vm3799 = vweird.f32 %v3778
        %vm3800 = vweird.f32 %v3794
        %vm3801 = vmor %vm3799, %vm3800
        %v3802 = vsel %vm3801, %v3794, %v3798
        %v3803 = vand.u32 2147483647, %v3778
        %vm3804 = vcmp.eq.f32.partialorder %v3803, 8.507059e+37
        %v3805 = vand.u32 %v3778, 2147483648
        %v3806 = vor.u32 1.1754944e-38, %v3805
        %v3807 = vsel %vm3804, %v3806, %v3802
        %v3808 = vmul.f32 1.0, %v3807
        %v3809 = vxor.u32 %v3765, 2147483648
        %v3810 = vxor.u32 %v3766, 2147483648
        %v3811 = vmul.f32 %v3809, 1.442695
        %v3812 = vpow.pop %v3811
        %v3813 = vmul.f32 %v3810, 1.442695
        %v3814 = vpow.pop %v3813
        %v3815 = vadd.f32 %v3812, 1.0
        %v3816 = vadd.f32 %v3814, 1.0
        %v3817 = vrcp.pop %v3815
        %v3818 = vmul.f32 %v3815, %v3817
        %v3819 = vsub.f32 1.0, %v3818
        %v3820 = vmul.f32 %v3817, %v3819
        %v3821 = vadd.f32 %v3817, %v3820
        %vm3822 = vweird.f32 %v3815
        %vm3823 = vweird.f32 %v3817
        %vm3824 = vmor %vm3822, %vm3823
        %v3825 = vsel %vm3824, %v3817, %v3821
        %v3826 = vand.u32 2147483647, %v3815
        %vm3827 = vcmp.eq.f32.partialorder %v3826, 8.507059e+37
        %v3828 = vand.u32 %v3815, 2147483648
        %v3829 = vor.u32 1.1754944e-38, %v3828
        %v3830 = vsel %vm3827, %v3829, %v3825
        %v3831 = vmul.f32 1.0, %v3830
        %v3832 = vrcp.pop %v3816
        %v3833 = vmul.f32 %v3816, %v3832
        %v3834 = vsub.f32 1.0, %v3833
        %v3835 = vmul.f32 %v3832, %v3834
        %v3836 = vadd.f32 %v3832, %v3835
        %vm3837 = vweird.f32 %v3816
        %vm3838 = vweird.f32 %v3832
        %vm3839 = vmor %vm3837, %vm3838
        %v3840 = vsel %vm3839, %v3832, %v3836
        %v3841 = vand.u32 2147483647, %v3816
        %vm3842 = vcmp.eq.f32.partialorder %v3841, 8.507059e+37
        %v3843 = vand.u32 %v3816, 2147483648
        %v3844 = vor.u32 1.1754944e-38, %v3843
        %v3845 = vsel %vm3842, %v3844, %v3840
        %v3846 = vmul.f32 1.0, %v3845
        %v3847 = vtanh.pop %v3767
        %v3848 = vtanh.pop %v3768
        %v3849 = vxor.u32 %v3769, 2147483648
        %v3850 = vxor.u32 %v3770, 2147483648
        %v3851 = vmul.f32 %v3849, 1.442695
        %v3852 = vpow.pop %v3851
        %v3853 = vmul.f32 %v3850, 1.442695
        %v3854 = vpow.pop %v3853
        %v3855 = vadd.f32 %v3852, 1.0
        %v3856 = vadd.f32 %v3854, 1.0
        %v3857 = vrcp.pop %v3855
        %v3858 = vmul.f32 %v3855, %v3857
        %v3859 = vsub.f32 1.0, %v3858
        %v3860 = vmul.f32 %v3857, %v3859
        %v3861 = vadd.f32 %v3857, %v3860
        %vm3862 = vweird.f32 %v3855
        %vm3863 = vweird.f32 %v3857
        %vm3864 = vmor %vm3862, %vm3863
        %v3865 = vsel %vm3864, %v3857, %v3861
        %v3866 = vand.u32 2147483647, %v3855
        %vm3867 = vcmp.eq.f32.partialorder %v3866, 8.507059e+37
        %v3868 = vand.u32 %v3855, 2147483648
        %v3869 = vor.u32 1.1754944e-38, %v3868
        %v3870 = vsel %vm3867, %v3869, %v3865
        %v3871 = vmul.f32 1.0, %v3870
        %v3872 = vrcp.pop %v3856
        %v3873 = vmul.f32 %v3856, %v3872
        %v3874 = vsub.f32 1.0, %v3873
        %v3875 = vmul.f32 %v3872, %v3874
        %v3876 = vadd.f32 %v3872, %v3875
        %vm3877 = vweird.f32 %v3856
        %vm3878 = vweird.f32 %v3872
        %vm3879 = vmor %vm3877, %vm3878
        %v3880 = vsel %vm3879, %v3872, %v3876
        %v3881 = vand.u32 2147483647, %v3856
        %vm3882 = vcmp.eq.f32.partialorder %v3881, 8.507059e+37
        %v3883 = vand.u32 %v3856, 2147483648
        %v3884 = vor.u32 1.1754944e-38, %v3883
        %v3885 = vsel %vm3882, %v3884, %v3880
        %v3886 = vmul.f32 1.0, %v3885
        %v3887 = vmul.f32 %v3831, %v3480
        %v3888 = vmul.f32 %v3846, %v3481
        %v3889 = vmul.f32 %v3793, %v3847
        %v3890 = vmul.f32 %v3808, %v3848
        %v3891 = vadd.f32 %v3887, %v3889
        %v3892 = vadd.f32 %v3888, %v3890
        %v3893 = vtanh.pop %v3891
        %v3894 = vtanh.pop %v3892
        %v3895 = vmul.f32 %v3871, %v3893
        %v3896 = vmul.f32 %v3886, %v3894
        %s3897 = smul.u32 %s1842, 6
        %s3898 = sadd.s32 %s792, %s3897
        %s3899 = sshra.s32 %s3898, 3
        %s3900 = sand.u32 %s3898, 7
        %s3901 = sshra.s32 %s3898, 3
        %s3902 = sand.u32 %s3898, 7
        %s3903 = smul.u32 %s3899, 8
        %s3904 = smul.u32 %s3903, 8
        %s3905 = sadd.s32 %s3904, %s3902
        %s3906 = scalar_lea.vmem [#allocation2], %s3905
        %v3907 = vld [vmem:[%s3906] ss:$8 sm:$0xf]
        %v3908 = vld [vmem:[%s3906] ss:$8 sm:$0xf0]
        %v3909 = vor.u32 %v3907, %v3908
        %s3910 = sadd.s32 %s3898, 8
        %s3911 = sshra.s32 %s3910, 3
        %s3912 = sand.u32 %s3910, 7
        %s3913 = sshra.s32 %s3910, 3
        %s3914 = sand.u32 %s3910, 7
        %s3915 = smul.u32 %s3911, 8
        %s3916 = smul.u32 %s3915, 8
        %s3917 = sadd.s32 %s3916, %s3914
        %s3918 = scalar_lea.vmem [#allocation2], %s3917
        %v3919 = vld [vmem:[%s3918] ss:$8 sm:$0xf]
        %v3920 = vld [vmem:[%s3918] ss:$8 sm:$0xf0]
        %v3921 = vor.u32 %v3919, %v3920
        %v3923 = vperm.slane %v3909, 0
        %v3924 = vperm.slane %v3909, 1
        %v3925 = vperm.slane %v3909, 2
        %v3926 = vperm.slane %v3909, 3
        %v3927 = vperm.slane %v3909, 4
        %v3928 = vperm.slane %v3909, 5
        %v3929 = vperm.slane %v3909, 6
        %v3930 = vperm.slane %v3909, 7
        %v3940 = vperm.slane %v3921, 0
        %v3941 = vperm.slane %v3921, 1
        %v3942 = vperm.slane %v3921, 2
        %v3943 = vperm.slane %v3921, 3
        %v3944 = vperm.slane %v3921, 4
        %v3945 = vperm.slane %v3921, 5
        %v3946 = vperm.slane %v3921, 6
        %v3947 = vperm.slane %v3921, 7
        %v3956 = vsel %vm850, %v3923, %v3940
        %v3957 = vsel %vm850, %v3924, %v3941
        %v3958 = vsel %vm850, %v3925, %v3942
        %v3959 = vsel %vm850, %v3926, %v3943
        %v3960 = vsel %vm850, %v3927, %v3944
        %v3961 = vsel %vm850, %v3928, %v3945
        %v3962 = vsel %vm850, %v3929, %v3946
        %v3963 = vsel %vm850, %v3930, %v3947
        %v3964 = vpack.c.bf16 %v3895, %v3895
        %v3965 = vpack.c.bf16 %v3896, %v3896
        %3966 = vmatpush.bf16.msra.mxu0 %v1299
        %3967 = vmatpush.bf16.msra.mxu0 %v1291
        %3968 = vmatpush.bf16.msra.mxu0 %v1283
        %3969 = vmatpush.bf16.msra.mxu0 %v1275
        %3970 = vmatpush.bf16.msra.mxu0 %v1267
        %3971 = vmatpush.bf16.msra.mxu0 %v1259
        %3972 = vmatpush.bf16.msra.mxu0 %v1251
        %3973 = vmatpush.bf16.msra.mxu0 %v1243
        %3974 = vmatmul.bf16.gmra.mxu0 %v3964
        %v3975 = vpop.f32.mrf.mxu0
        %v3976 = vadd.f32 0.0, %v3975
        %v3977 = vpop.f32.mrf.mxu0
        %3978 = vdwg.mxu0
        %3979 = vmatpush.bf16.msra.mxu0 %v1363
        %3980 = vmatpush.bf16.msra.mxu0 %v1355
        %3981 = vmatpush.bf16.msra.mxu0 %v1347
        %3982 = vmatpush.bf16.msra.mxu0 %v1339
        %3983 = vmatpush.bf16.msra.mxu0 %v1331
        %3984 = vmatpush.bf16.msra.mxu0 %v1323
        %3985 = vmatpush.bf16.msra.mxu0 %v1315
        %3986 = vmatpush.bf16.msra.mxu0 %v1307
        %3987 = vmatmul.bf16.gmra.mxu0 %v3965
        %v3988 = vpop.f32.mrf.mxu0
        %v3989 = vadd.f32 %v3976, %v3988
        %v3990 = vpop.f32.mrf.mxu0
        %3991 = vdwg.mxu0
        %3992 = vmatpush.bf16.msra.mxu0 %v1300
        %3993 = vmatpush.bf16.msra.mxu0 %v1292
        %3994 = vmatpush.bf16.msra.mxu0 %v1284
        %3995 = vmatpush.bf16.msra.mxu0 %v1276
        %3996 = vmatpush.bf16.msra.mxu0 %v1268
        %3997 = vmatpush.bf16.msra.mxu0 %v1260
        %3998 = vmatpush.bf16.msra.mxu0 %v1252
        %3999 = vmatpush.bf16.msra.mxu0 %v1244
        %4000 = vmatmul.bf16.gmra.mxu0 %v3964
        %v4001 = vpop.f32.mrf.mxu0
        %v4002 = vadd.f32 0.0, %v4001
        %v4003 = vpop.f32.mrf.mxu0
        %4004 = vdwg.mxu0
        %4005 = vmatpush.bf16.msra.mxu0 %v1364
        %4006 = vmatpush.bf16.msra.mxu0 %v1356
        %4007 = vmatpush.bf16.msra.mxu0 %v1348
        %4008 = vmatpush.bf16.msra.mxu0 %v1340
        %4009 = vmatpush.bf16.msra.mxu0 %v1332
        %4010 = vmatpush.bf16.msra.mxu0 %v1324
        %4011 = vmatpush.bf16.msra.mxu0 %v1316
        %4012 = vmatpush.bf16.msra.mxu0 %v1308
        %4013 = vmatmul.bf16.gmra.mxu0 %v3965
        %v4014 = vpop.f32.mrf.mxu0
        %v4015 = vadd.f32 %v4002, %v4014
        %v4016 = vpop.f32.mrf.mxu0
        %4017 = vdwg.mxu0
        %4018 = vmatpush.bf16.msra.mxu0 %v1301
        %4019 = vmatpush.bf16.msra.mxu0 %v1293
        %4020 = vmatpush.bf16.msra.mxu0 %v1285
        %4021 = vmatpush.bf16.msra.mxu0 %v1277
        %4022 = vmatpush.bf16.msra.mxu0 %v1269
        %4023 = vmatpush.bf16.msra.mxu0 %v1261
        %4024 = vmatpush.bf16.msra.mxu0 %v1253
        %4025 = vmatpush.bf16.msra.mxu0 %v1245
        %4026 = vmatmul.bf16.gmra.mxu0 %v3964
        %v4027 = vpop.f32.mrf.mxu0
        %v4028 = vadd.f32 0.0, %v4027
        %v4029 = vpop.f32.mrf.mxu0
        %4030 = vdwg.mxu0
        %4031 = vmatpush.bf16.msra.mxu0 %v1365
        %4032 = vmatpush.bf16.msra.mxu0 %v1357
        %4033 = vmatpush.bf16.msra.mxu0 %v1349
        %4034 = vmatpush.bf16.msra.mxu0 %v1341
        %4035 = vmatpush.bf16.msra.mxu0 %v1333
        %4036 = vmatpush.bf16.msra.mxu0 %v1325
        %4037 = vmatpush.bf16.msra.mxu0 %v1317
        %4038 = vmatpush.bf16.msra.mxu0 %v1309
        %4039 = vmatmul.bf16.gmra.mxu0 %v3965
        %v4040 = vpop.f32.mrf.mxu0
        %v4041 = vadd.f32 %v4028, %v4040
        %v4042 = vpop.f32.mrf.mxu0
        %4043 = vdwg.mxu0
        %4044 = vmatpush.bf16.msra.mxu0 %v1302
        %4045 = vmatpush.bf16.msra.mxu0 %v1294
        %4046 = vmatpush.bf16.msra.mxu0 %v1286
        %4047 = vmatpush.bf16.msra.mxu0 %v1278
        %4048 = vmatpush.bf16.msra.mxu0 %v1270
        %4049 = vmatpush.bf16.msra.mxu0 %v1262
        %4050 = vmatpush.bf16.msra.mxu0 %v1254
        %4051 = vmatpush.bf16.msra.mxu0 %v1246
        %4052 = vmatmul.bf16.gmra.mxu0 %v3964
        %v4053 = vpop.f32.mrf.mxu0
        %v4054 = vadd.f32 0.0, %v4053
        %v4055 = vpop.f32.mrf.mxu0
        %4056 = vdwg.mxu0
        %4057 = vmatpush.bf16.msra.mxu0 %v1366
        %4058 = vmatpush.bf16.msra.mxu0 %v1358
        %4059 = vmatpush.bf16.msra.mxu0 %v1350
        %4060 = vmatpush.bf16.msra.mxu0 %v1342
        %4061 = vmatpush.bf16.msra.mxu0 %v1334
        %4062 = vmatpush.bf16.msra.mxu0 %v1326
        %4063 = vmatpush.bf16.msra.mxu0 %v1318
        %4064 = vmatpush.bf16.msra.mxu0 %v1310
        %4065 = vmatmul.bf16.gmra.mxu0 %v3965
        %v4066 = vpop.f32.mrf.mxu0
        %v4067 = vadd.f32 %v4054, %v4066
        %v4068 = vpop.f32.mrf.mxu0
        %4069 = vdwg.mxu0
        %4070 = vmatpush.bf16.msra.mxu0 %v1303
        %4071 = vmatpush.bf16.msra.mxu0 %v1295
        %4072 = vmatpush.bf16.msra.mxu0 %v1287
        %4073 = vmatpush.bf16.msra.mxu0 %v1279
        %4074 = vmatpush.bf16.msra.mxu0 %v1271
        %4075 = vmatpush.bf16.msra.mxu0 %v1263
        %4076 = vmatpush.bf16.msra.mxu0 %v1255
        %4077 = vmatpush.bf16.msra.mxu0 %v1247
        %4078 = vmatmul.bf16.gmra.mxu0 %v3964
        %v4079 = vpop.f32.mrf.mxu0
        %v4080 = vadd.f32 0.0, %v4079
        %v4081 = vpop.f32.mrf.mxu0
        %4082 = vdwg.mxu0
        %4083 = vmatpush.bf16.msra.mxu0 %v1367
        %4084 = vmatpush.bf16.msra.mxu0 %v1359
        %4085 = vmatpush.bf16.msra.mxu0 %v1351
        %4086 = vmatpush.bf16.msra.mxu0 %v1343
        %4087 = vmatpush.bf16.msra.mxu0 %v1335
        %4088 = vmatpush.bf16.msra.mxu0 %v1327
        %4089 = vmatpush.bf16.msra.mxu0 %v1319
        %4090 = vmatpush.bf16.msra.mxu0 %v1311
        %4091 = vmatmul.bf16.gmra.mxu0 %v3965
        %v4092 = vpop.f32.mrf.mxu0
        %v4093 = vadd.f32 %v4080, %v4092
        %v4094 = vpop.f32.mrf.mxu0
        %4095 = vdwg.mxu0
        %4096 = vmatpush.bf16.msra.mxu0 %v1304
        %4097 = vmatpush.bf16.msra.mxu0 %v1296
        %4098 = vmatpush.bf16.msra.mxu0 %v1288
        %4099 = vmatpush.bf16.msra.mxu0 %v1280
        %4100 = vmatpush.bf16.msra.mxu0 %v1272
        %4101 = vmatpush.bf16.msra.mxu0 %v1264
        %4102 = vmatpush.bf16.msra.mxu0 %v1256
        %4103 = vmatpush.bf16.msra.mxu0 %v1248
        %4104 = vmatmul.bf16.gmra.mxu0 %v3964
        %v4105 = vpop.f32.mrf.mxu0
        %v4106 = vadd.f32 0.0, %v4105
        %v4107 = vpop.f32.mrf.mxu0
        %4108 = vdwg.mxu0
        %4109 = vmatpush.bf16.msra.mxu0 %v1368
        %4110 = vmatpush.bf16.msra.mxu0 %v1360
        %4111 = vmatpush.bf16.msra.mxu0 %v1352
        %4112 = vmatpush.bf16.msra.mxu0 %v1344
        %4113 = vmatpush.bf16.msra.mxu0 %v1336
        %4114 = vmatpush.bf16.msra.mxu0 %v1328
        %4115 = vmatpush.bf16.msra.mxu0 %v1320
        %4116 = vmatpush.bf16.msra.mxu0 %v1312
        %4117 = vmatmul.bf16.gmra.mxu0 %v3965
        %v4118 = vpop.f32.mrf.mxu0
        %v4119 = vadd.f32 %v4106, %v4118
        %v4120 = vpop.f32.mrf.mxu0
        %4121 = vdwg.mxu0
        %4122 = vmatpush.bf16.msra.mxu0 %v1305
        %4123 = vmatpush.bf16.msra.mxu0 %v1297
        %4124 = vmatpush.bf16.msra.mxu0 %v1289
        %4125 = vmatpush.bf16.msra.mxu0 %v1281
        %4126 = vmatpush.bf16.msra.mxu0 %v1273
        %4127 = vmatpush.bf16.msra.mxu0 %v1265
        %4128 = vmatpush.bf16.msra.mxu0 %v1257
        %4129 = vmatpush.bf16.msra.mxu0 %v1249
        %4130 = vmatmul.bf16.gmra.mxu0 %v3964
        %v4131 = vpop.f32.mrf.mxu0
        %v4132 = vadd.f32 0.0, %v4131
        %v4133 = vpop.f32.mrf.mxu0
        %4134 = vdwg.mxu0
        %4135 = vmatpush.bf16.msra.mxu0 %v1369
        %4136 = vmatpush.bf16.msra.mxu0 %v1361
        %4137 = vmatpush.bf16.msra.mxu0 %v1353
        %4138 = vmatpush.bf16.msra.mxu0 %v1345
        %4139 = vmatpush.bf16.msra.mxu0 %v1337
        %4140 = vmatpush.bf16.msra.mxu0 %v1329
        %4141 = vmatpush.bf16.msra.mxu0 %v1321
        %4142 = vmatpush.bf16.msra.mxu0 %v1313
        %4143 = vmatmul.bf16.gmra.mxu0 %v3965
        %v4144 = vpop.f32.mrf.mxu0
        %v4145 = vadd.f32 %v4132, %v4144
        %v4146 = vpop.f32.mrf.mxu0
        %4147 = vdwg.mxu0
        %4148 = vmatpush.bf16.msra.mxu0 %v1306
        %4149 = vmatpush.bf16.msra.mxu0 %v1298
        %4150 = vmatpush.bf16.msra.mxu0 %v1290
        %4151 = vmatpush.bf16.msra.mxu0 %v1282
        %4152 = vmatpush.bf16.msra.mxu0 %v1274
        %4153 = vmatpush.bf16.msra.mxu0 %v1266
        %4154 = vmatpush.bf16.msra.mxu0 %v1258
        %4155 = vmatpush.bf16.msra.mxu0 %v1250
        %4156 = vmatmul.bf16.gmra.mxu0 %v3964
        %v4157 = vpop.f32.mrf.mxu0
        %v4158 = vadd.f32 0.0, %v4157
        %v4159 = vpop.f32.mrf.mxu0
        %4160 = vdwg.mxu0
        %4161 = vmatpush.bf16.msra.mxu0 %v1370
        %4162 = vmatpush.bf16.msra.mxu0 %v1362
        %4163 = vmatpush.bf16.msra.mxu0 %v1354
        %4164 = vmatpush.bf16.msra.mxu0 %v1346
        %4165 = vmatpush.bf16.msra.mxu0 %v1338
        %4166 = vmatpush.bf16.msra.mxu0 %v1330
        %4167 = vmatpush.bf16.msra.mxu0 %v1322
        %4168 = vmatpush.bf16.msra.mxu0 %v1314
        %4169 = vmatmul.bf16.gmra.mxu0 %v3965
        %v4170 = vpop.f32.mrf.mxu0
        %v4171 = vadd.f32 %v4158, %v4170
        %v4172 = vpop.f32.mrf.mxu0
        %4173 = vdwg.mxu0
        %v4174 = vadd.f32 %v3956, %v3989
        %v4175 = vadd.f32 %v3957, %v4015
        %v4176 = vadd.f32 %v3958, %v4041
        %v4177 = vadd.f32 %v3959, %v4067
        %v4178 = vadd.f32 %v3960, %v4093
        %v4179 = vadd.f32 %v3961, %v4119
        %v4180 = vadd.f32 %v3962, %v4145
        %v4181 = vadd.f32 %v3963, %v4171
        %v4182 = vxor.u32 %v4174, 2147483648
        %v4183 = vxor.u32 %v4175, 2147483648
        %v4184 = vmul.f32 %v4182, 1.442695
        %v4185 = vpow.pop %v4184
        %v4186 = vmul.f32 %v4183, 1.442695
        %v4187 = vpow.pop %v4186
        %v4188 = vadd.f32 %v4185, 1.0
        %v4189 = vadd.f32 %v4187, 1.0
        %v4190 = vrcp.pop %v4188
        %v4191 = vmul.f32 %v4188, %v4190
        %v4192 = vsub.f32 1.0, %v4191
        %v4193 = vmul.f32 %v4190, %v4192
        %v4194 = vadd.f32 %v4190, %v4193
        %vm4195 = vweird.f32 %v4188
        %vm4196 = vweird.f32 %v4190
        %vm4197 = vmor %vm4195, %vm4196
        %v4198 = vsel %vm4197, %v4190, %v4194
        %v4199 = vand.u32 2147483647, %v4188
        %vm4200 = vcmp.eq.f32.partialorder %v4199, 8.507059e+37
        %v4201 = vand.u32 %v4188, 2147483648
        %v4202 = vor.u32 1.1754944e-38, %v4201
        %v4203 = vsel %vm4200, %v4202, %v4198
        %v4204 = vmul.f32 1.0, %v4203
        %v4205 = vrcp.pop %v4189
        %v4206 = vmul.f32 %v4189, %v4205
        %v4207 = vsub.f32 1.0, %v4206
        %v4208 = vmul.f32 %v4205, %v4207
        %v4209 = vadd.f32 %v4205, %v4208
        %vm4210 = vweird.f32 %v4189
        %vm4211 = vweird.f32 %v4205
        %vm4212 = vmor %vm4210, %vm4211
        %v4213 = vsel %vm4212, %v4205, %v4209
        %v4214 = vand.u32 2147483647, %v4189
        %vm4215 = vcmp.eq.f32.partialorder %v4214, 8.507059e+37
        %v4216 = vand.u32 %v4189, 2147483648
        %v4217 = vor.u32 1.1754944e-38, %v4216
        %v4218 = vsel %vm4215, %v4217, %v4213
        %v4219 = vmul.f32 1.0, %v4218
        %v4220 = vxor.u32 %v4176, 2147483648
        %v4221 = vxor.u32 %v4177, 2147483648
        %v4222 = vmul.f32 %v4220, 1.442695
        %v4223 = vpow.pop %v4222
        %v4224 = vmul.f32 %v4221, 1.442695
        %v4225 = vpow.pop %v4224
        %v4226 = vadd.f32 %v4223, 1.0
        %v4227 = vadd.f32 %v4225, 1.0
        %v4228 = vrcp.pop %v4226
        %v4229 = vmul.f32 %v4226, %v4228
        %v4230 = vsub.f32 1.0, %v4229
        %v4231 = vmul.f32 %v4228, %v4230
        %v4232 = vadd.f32 %v4228, %v4231
        %vm4233 = vweird.f32 %v4226
        %vm4234 = vweird.f32 %v4228
        %vm4235 = vmor %vm4233, %vm4234
        %v4236 = vsel %vm4235, %v4228, %v4232
        %v4237 = vand.u32 2147483647, %v4226
        %vm4238 = vcmp.eq.f32.partialorder %v4237, 8.507059e+37
        %v4239 = vand.u32 %v4226, 2147483648
        %v4240 = vor.u32 1.1754944e-38, %v4239
        %v4241 = vsel %vm4238, %v4240, %v4236
        %v4242 = vmul.f32 1.0, %v4241
        %v4243 = vrcp.pop %v4227
        %v4244 = vmul.f32 %v4227, %v4243
        %v4245 = vsub.f32 1.0, %v4244
        %v4246 = vmul.f32 %v4243, %v4245
        %v4247 = vadd.f32 %v4243, %v4246
        %vm4248 = vweird.f32 %v4227
        %vm4249 = vweird.f32 %v4243
        %vm4250 = vmor %vm4248, %vm4249
        %v4251 = vsel %vm4250, %v4243, %v4247
        %v4252 = vand.u32 2147483647, %v4227
        %vm4253 = vcmp.eq.f32.partialorder %v4252, 8.507059e+37
        %v4254 = vand.u32 %v4227, 2147483648
        %v4255 = vor.u32 1.1754944e-38, %v4254
        %v4256 = vsel %vm4253, %v4255, %v4251
        %v4257 = vmul.f32 1.0, %v4256
        %v4258 = vtanh.pop %v4178
        %v4259 = vtanh.pop %v4179
        %v4260 = vxor.u32 %v4180, 2147483648
        %v4261 = vxor.u32 %v4181, 2147483648
        %v4262 = vmul.f32 %v4260, 1.442695
        %v4263 = vpow.pop %v4262
        %v4264 = vmul.f32 %v4261, 1.442695
        %v4265 = vpow.pop %v4264
        %v4266 = vadd.f32 %v4263, 1.0
        %v4267 = vadd.f32 %v4265, 1.0
        %v4268 = vrcp.pop %v4266
        %v4269 = vmul.f32 %v4266, %v4268
        %v4270 = vsub.f32 1.0, %v4269
        %v4271 = vmul.f32 %v4268, %v4270
        %v4272 = vadd.f32 %v4268, %v4271
        %vm4273 = vweird.f32 %v4266
        %vm4274 = vweird.f32 %v4268
        %vm4275 = vmor %vm4273, %vm4274
        %v4276 = vsel %vm4275, %v4268, %v4272
        %v4277 = vand.u32 2147483647, %v4266
        %vm4278 = vcmp.eq.f32.partialorder %v4277, 8.507059e+37
        %v4279 = vand.u32 %v4266, 2147483648
        %v4280 = vor.u32 1.1754944e-38, %v4279
        %v4281 = vsel %vm4278, %v4280, %v4276
        %v4282 = vmul.f32 1.0, %v4281
        %v4283 = vrcp.pop %v4267
        %v4284 = vmul.f32 %v4267, %v4283
        %v4285 = vsub.f32 1.0, %v4284
        %v4286 = vmul.f32 %v4283, %v4285
        %v4287 = vadd.f32 %v4283, %v4286
        %vm4288 = vweird.f32 %v4267
        %vm4289 = vweird.f32 %v4283
        %vm4290 = vmor %vm4288, %vm4289
        %v4291 = vsel %vm4290, %v4283, %v4287
        %v4292 = vand.u32 2147483647, %v4267
        %vm4293 = vcmp.eq.f32.partialorder %v4292, 8.507059e+37
        %v4294 = vand.u32 %v4267, 2147483648
        %v4295 = vor.u32 1.1754944e-38, %v4294
        %v4296 = vsel %vm4293, %v4295, %v4291
        %v4297 = vmul.f32 1.0, %v4296
        %v4298 = vmul.f32 %v4242, %v3891
        %v4299 = vmul.f32 %v4257, %v3892
        %v4300 = vmul.f32 %v4204, %v4258
        %v4301 = vmul.f32 %v4219, %v4259
        %v4302 = vadd.f32 %v4298, %v4300
        %v4303 = vadd.f32 %v4299, %v4301
        %v4304 = vtanh.pop %v4302
        %v4305 = vtanh.pop %v4303
        %v4306 = vmul.f32 %v4282, %v4304
        %v4307 = vmul.f32 %v4297, %v4305
        %s4308 = smul.u32 %s1842, 7
        %s4309 = sadd.s32 %s792, %s4308
        %s4310 = sshra.s32 %s4309, 3
        %s4311 = sand.u32 %s4309, 7
        %s4312 = sshra.s32 %s4309, 3
        %s4313 = sand.u32 %s4309, 7
        %s4314 = smul.u32 %s4310, 8
        %s4315 = smul.u32 %s4314, 8
        %s4316 = sadd.s32 %s4315, %s4313
        %s4317 = scalar_lea.vmem [#allocation2], %s4316
        %v4318 = vld [vmem:[%s4317] ss:$8 sm:$0xf]
        %v4319 = vld [vmem:[%s4317] ss:$8 sm:$0xf0]
        %v4320 = vor.u32 %v4318, %v4319
        %s4321 = sadd.s32 %s4309, 8
        %s4322 = sshra.s32 %s4321, 3
        %s4323 = sand.u32 %s4321, 7
        %s4324 = sshra.s32 %s4321, 3
        %s4325 = sand.u32 %s4321, 7
        %s4326 = smul.u32 %s4322, 8
        %s4327 = smul.u32 %s4326, 8
        %s4328 = sadd.s32 %s4327, %s4325
        %s4329 = scalar_lea.vmem [#allocation2], %s4328
        %v4330 = vld [vmem:[%s4329] ss:$8 sm:$0xf]
        %v4331 = vld [vmem:[%s4329] ss:$8 sm:$0xf0]
        %v4332 = vor.u32 %v4330, %v4331
        %v4334 = vperm.slane %v4320, 0
        %v4335 = vperm.slane %v4320, 1
        %v4336 = vperm.slane %v4320, 2
        %v4337 = vperm.slane %v4320, 3
        %v4338 = vperm.slane %v4320, 4
        %v4339 = vperm.slane %v4320, 5
        %v4340 = vperm.slane %v4320, 6
        %v4341 = vperm.slane %v4320, 7
        %v4351 = vperm.slane %v4332, 0
        %v4352 = vperm.slane %v4332, 1
        %v4353 = vperm.slane %v4332, 2
        %v4354 = vperm.slane %v4332, 3
        %v4355 = vperm.slane %v4332, 4
        %v4356 = vperm.slane %v4332, 5
        %v4357 = vperm.slane %v4332, 6
        %v4358 = vperm.slane %v4332, 7
        %v4367 = vsel %vm850, %v4334, %v4351
        %v4368 = vsel %vm850, %v4335, %v4352
        %v4369 = vsel %vm850, %v4336, %v4353
        %v4370 = vsel %vm850, %v4337, %v4354
        %v4371 = vsel %vm850, %v4338, %v4355
        %v4372 = vsel %vm850, %v4339, %v4356
        %v4373 = vsel %vm850, %v4340, %v4357
        %v4374 = vsel %vm850, %v4341, %v4358
        %v4375 = vpack.c.bf16 %v4306, %v4306
        %v4376 = vpack.c.bf16 %v4307, %v4307
        %4377 = vmatpush.bf16.msra.mxu0 %v1299
        %4378 = vmatpush.bf16.msra.mxu0 %v1291
        %4379 = vmatpush.bf16.msra.mxu0 %v1283
        %4380 = vmatpush.bf16.msra.mxu0 %v1275
        %4381 = vmatpush.bf16.msra.mxu0 %v1267
        %4382 = vmatpush.bf16.msra.mxu0 %v1259
        %4383 = vmatpush.bf16.msra.mxu0 %v1251
        %4384 = vmatpush.bf16.msra.mxu0 %v1243
        %4385 = vmatmul.bf16.gmra.mxu0 %v4375
        %v4386 = vpop.f32.mrf.mxu0
        %v4387 = vadd.f32 0.0, %v4386
        %v4388 = vpop.f32.mrf.mxu0
        %4389 = vdwg.mxu0
        %4390 = vmatpush.bf16.msra.mxu0 %v1363
        %4391 = vmatpush.bf16.msra.mxu0 %v1355
        %4392 = vmatpush.bf16.msra.mxu0 %v1347
        %4393 = vmatpush.bf16.msra.mxu0 %v1339
        %4394 = vmatpush.bf16.msra.mxu0 %v1331
        %4395 = vmatpush.bf16.msra.mxu0 %v1323
        %4396 = vmatpush.bf16.msra.mxu0 %v1315
        %4397 = vmatpush.bf16.msra.mxu0 %v1307
        %4398 = vmatmul.bf16.gmra.mxu0 %v4376
        %v4399 = vpop.f32.mrf.mxu0
        %v4400 = vadd.f32 %v4387, %v4399
        %v4401 = vpop.f32.mrf.mxu0
        %4402 = vdwg.mxu0
        %4403 = vmatpush.bf16.msra.mxu0 %v1300
        %4404 = vmatpush.bf16.msra.mxu0 %v1292
        %4405 = vmatpush.bf16.msra.mxu0 %v1284
        %4406 = vmatpush.bf16.msra.mxu0 %v1276
        %4407 = vmatpush.bf16.msra.mxu0 %v1268
        %4408 = vmatpush.bf16.msra.mxu0 %v1260
        %4409 = vmatpush.bf16.msra.mxu0 %v1252
        %4410 = vmatpush.bf16.msra.mxu0 %v1244
        %4411 = vmatmul.bf16.gmra.mxu0 %v4375
        %v4412 = vpop.f32.mrf.mxu0
        %v4413 = vadd.f32 0.0, %v4412
        %v4414 = vpop.f32.mrf.mxu0
        %4415 = vdwg.mxu0
        %4416 = vmatpush.bf16.msra.mxu0 %v1364
        %4417 = vmatpush.bf16.msra.mxu0 %v1356
        %4418 = vmatpush.bf16.msra.mxu0 %v1348
        %4419 = vmatpush.bf16.msra.mxu0 %v1340
        %4420 = vmatpush.bf16.msra.mxu0 %v1332
        %4421 = vmatpush.bf16.msra.mxu0 %v1324
        %4422 = vmatpush.bf16.msra.mxu0 %v1316
        %4423 = vmatpush.bf16.msra.mxu0 %v1308
        %4424 = vmatmul.bf16.gmra.mxu0 %v4376
        %v4425 = vpop.f32.mrf.mxu0
        %v4426 = vadd.f32 %v4413, %v4425
        %v4427 = vpop.f32.mrf.mxu0
        %4428 = vdwg.mxu0
        %4429 = vmatpush.bf16.msra.mxu0 %v1301
        %4430 = vmatpush.bf16.msra.mxu0 %v1293
        %4431 = vmatpush.bf16.msra.mxu0 %v1285
        %4432 = vmatpush.bf16.msra.mxu0 %v1277
        %4433 = vmatpush.bf16.msra.mxu0 %v1269
        %4434 = vmatpush.bf16.msra.mxu0 %v1261
        %4435 = vmatpush.bf16.msra.mxu0 %v1253
        %4436 = vmatpush.bf16.msra.mxu0 %v1245
        %4437 = vmatmul.bf16.gmra.mxu0 %v4375
        %v4438 = vpop.f32.mrf.mxu0
        %v4439 = vadd.f32 0.0, %v4438
        %v4440 = vpop.f32.mrf.mxu0
        %4441 = vdwg.mxu0
        %4442 = vmatpush.bf16.msra.mxu0 %v1365
        %4443 = vmatpush.bf16.msra.mxu0 %v1357
        %4444 = vmatpush.bf16.msra.mxu0 %v1349
        %4445 = vmatpush.bf16.msra.mxu0 %v1341
        %4446 = vmatpush.bf16.msra.mxu0 %v1333
        %4447 = vmatpush.bf16.msra.mxu0 %v1325
        %4448 = vmatpush.bf16.msra.mxu0 %v1317
        %4449 = vmatpush.bf16.msra.mxu0 %v1309
        %4450 = vmatmul.bf16.gmra.mxu0 %v4376
        %v4451 = vpop.f32.mrf.mxu0
        %v4452 = vadd.f32 %v4439, %v4451
        %v4453 = vpop.f32.mrf.mxu0
        %4454 = vdwg.mxu0
        %4455 = vmatpush.bf16.msra.mxu0 %v1302
        %4456 = vmatpush.bf16.msra.mxu0 %v1294
        %4457 = vmatpush.bf16.msra.mxu0 %v1286
        %4458 = vmatpush.bf16.msra.mxu0 %v1278
        %4459 = vmatpush.bf16.msra.mxu0 %v1270
        %4460 = vmatpush.bf16.msra.mxu0 %v1262
        %4461 = vmatpush.bf16.msra.mxu0 %v1254
        %4462 = vmatpush.bf16.msra.mxu0 %v1246
        %4463 = vmatmul.bf16.gmra.mxu0 %v4375
        %v4464 = vpop.f32.mrf.mxu0
        %v4465 = vadd.f32 0.0, %v4464
        %v4466 = vpop.f32.mrf.mxu0
        %4467 = vdwg.mxu0
        %4468 = vmatpush.bf16.msra.mxu0 %v1366
        %4469 = vmatpush.bf16.msra.mxu0 %v1358
        %4470 = vmatpush.bf16.msra.mxu0 %v1350
        %4471 = vmatpush.bf16.msra.mxu0 %v1342
        %4472 = vmatpush.bf16.msra.mxu0 %v1334
        %4473 = vmatpush.bf16.msra.mxu0 %v1326
        %4474 = vmatpush.bf16.msra.mxu0 %v1318
        %4475 = vmatpush.bf16.msra.mxu0 %v1310
        %4476 = vmatmul.bf16.gmra.mxu0 %v4376
        %v4477 = vpop.f32.mrf.mxu0
        %v4478 = vadd.f32 %v4465, %v4477
        %v4479 = vpop.f32.mrf.mxu0
        %4480 = vdwg.mxu0
        %4481 = vmatpush.bf16.msra.mxu0 %v1303
        %4482 = vmatpush.bf16.msra.mxu0 %v1295
        %4483 = vmatpush.bf16.msra.mxu0 %v1287
        %4484 = vmatpush.bf16.msra.mxu0 %v1279
        %4485 = vmatpush.bf16.msra.mxu0 %v1271
        %4486 = vmatpush.bf16.msra.mxu0 %v1263
        %4487 = vmatpush.bf16.msra.mxu0 %v1255
        %4488 = vmatpush.bf16.msra.mxu0 %v1247
        %4489 = vmatmul.bf16.gmra.mxu0 %v4375
        %v4490 = vpop.f32.mrf.mxu0
        %v4491 = vadd.f32 0.0, %v4490
        %v4492 = vpop.f32.mrf.mxu0
        %4493 = vdwg.mxu0
        %4494 = vmatpush.bf16.msra.mxu0 %v1367
        %4495 = vmatpush.bf16.msra.mxu0 %v1359
        %4496 = vmatpush.bf16.msra.mxu0 %v1351
        %4497 = vmatpush.bf16.msra.mxu0 %v1343
        %4498 = vmatpush.bf16.msra.mxu0 %v1335
        %4499 = vmatpush.bf16.msra.mxu0 %v1327
        %4500 = vmatpush.bf16.msra.mxu0 %v1319
        %4501 = vmatpush.bf16.msra.mxu0 %v1311
        %4502 = vmatmul.bf16.gmra.mxu0 %v4376
        %v4503 = vpop.f32.mrf.mxu0
        %v4504 = vadd.f32 %v4491, %v4503
        %v4505 = vpop.f32.mrf.mxu0
        %4506 = vdwg.mxu0
        %4507 = vmatpush.bf16.msra.mxu0 %v1304
        %4508 = vmatpush.bf16.msra.mxu0 %v1296
        %4509 = vmatpush.bf16.msra.mxu0 %v1288
        %4510 = vmatpush.bf16.msra.mxu0 %v1280
        %4511 = vmatpush.bf16.msra.mxu0 %v1272
        %4512 = vmatpush.bf16.msra.mxu0 %v1264
        %4513 = vmatpush.bf16.msra.mxu0 %v1256
        %4514 = vmatpush.bf16.msra.mxu0 %v1248
        %4515 = vmatmul.bf16.gmra.mxu0 %v4375
        %v4516 = vpop.f32.mrf.mxu0
        %v4517 = vadd.f32 0.0, %v4516
        %v4518 = vpop.f32.mrf.mxu0
        %4519 = vdwg.mxu0
        %4520 = vmatpush.bf16.msra.mxu0 %v1368
        %4521 = vmatpush.bf16.msra.mxu0 %v1360
        %4522 = vmatpush.bf16.msra.mxu0 %v1352
        %4523 = vmatpush.bf16.msra.mxu0 %v1344
        %4524 = vmatpush.bf16.msra.mxu0 %v1336
        %4525 = vmatpush.bf16.msra.mxu0 %v1328
        %4526 = vmatpush.bf16.msra.mxu0 %v1320
        %4527 = vmatpush.bf16.msra.mxu0 %v1312
        %4528 = vmatmul.bf16.gmra.mxu0 %v4376
        %v4529 = vpop.f32.mrf.mxu0
        %v4530 = vadd.f32 %v4517, %v4529
        %v4531 = vpop.f32.mrf.mxu0
        %4532 = vdwg.mxu0
        %4533 = vmatpush.bf16.msra.mxu0 %v1305
        %4534 = vmatpush.bf16.msra.mxu0 %v1297
        %4535 = vmatpush.bf16.msra.mxu0 %v1289
        %4536 = vmatpush.bf16.msra.mxu0 %v1281
        %4537 = vmatpush.bf16.msra.mxu0 %v1273
        %4538 = vmatpush.bf16.msra.mxu0 %v1265
        %4539 = vmatpush.bf16.msra.mxu0 %v1257
        %4540 = vmatpush.bf16.msra.mxu0 %v1249
        %4541 = vmatmul.bf16.gmra.mxu0 %v4375
        %v4542 = vpop.f32.mrf.mxu0
        %v4543 = vadd.f32 0.0, %v4542
        %v4544 = vpop.f32.mrf.mxu0
        %4545 = vdwg.mxu0
        %4546 = vmatpush.bf16.msra.mxu0 %v1369
        %4547 = vmatpush.bf16.msra.mxu0 %v1361
        %4548 = vmatpush.bf16.msra.mxu0 %v1353
        %4549 = vmatpush.bf16.msra.mxu0 %v1345
        %4550 = vmatpush.bf16.msra.mxu0 %v1337
        %4551 = vmatpush.bf16.msra.mxu0 %v1329
        %4552 = vmatpush.bf16.msra.mxu0 %v1321
        %4553 = vmatpush.bf16.msra.mxu0 %v1313
        %4554 = vmatmul.bf16.gmra.mxu0 %v4376
        %v4555 = vpop.f32.mrf.mxu0
        %v4556 = vadd.f32 %v4543, %v4555
        %v4557 = vpop.f32.mrf.mxu0
        %4558 = vdwg.mxu0
        %4559 = vmatpush.bf16.msra.mxu0 %v1306
        %4560 = vmatpush.bf16.msra.mxu0 %v1298
        %4561 = vmatpush.bf16.msra.mxu0 %v1290
        %4562 = vmatpush.bf16.msra.mxu0 %v1282
        %4563 = vmatpush.bf16.msra.mxu0 %v1274
        %4564 = vmatpush.bf16.msra.mxu0 %v1266
        %4565 = vmatpush.bf16.msra.mxu0 %v1258
        %4566 = vmatpush.bf16.msra.mxu0 %v1250
        %4567 = vmatmul.bf16.gmra.mxu0 %v4375
        %v4568 = vpop.f32.mrf.mxu0
        %v4569 = vadd.f32 0.0, %v4568
        %v4570 = vpop.f32.mrf.mxu0
        %4571 = vdwg.mxu0
        %4572 = vmatpush.bf16.msra.mxu0 %v1370
        %4573 = vmatpush.bf16.msra.mxu0 %v1362
        %4574 = vmatpush.bf16.msra.mxu0 %v1354
        %4575 = vmatpush.bf16.msra.mxu0 %v1346
        %4576 = vmatpush.bf16.msra.mxu0 %v1338
        %4577 = vmatpush.bf16.msra.mxu0 %v1330
        %4578 = vmatpush.bf16.msra.mxu0 %v1322
        %4579 = vmatpush.bf16.msra.mxu0 %v1314
        %4580 = vmatmul.bf16.gmra.mxu0 %v4376
        %v4581 = vpop.f32.mrf.mxu0
        %v4582 = vadd.f32 %v4569, %v4581
        %v4583 = vpop.f32.mrf.mxu0
        %4584 = vdwg.mxu0
        %v4585 = vadd.f32 %v4367, %v4400
        %v4586 = vadd.f32 %v4368, %v4426
        %v4587 = vadd.f32 %v4369, %v4452
        %v4588 = vadd.f32 %v4370, %v4478
        %v4589 = vadd.f32 %v4371, %v4504
        %v4590 = vadd.f32 %v4372, %v4530
        %v4591 = vadd.f32 %v4373, %v4556
        %v4592 = vadd.f32 %v4374, %v4582
        %v4593 = vxor.u32 %v4585, 2147483648
        %v4594 = vxor.u32 %v4586, 2147483648
        %v4595 = vmul.f32 %v4593, 1.442695
        %v4596 = vpow.pop %v4595
        %v4597 = vmul.f32 %v4594, 1.442695
        %v4598 = vpow.pop %v4597
        %v4599 = vadd.f32 %v4596, 1.0
        %v4600 = vadd.f32 %v4598, 1.0
        %v4601 = vrcp.pop %v4599
        %v4602 = vmul.f32 %v4599, %v4601
        %v4603 = vsub.f32 1.0, %v4602
        %v4604 = vmul.f32 %v4601, %v4603
        %v4605 = vadd.f32 %v4601, %v4604
        %vm4606 = vweird.f32 %v4599
        %vm4607 = vweird.f32 %v4601
        %vm4608 = vmor %vm4606, %vm4607
        %v4609 = vsel %vm4608, %v4601, %v4605
        %v4610 = vand.u32 2147483647, %v4599
        %vm4611 = vcmp.eq.f32.partialorder %v4610, 8.507059e+37
        %v4612 = vand.u32 %v4599, 2147483648
        %v4613 = vor.u32 1.1754944e-38, %v4612
        %v4614 = vsel %vm4611, %v4613, %v4609
        %v4615 = vmul.f32 1.0, %v4614
        %v4616 = vrcp.pop %v4600
        %v4617 = vmul.f32 %v4600, %v4616
        %v4618 = vsub.f32 1.0, %v4617
        %v4619 = vmul.f32 %v4616, %v4618
        %v4620 = vadd.f32 %v4616, %v4619
        %vm4621 = vweird.f32 %v4600
        %vm4622 = vweird.f32 %v4616
        %vm4623 = vmor %vm4621, %vm4622
        %v4624 = vsel %vm4623, %v4616, %v4620
        %v4625 = vand.u32 2147483647, %v4600
        %vm4626 = vcmp.eq.f32.partialorder %v4625, 8.507059e+37
        %v4627 = vand.u32 %v4600, 2147483648
        %v4628 = vor.u32 1.1754944e-38, %v4627
        %v4629 = vsel %vm4626, %v4628, %v4624
        %v4630 = vmul.f32 1.0, %v4629
        %v4631 = vxor.u32 %v4587, 2147483648
        %v4632 = vxor.u32 %v4588, 2147483648
        %v4633 = vmul.f32 %v4631, 1.442695
        %v4634 = vpow.pop %v4633
        %v4635 = vmul.f32 %v4632, 1.442695
        %v4636 = vpow.pop %v4635
        %v4637 = vadd.f32 %v4634, 1.0
        %v4638 = vadd.f32 %v4636, 1.0
        %v4639 = vrcp.pop %v4637
        %v4640 = vmul.f32 %v4637, %v4639
        %v4641 = vsub.f32 1.0, %v4640
        %v4642 = vmul.f32 %v4639, %v4641
        %v4643 = vadd.f32 %v4639, %v4642
        %vm4644 = vweird.f32 %v4637
        %vm4645 = vweird.f32 %v4639
        %vm4646 = vmor %vm4644, %vm4645
        %v4647 = vsel %vm4646, %v4639, %v4643
        %v4648 = vand.u32 2147483647, %v4637
        %vm4649 = vcmp.eq.f32.partialorder %v4648, 8.507059e+37
        %v4650 = vand.u32 %v4637, 2147483648
        %v4651 = vor.u32 1.1754944e-38, %v4650
        %v4652 = vsel %vm4649, %v4651, %v4647
        %v4653 = vmul.f32 1.0, %v4652
        %v4654 = vrcp.pop %v4638
        %v4655 = vmul.f32 %v4638, %v4654
        %v4656 = vsub.f32 1.0, %v4655
        %v4657 = vmul.f32 %v4654, %v4656
        %v4658 = vadd.f32 %v4654, %v4657
        %vm4659 = vweird.f32 %v4638
        %vm4660 = vweird.f32 %v4654
        %vm4661 = vmor %vm4659, %vm4660
        %v4662 = vsel %vm4661, %v4654, %v4658
        %v4663 = vand.u32 2147483647, %v4638
        %vm4664 = vcmp.eq.f32.partialorder %v4663, 8.507059e+37
        %v4665 = vand.u32 %v4638, 2147483648
        %v4666 = vor.u32 1.1754944e-38, %v4665
        %v4667 = vsel %vm4664, %v4666, %v4662
        %v4668 = vmul.f32 1.0, %v4667
        %v4669 = vtanh.pop %v4589
        %v4670 = vtanh.pop %v4590
        %v4671 = vxor.u32 %v4591, 2147483648
        %v4672 = vxor.u32 %v4592, 2147483648
        %v4673 = vmul.f32 %v4671, 1.442695
        %v4674 = vpow.pop %v4673
        %v4675 = vmul.f32 %v4672, 1.442695
        %v4676 = vpow.pop %v4675
        %v4677 = vadd.f32 %v4674, 1.0
        %v4678 = vadd.f32 %v4676, 1.0
        %v4679 = vrcp.pop %v4677
        %v4680 = vmul.f32 %v4677, %v4679
        %v4681 = vsub.f32 1.0, %v4680
        %v4682 = vmul.f32 %v4679, %v4681
        %v4683 = vadd.f32 %v4679, %v4682
        %vm4684 = vweird.f32 %v4677
        %vm4685 = vweird.f32 %v4679
        %vm4686 = vmor %vm4684, %vm4685
        %v4687 = vsel %vm4686, %v4679, %v4683
        %v4688 = vand.u32 2147483647, %v4677
        %vm4689 = vcmp.eq.f32.partialorder %v4688, 8.507059e+37
        %v4690 = vand.u32 %v4677, 2147483648
        %v4691 = vor.u32 1.1754944e-38, %v4690
        %v4692 = vsel %vm4689, %v4691, %v4687
        %v4693 = vmul.f32 1.0, %v4692
        %v4694 = vrcp.pop %v4678
        %v4695 = vmul.f32 %v4678, %v4694
        %v4696 = vsub.f32 1.0, %v4695
        %v4697 = vmul.f32 %v4694, %v4696
        %v4698 = vadd.f32 %v4694, %v4697
        %vm4699 = vweird.f32 %v4678
        %vm4700 = vweird.f32 %v4694
        %vm4701 = vmor %vm4699, %vm4700
        %v4702 = vsel %vm4701, %v4694, %v4698
        %v4703 = vand.u32 2147483647, %v4678
        %vm4704 = vcmp.eq.f32.partialorder %v4703, 8.507059e+37
        %v4705 = vand.u32 %v4678, 2147483648
        %v4706 = vor.u32 1.1754944e-38, %v4705
        %v4707 = vsel %vm4704, %v4706, %v4702
        %v4708 = vmul.f32 1.0, %v4707
        %v4709 = vmul.f32 %v4653, %v4302
        %v4710 = vmul.f32 %v4668, %v4303
        %v4711 = vmul.f32 %v4615, %v4669
        %v4712 = vmul.f32 %v4630, %v4670
        %v4713 = vadd.f32 %v4709, %v4711
        %v4714 = vadd.f32 %v4710, %v4712
        %v4715 = vtanh.pop %v4713
        %v4716 = vtanh.pop %v4714
        %v4717 = vmul.f32 %v4693, %v4715
        %v4718 = vmul.f32 %v4708, %v4716
        %v4721 = vrot.slane %v4718, 6
        %vm4722 = vcmask 1041408
        %v4723 = vsel %vm4722, %v4717, %v4721
        %4725 = vst [vmem:[%s312] sm:$0xf] %v4723
        %s4726 = sand.u32 %s132, 1
        %s4727 = scalar_lea.sflag [#allocation5], %s4726
        %s4728 = sand.u32 %s132, 1
        %s4729 = smul.addr %s4728, 4
        %s4730 = scalar_lea.vmem [#allocation11], %s4729
        // Predicated region
        $region53: #{tpu_custom_call.1} parent=35 // pred_check
          %p4731 = pneg %p142
        $region54: #{tpu_custom_call.1} parent=35 // pred_check_branch
          %4733 = sbr.rel (%p4731) target = $region56
        $region55: #{tpu_custom_call.1} parent=35 // pred_region
          %s4734 = smul.u32 2, %s25
          %4736 = vsyncadd %s4727, 0
          %s4737 = smul.addr %s4734, 2
          %s4738 = scalar_lea.hbm %s4, %s4737
          %s4740 = sshll.u32 %s4730, 4
          %s4741 = int_to_ptr.vmem [resolvable:$true] %s4740
          %s4742 = sshll.u32 %s4738, 4
          %s4743 = int_to_ptr.hbm [resolvable:$true] %s4742
          %4745 = dma.vmem_to_hbm [thread:$0]  %s4741, 64, %s4743, %s4727
        $region56: #{tpu_custom_call.1} parent=35 // pred_fallthru
          _
      $region36: #{tpu_custom_call.1} parent=5 // pred_fallthru
        _
      %p4746 = scmp.le.s32.totalorder 2, %s20
      // Predicated region
      $region57: #{tpu_custom_call.1} parent=5 // pred_check
        %p4747 = pneg %p4746
      $region58: #{tpu_custom_call.1} parent=5 // pred_check_branch
        %4749 = sbr.rel (%p4747) target = $region60
      $region59: #{tpu_custom_call.1} parent=5 // pred_region
        %s4750 = ssub.s32 %s20, 2
        // Predicated region
        $region61: #{tpu_custom_call.1} parent=59 // pred_check
          %p4751 = pneg %p148
        $region62: #{tpu_custom_call.1} parent=59 // pred_check_branch
          %4753 = sbr.rel (%p4751) target = $region64
        $region63: #{tpu_custom_call.1} parent=59 // pred_region
          %s4754 = sand.u32 %s133, 1
          %s4755 = scalar_lea.sflag [#allocation5], %s4754
          %s4756 = sand.u32 %s133, 1
          %s4757 = smul.addr %s4756, 4
          %s4758 = scalar_lea.vmem [#allocation11], %s4757
          %4760 = dma.done %s4755, 64
        $region64: #{tpu_custom_call.1} parent=59 // pred_fallthru
          _
      $region60: #{tpu_custom_call.1} parent=5 // pred_fallthru
        _
    $region6: #{tpu_custom_call.1} parent=1 // loop_footer
      %s24 = sadd.s32 1, %s20
    $region7: #{tpu_custom_call.1} parent=1 // loop_footer_branch
      %19 = sbr.rel target = $region3
    $region8: #{tpu_custom_call.1} parent=1 // loop_exit
      _
    %4761 = vsyncpa [#allocation4], 1
    %s4762 = scalar_lea.sflag [#allocation4], 1
    %4763 = vsyncpa %s4762, 1
    %4764 = vsyncpa [#allocation7], 1
    %s4765 = scalar_lea.sflag [#allocation7], 1
    %4766 = vsyncpa %s4765, 1
    %4767 = vsyncpa [#allocation10], 1
    %s4768 = scalar_lea.sflag [#allocation10], 1
    %4769 = vsyncpa %s4768, 1
    %4770 = vsyncpa [#allocation5], 1
    %s4771 = scalar_lea.sflag [#allocation5], 1
    %4772 = vsyncpa %s4771, 1

</llo_original>
